<compile_context>
chip_gen: v7x
topology: tpu7x:2x2x1
jax: 0.10.0
libtpu: 0.0.40
codegen_flags: <defaults>
</compile_context>

<pallas_src>
import jax
import jax.numpy as jnp
from jax import lax
from jax.experimental import pallas as pl
from jax.experimental.pallas import tpu as pltpu

N_DOF = 2  # n: generalized coordinates -> state dim = 2n = 4


def lnn_flow(x, w1, b1, w2, *, delta_t, steps=10, method="euler", eps=1.0):
    """Pallas version of LNN_flow.forward: returns stacked trajectory (steps, B, 2n)."""
    if method not in ("euler", "rk4"):
        raise ValueError(method)
    B, D = x.shape
    n = D // 2
    assert n == N_DOF, "kernel specialized to 2 generalized coordinates"
    h = w1.shape[0]
    f32 = jnp.float32

    # ---- step-invariant weight products, built once in the wrapper ----------
    w1 = jnp.asarray(w1, f32)                      # (h, 2n)
    w1t = w1.T                                     # (2n, h)   W1^T
    # v = qdot @ W1[:, :n]^T expressed as a full-state contraction:
    # w1tv rows 0..n-1 are zero, rows n..2n-1 = w1t[0:n]  ->  v = x @ w1tv
    w1tv = jnp.concatenate([jnp.zeros((n, h), f32), w1t[:n, :]], axis=0)  # (2n, h)
    wq = w1[:, :n]                                 # (h, n)  -> dL/dq     = d1  @ wq
    wv = w1[:, n:]                                 # (h, n)  -> (B qdot)  = d2v @ wv
    wv0 = w1[:, n]
    wv1 = w1[:, n + 1]
    wvv = jnp.stack([wv0 * wv0, wv0 * wv1, wv1 * wv1], axis=-1)           # (h, 3)
    b1r = jnp.asarray(b1, f32).reshape(1, h)
    w2r = jnp.asarray(w2, f32).reshape(1, h)
    x = jnp.asarray(x, f32)
    dt = float(delta_t)

    def kernel(x_ref, w1t_ref, w1tv_ref, wq_ref, wv_ref, wvv_ref,
               b1_ref, w2_ref, out_ref):
        # Hoist all weight loads + broadcasts out of the step/stage loop.
        w1t_v = w1t_ref[...]
        w1tv_v = w1tv_ref[...]
        wq_v = wq_ref[...]
        wv_v = wv_ref[...]
        wvv_v = wvv_ref[...]
        b1_b = jnp.broadcast_to(b1_ref[...], (B, h))
        w2_b = jnp.broadcast_to(w2_ref[...], (B, h))

        def dyn(xc):
            """dx/dt = [qdot, qddot] for a batch of states (B, 2n)."""
            qdot = xc[:, n:]                                                # (B, n)
            z = jnp.dot(xc, w1t_v, preferred_element_type=f32) + b1_b       # (B, h)
            v = jnp.dot(xc, w1tv_v, preferred_element_type=f32)             # (B, h)
            s = jnp.tanh(z)
            sp = 1.0 - s * s                                                # tanh'
            d1 = w2_b * sp                                                  # (B, h)
            d2 = -2.0 * w2_b * s * sp                                       # (B, h)

            # cross-hidden contractions as tiny matmuls (MXU/VPU, not XLU)
            dLdq = jnp.dot(d1, wq_v, preferred_element_type=f32)            # (B, n)
            bq = jnp.dot(d2 * v, wv_v, preferred_element_type=f32)          # (B, n)
            avv = jnp.dot(d2, wvv_v, preferred_element_type=f32)            # (B, 3)

            a00 = avv[:, 0:1] + eps
            a01 = avv[:, 1:2]
            a11 = avv[:, 2:3] + eps
            r0 = dLdq[:, 0:1] - bq[:, 0:1]
            r1 = dLdq[:, 1:2] - bq[:, 1:2]
            inv_det = 1.0 / (a00 * a11 - a01 * a01)
            qdd = jnp.concatenate([a11 * r0 - a01 * r1,
                                   a00 * r1 - a01 * r0], axis=-1) * inv_det  # (B, n)
            return jnp.concatenate([qdot, qdd], axis=-1)                     # (B, 2n)

        def step_fn(xc):
            if method == "euler":                    # LNN_flow._euler_step
                return xc + dyn(xc) * dt
            # rk4 — mirrors LNN_flow._rk_step verbatim (incl. dt/2 in stage 4)
            k1 = dyn(xc)
            x2 = xc + k1 * dt / 2
            k2 = dyn(x2)
            x3 = xc + dt * k2 / 2
            k3 = dyn(x3)
            x4 = xc + dt * k3 / 2
            k4 = dyn(x4)
            return xc + dt * (k1 / 6 + k2 / 3 + k3 / 3 + k4 / 6)

        def body(i, xc):
            xn = step_fn(xc)
            out_ref[i] = xn            # torch.stack(sol, 0) slice for this step
            return xn                  # carry stays in vregs

        lax.fori_loop(0, steps, body, x_ref[...], unroll=(steps <= 16))

    vmem = pl.BlockSpec(memory_space=pltpu.MemorySpace.VMEM)
    return pl.pallas_call(
        kernel,
        out_shape=jax.ShapeDtypeStruct((steps, B, D), f32),
        in_specs=[vmem] * 8,
        out_specs=pl.BlockSpec(memory_space=pltpu.MemorySpace.VMEM),
    )(x, w1t, w1tv, wq, wv, wvv, b1r, w2r)


# ------------------------- pure-JAX autodiff reference -------------------------
def _lagrangian(xi, w1, b1, w2):
    return jnp.sum(w2 * jnp.tanh(w1 @ xi + b1))


def _dyn_ref(x, w1, b1, w2, eps):
    n = N_DOF

    def single(xi):
        g = jax.grad(_lagrangian)(xi, w1, b1, w2)
        H = jax.hessian(_lagrangian)(xi, w1, b1, w2)
        qdot = xi[n:]
        A = H[n:, n:] + eps * jnp.eye(n, dtype=xi.dtype)
        Bm = H[n:, :n]
        qddot = jnp.linalg.solve(A, g[:n] - Bm @ qdot)
        return jnp.concatenate([qdot, qddot])

    return jax.vmap(single)(x)


def lnn_flow_ref(x, w1, b1, w2, *, delta_t, steps=10, eps=1.0):
    sol = []
    for _ in range(steps):
        x = x + delta_t * _dyn_ref(x, w1, b1, w2, eps)
        sol.append(x)
    return jnp.stack(sol, 0)


if __name__ == "__main__":
    key = jax.random.PRNGKey(0)
    kx, kw1, kb1, kw2 = jax.random.split(key, 4)
    B, n, h = 8, N_DOF, 32
    D = 2 * n
    delta_t = 0.1
    steps = 10

    x0 = 0.5 * jax.random.normal(kx, (B, D), jnp.float32)
    w1 = 0.4 * jax.random.normal(kw1, (h, D), jnp.float32)
    b1 = 0.1 * jax.random.normal(kb1, (h,), jnp.float32)
    w2 = 0.4 * jax.random.normal(kw2, (h,), jnp.float32)

    sol = lnn_flow(x0, w1, b1, w2, delta_t=delta_t, steps=steps, method="euler")
    sol = jax.block_until_ready(sol)
    assert sol.shape == (steps, B, D)
    assert bool(jnp.all(jnp.isfinite(sol)))

    ref = lnn_flow_ref(x0, w1, b1, w2, delta_t=delta_t, steps=steps)
    err = float(jnp.max(jnp.abs(sol - ref)))
    assert err < 5e-3, f"mismatch vs autodiff reference: {err}"

    sol_rk4 = jax.block_until_ready(
        lnn_flow(x0, w1, b1, w2, delta_t=delta_t, steps=steps, method="rk4"))
    assert sol_rk4.shape == (steps, B, D)
    assert bool(jnp.all(jnp.isfinite(sol_rk4)))

    print("KERNEL_OK")
</pallas_src>

<mosaic_0001>
module attributes {stable_mosaic.version = 11 : i64} {
  func.func @kernel(%arg0: memref<8x4xf32, #tpu.memory_space<vmem>>, %arg1: memref<4x32xf32, #tpu.memory_space<vmem>>, %arg2: memref<4x32xf32, #tpu.memory_space<vmem>>, %arg3: memref<32x2xf32, #tpu.memory_space<vmem>>, %arg4: memref<32x2xf32, #tpu.memory_space<vmem>>, %arg5: memref<32x3xf32, #tpu.memory_space<vmem>>, %arg6: memref<1x32xf32, #tpu.memory_space<vmem>>, %arg7: memref<1x32xf32, #tpu.memory_space<vmem>>, %arg8: memref<10x8x4xf32, #tpu.memory_space<vmem>>) attributes {dimension_semantics = [], scalar_prefetch = 0 : i64, scratch_operands = 0 : i64, tpu.core_type = #tpu.core_type<tc>} {
    %c0 = arith.constant 0 : index
    %c0_0 = arith.constant 0 : index
    %0 = vector.load %arg1[%c0, %c0_0] : memref<4x32xf32, #tpu.memory_space<vmem>>, vector<4x32xf32>
    %c0_1 = arith.constant 0 : index
    %c0_2 = arith.constant 0 : index
    %1 = vector.load %arg2[%c0_1, %c0_2] : memref<4x32xf32, #tpu.memory_space<vmem>>, vector<4x32xf32>
    %c0_3 = arith.constant 0 : index
    %c0_4 = arith.constant 0 : index
    %2 = vector.load %arg3[%c0_3, %c0_4] : memref<32x2xf32, #tpu.memory_space<vmem>>, vector<32x2xf32>
    %c0_5 = arith.constant 0 : index
    %c0_6 = arith.constant 0 : index
    %3 = vector.load %arg4[%c0_5, %c0_6] : memref<32x2xf32, #tpu.memory_space<vmem>>, vector<32x2xf32>
    %c0_7 = arith.constant 0 : index
    %c0_8 = arith.constant 0 : index
    %4 = vector.load %arg5[%c0_7, %c0_8] : memref<32x3xf32, #tpu.memory_space<vmem>>, vector<32x3xf32>
    %c0_9 = arith.constant 0 : index
    %c0_10 = arith.constant 0 : index
    %5 = vector.load %arg6[%c0_9, %c0_10] : memref<1x32xf32, #tpu.memory_space<vmem>>, vector<1x32xf32>
    %6 = vector.shape_cast %5 : vector<1x32xf32> to vector<1x32xf32>
    %7 = vector.broadcast %6 : vector<1x32xf32> to vector<8x32xf32>
    %c0_11 = arith.constant 0 : index
    %c0_12 = arith.constant 0 : index
    %8 = vector.load %arg7[%c0_11, %c0_12] : memref<1x32xf32, #tpu.memory_space<vmem>>, vector<1x32xf32>
    %9 = vector.shape_cast %8 : vector<1x32xf32> to vector<1x32xf32>
    %10 = vector.broadcast %9 : vector<1x32xf32> to vector<8x32xf32>
    %c0_13 = arith.constant 0 : index
    %c0_14 = arith.constant 0 : index
    %11 = vector.load %arg0[%c0_13, %c0_14] : memref<8x4xf32, #tpu.memory_space<vmem>>, vector<8x4xf32>
    %c0_i32 = arith.constant 0 : i32
    %12 = vector.extract_strided_slice %11 {offsets = [0, 2], sizes = [8, 2], strides = [1, 1]} : vector<8x4xf32> to vector<8x2xf32>
    %cst = arith.constant dense<0.000000e+00> : vector<8x32xf32>
    %13 = tpu.matmul %11, %0, %cst {dimension_numbers = #tpu.dot_dimension_numbers<[1], [0], [0], [1], [0, 0, 1, 1], [], []>} : vector<8x4xf32>, vector<4x32xf32>, vector<8x32xf32> -> vector<8x32xf32>
    %14 = arith.addf %13, %7 : vector<8x32xf32>
    %cst_15 = arith.constant dense<0.000000e+00> : vector<8x32xf32>
    %15 = tpu.matmul %11, %1, %cst_15 {dimension_numbers = #tpu.dot_dimension_numbers<[1], [0], [0], [1], [0, 0, 1, 1], [], []>} : vector<8x4xf32>, vector<4x32xf32>, vector<8x32xf32> -> vector<8x32xf32>
    %16 = math.tanh %14 : vector<8x32xf32>
    %17 = arith.mulf %16, %16 : vector<8x32xf32>
    %cst_16 = arith.constant 1.000000e+00 : f32
    %18 = vector.broadcast %cst_16 : f32 to vector<8x32xf32>
    %19 = arith.subf %18, %17 : vector<8x32xf32>
    %20 = arith.mulf %10, %19 : vector<8x32xf32>
    %cst_17 = arith.constant -2.000000e+00 : f32
    %21 = vector.broadcast %cst_17 : f32 to vector<8x32xf32>
    %22 = arith.mulf %21, %10 : vector<8x32xf32>
    %23 = arith.mulf %22, %16 : vector<8x32xf32>
    %24 = arith.mulf %23, %19 : vector<8x32xf32>
    %cst_18 = arith.constant dense<0.000000e+00> : vector<8x2xf32>
    %25 = tpu.matmul %20, %2, %cst_18 {dimension_numbers = #tpu.dot_dimension_numbers<[1], [0], [0], [1], [0, 0, 1, 1], [], []>} : vector<8x32xf32>, vector<32x2xf32>, vector<8x2xf32> -> vector<8x2xf32>
    %26 = arith.mulf %24, %15 : vector<8x32xf32>
    %cst_19 = arith.constant dense<0.000000e+00> : vector<8x2xf32>
    %27 = tpu.matmul %26, %3, %cst_19 {dimension_numbers = #tpu.dot_dimension_numbers<[1], [0], [0], [1], [0, 0, 1, 1], [], []>} : vector<8x32xf32>, vector<32x2xf32>, vector<8x2xf32> -> vector<8x2xf32>
    %cst_20 = arith.constant dense<0.000000e+00> : vector<8x3xf32>
    %28 = tpu.matmul %24, %4, %cst_20 {dimension_numbers = #tpu.dot_dimension_numbers<[1], [0], [0], [1], [0, 0, 1, 1], [], []>} : vector<8x32xf32>, vector<32x3xf32>, vector<8x3xf32> -> vector<8x3xf32>
    %29 = vector.extract_strided_slice %28 {offsets = [0, 0], sizes = [8, 1], strides = [1, 1]} : vector<8x3xf32> to vector<8x1xf32>
    %cst_21 = arith.constant 1.000000e+00 : f32
    %30 = vector.broadcast %cst_21 : f32 to vector<8x1xf32>
    %31 = arith.addf %29, %30 : vector<8x1xf32>
    %32 = vector.extract_strided_slice %28 {offsets = [0, 1], sizes = [8, 1], strides = [1, 1]} : vector<8x3xf32> to vector<8x1xf32>
    %33 = vector.extract_strided_slice %28 {offsets = [0, 2], sizes = [8, 1], strides = [1, 1]} : vector<8x3xf32> to vector<8x1xf32>
    %cst_22 = arith.constant 1.000000e+00 : f32
    %34 = vector.broadcast %cst_22 : f32 to vector<8x1xf32>
    %35 = arith.addf %33, %34 : vector<8x1xf32>
    %36 = vector.extract_strided_slice %25 {offsets = [0, 0], sizes = [8, 1], strides = [1, 1]} : vector<8x2xf32> to vector<8x1xf32>
    %37 = vector.extract_strided_slice %27 {offsets = [0, 0], sizes = [8, 1], strides = [1, 1]} : vector<8x2xf32> to vector<8x1xf32>
    %38 = arith.subf %36, %37 : vector<8x1xf32>
    %39 = vector.extract_strided_slice %25 {offsets = [0, 1], sizes = [8, 1], strides = [1, 1]} : vector<8x2xf32> to vector<8x1xf32>
    %40 = vector.extract_strided_slice %27 {offsets = [0, 1], sizes = [8, 1], strides = [1, 1]} : vector<8x2xf32> to vector<8x1xf32>
    %41 = arith.subf %39, %40 : vector<8x1xf32>
    %42 = arith.mulf %31, %35 : vector<8x1xf32>
    %43 = arith.mulf %32, %32 : vector<8x1xf32>
    %44 = arith.subf %42, %43 : vector<8x1xf32>
    %cst_23 = arith.constant 1.000000e+00 : f32
    %45 = vector.broadcast %cst_23 : f32 to vector<8x1xf32>
    %46 = arith.divf %45, %44 : vector<8x1xf32>
    %47 = arith.mulf %35, %38 : vector<8x1xf32>
    %48 = arith.mulf %32, %41 : vector<8x1xf32>
    %49 = arith.subf %47, %48 : vector<8x1xf32>
    %50 = arith.mulf %31, %41 : vector<8x1xf32>
    %51 = arith.mulf %32, %38 : vector<8x1xf32>
    %52 = arith.subf %50, %51 : vector<8x1xf32>
    %53 = tpu.concatenate %49, %52 in 1 : vector<8x1xf32>, vector<8x1xf32> -> vector<8x2xf32>
    %54 = vector.broadcast %46 : vector<8x1xf32> to vector<8x2xf32>
    %55 = arith.mulf %53, %54 : vector<8x2xf32>
    %56 = tpu.concatenate %12, %55 in 1 : vector<8x2xf32>, vector<8x2xf32> -> vector<8x4xf32>
    %cst_24 = arith.constant 1.000000e-01 : f32
    %57 = vector.broadcast %cst_24 : f32 to vector<8x4xf32>
    %58 = arith.mulf %56, %57 : vector<8x4xf32>
    %59 = arith.addf %11, %58 : vector<8x4xf32>
    %60 = arith.index_cast %c0_i32 : i32 to index
    %c0_25 = arith.constant 0 : index
    %c0_26 = arith.constant 0 : index
    %61 = vector.load %arg8[%60, %c0_25, %c0_26] : memref<10x8x4xf32, #tpu.memory_space<vmem>>, vector<1x8x4xf32>
    %62 = vector.shape_cast %61 : vector<1x8x4xf32> to vector<8x4xf32>
    %63 = vector.shape_cast %59 : vector<8x4xf32> to vector<1x8x4xf32>
    tpu.vector_store %arg8[%60, %c0_25, %c0_26], %63 {strides = array<i32>} : memref<10x8x4xf32, #tpu.memory_space<vmem>>, vector<1x8x4xf32>,
    %c1_i32 = arith.constant 1 : i32
    %64 = vector.extract_strided_slice %59 {offsets = [0, 2], sizes = [8, 2], strides = [1, 1]} : vector<8x4xf32> to vector<8x2xf32>
    %cst_27 = arith.constant dense<0.000000e+00> : vector<8x32xf32>
    %65 = tpu.matmul %59, %0, %cst_27 {dimension_numbers = #tpu.dot_dimension_numbers<[1], [0], [0], [1], [0, 0, 1, 1], [], []>} : vector<8x4xf32>, vector<4x32xf32>, vector<8x32xf32> -> vector<8x32xf32>
    %66 = arith.addf %65, %7 : vector<8x32xf32>
    %cst_28 = arith.constant dense<0.000000e+00> : vector<8x32xf32>
    %67 = tpu.matmul %59, %1, %cst_28 {dimension_numbers = #tpu.dot_dimension_numbers<[1], [0], [0], [1], [0, 0, 1, 1], [], []>} : vector<8x4xf32>, vector<4x32xf32>, vector<8x32xf32> -> vector<8x32xf32>
    %68 = math.tanh %66 : vector<8x32xf32>
    %69 = arith.mulf %68, %68 : vector<8x32xf32>
    %cst_29 = arith.constant 1.000000e+00 : f32
    %70 = vector.broadcast %cst_29 : f32 to vector<8x32xf32>
    %71 = arith.subf %70, %69 : vector<8x32xf32>
    %72 = arith.mulf %10, %71 : vector<8x32xf32>
    %cst_30 = arith.constant -2.000000e+00 : f32
    %73 = vector.broadcast %cst_30 : f32 to vector<8x32xf32>
    %74 = arith.mulf %73, %10 : vector<8x32xf32>
    %75 = arith.mulf %74, %68 : vector<8x32xf32>
    %76 = arith.mulf %75, %71 : vector<8x32xf32>
    %cst_31 = arith.constant dense<0.000000e+00> : vector<8x2xf32>
    %77 = tpu.matmul %72, %2, %cst_31 {dimension_numbers = #tpu.dot_dimension_numbers<[1], [0], [0], [1], [0, 0, 1, 1], [], []>} : vector<8x32xf32>, vector<32x2xf32>, vector<8x2xf32> -> vector<8x2xf32>
    %78 = arith.mulf %76, %67 : vector<8x32xf32>
    %cst_32 = arith.constant dense<0.000000e+00> : vector<8x2xf32>
    %79 = tpu.matmul %78, %3, %cst_32 {dimension_numbers = #tpu.dot_dimension_numbers<[1], [0], [0], [1], [0, 0, 1, 1], [], []>} : vector<8x32xf32>, vector<32x2xf32>, vector<8x2xf32> -> vector<8x2xf32>
    %cst_33 = arith.constant dense<0.000000e+00> : vector<8x3xf32>
    %80 = tpu.matmul %76, %4, %cst_33 {dimension_numbers = #tpu.dot_dimension_numbers<[1], [0], [0], [1], [0, 0, 1, 1], [], []>} : vector<8x32xf32>, vector<32x3xf32>, vector<8x3xf32> -> vector<8x3xf32>
    %81 = vector.extract_strided_slice %80 {offsets = [0, 0], sizes = [8, 1], strides = [1, 1]} : vector<8x3xf32> to vector<8x1xf32>
    %cst_34 = arith.constant 1.000000e+00 : f32
    %82 = vector.broadcast %cst_34 : f32 to vector<8x1xf32>
    %83 = arith.addf %81, %82 : vector<8x1xf32>
    %84 = vector.extract_strided_slice %80 {offsets = [0, 1], sizes = [8, 1], strides = [1, 1]} : vector<8x3xf32> to vector<8x1xf32>
    %85 = vector.extract_strided_slice %80 {offsets = [0, 2], sizes = [8, 1], strides = [1, 1]} : vector<8x3xf32> to vector<8x1xf32>
    %cst_35 = arith.constant 1.000000e+00 : f32
    %86 = vector.broadcast %cst_35 : f32 to vector<8x1xf32>
    %87 = arith.addf %85, %86 : vector<8x1xf32>
    %88 = vector.extract_strided_slice %77 {offsets = [0, 0], sizes = [8, 1], strides = [1, 1]} : vector<8x2xf32> to vector<8x1xf32>
    %89 = vector.extract_strided_slice %79 {offsets = [0, 0], sizes = [8, 1], strides = [1, 1]} : vector<8x2xf32> to vector<8x1xf32>
    %90 = arith.subf %88, %89 : vector<8x1xf32>
    %91 = vector.extract_strided_slice %77 {offsets = [0, 1], sizes = [8, 1], strides = [1, 1]} : vector<8x2xf32> to vector<8x1xf32>
    %92 = vector.extract_strided_slice %79 {offsets = [0, 1], sizes = [8, 1], strides = [1, 1]} : vector<8x2xf32> to vector<8x1xf32>
    %93 = arith.subf %91, %92 : vector<8x1xf32>
    %94 = arith.mulf %83, %87 : vector<8x1xf32>
    %95 = arith.mulf %84, %84 : vector<8x1xf32>
    %96 = arith.subf %94, %95 : vector<8x1xf32>
    %cst_36 = arith.constant 1.000000e+00 : f32
    %97 = vector.broadcast %cst_36 : f32 to vector<8x1xf32>
    %98 = arith.divf %97, %96 : vector<8x1xf32>
    %99 = arith.mulf %87, %90 : vector<8x1xf32>
    %100 = arith.mulf %84, %93 : vector<8x1xf32>
    %101 = arith.subf %99, %100 : vector<8x1xf32>
    %102 = arith.mulf %83, %93 : vector<8x1xf32>
    %103 = arith.mulf %84, %90 : vector<8x1xf32>
    %104 = arith.subf %102, %103 : vector<8x1xf32>
    %105 = tpu.concatenate %101, %104 in 1 : vector<8x1xf32>, vector<8x1xf32> -> vector<8x2xf32>
    %106 = vector.broadcast %98 : vector<8x1xf32> to vector<8x2xf32>
    %107 = arith.mulf %105, %106 : vector<8x2xf32>
    %108 = tpu.concatenate %64, %107 in 1 : vector<8x2xf32>, vector<8x2xf32> -> vector<8x4xf32>
    %cst_37 = arith.constant 1.000000e-01 : f32
    %109 = vector.broadcast %cst_37 : f32 to vector<8x4xf32>
    %110 = arith.mulf %108, %109 : vector<8x4xf32>
    %111 = arith.addf %59, %110 : vector<8x4xf32>
    %112 = arith.index_cast %c1_i32 : i32 to index
    %c0_38 = arith.constant 0 : index
    %c0_39 = arith.constant 0 : index
    %113 = vector.load %arg8[%112, %c0_38, %c0_39] : memref<10x8x4xf32, #tpu.memory_space<vmem>>, vector<1x8x4xf32>
    %114 = vector.shape_cast %113 : vector<1x8x4xf32> to vector<8x4xf32>
    %115 = vector.shape_cast %111 : vector<8x4xf32> to vector<1x8x4xf32>
    tpu.vector_store %arg8[%112, %c0_38, %c0_39], %115 {strides = array<i32>} : memref<10x8x4xf32, #tpu.memory_space<vmem>>, vector<1x8x4xf32>,
    %c2_i32 = arith.constant 2 : i32
    %116 = vector.extract_strided_slice %111 {offsets = [0, 2], sizes = [8, 2], strides = [1, 1]} : vector<8x4xf32> to vector<8x2xf32>
    %cst_40 = arith.constant dense<0.000000e+00> : vector<8x32xf32>
    %117 = tpu.matmul %111, %0, %cst_40 {dimension_numbers = #tpu.dot_dimension_numbers<[1], [0], [0], [1], [0, 0, 1, 1], [], []>} : vector<8x4xf32>, vector<4x32xf32>, vector<8x32xf32> -> vector<8x32xf32>
    %118 = arith.addf %117, %7 : vector<8x32xf32>
    %cst_41 = arith.constant dense<0.000000e+00> : vector<8x32xf32>
    %119 = tpu.matmul %111, %1, %cst_41 {dimension_numbers = #tpu.dot_dimension_numbers<[1], [0], [0], [1], [0, 0, 1, 1], [], []>} : vector<8x4xf32>, vector<4x32xf32>, vector<8x32xf32> -> vector<8x32xf32>
    %120 = math.tanh %118 : vector<8x32xf32>
    %121 = arith.mulf %120, %120 : vector<8x32xf32>
    %cst_42 = arith.constant 1.000000e+00 : f32
    %122 = vector.broadcast %cst_42 : f32 to vector<8x32xf32>
    %123 = arith.subf %122, %121 : vector<8x32xf32>
    %124 = arith.mulf %10, %123 : vector<8x32xf32>
    %cst_43 = arith.constant -2.000000e+00 : f32
    %125 = vector.broadcast %cst_43 : f32 to vector<8x32xf32>
    %126 = arith.mulf %125, %10 : vector<8x32xf32>
    %127 = arith.mulf %126, %120 : vector<8x32xf32>
    %128 = arith.mulf %127, %123 : vector<8x32xf32>
    %cst_44 = arith.constant dense<0.000000e+00> : vector<8x2xf32>
    %129 = tpu.matmul %124, %2, %cst_44 {dimension_numbers = #tpu.dot_dimension_numbers<[1], [0], [0], [1], [0, 0, 1, 1], [], []>} : vector<8x32xf32>, vector<32x2xf32>, vector<8x2xf32> -> vector<8x2xf32>
    %130 = arith.mulf %128, %119 : vector<8x32xf32>
    %cst_45 = arith.constant dense<0.000000e+00> : vector<8x2xf32>
    %131 = tpu.matmul %130, %3, %cst_45 {dimension_numbers = #tpu.dot_dimension_numbers<[1], [0], [0], [1], [0, 0, 1, 1], [], []>} : vector<8x32xf32>, vector<32x2xf32>, vector<8x2xf32> -> vector<8x2xf32>
    %cst_46 = arith.constant dense<0.000000e+00> : vector<8x3xf32>
    %132 = tpu.matmul %128, %4, %cst_46 {dimension_numbers = #tpu.dot_dimension_numbers<[1], [0], [0], [1], [0, 0, 1, 1], [], []>} : vector<8x32xf32>, vector<32x3xf32>, vector<8x3xf32> -> vector<8x3xf32>
    %133 = vector.extract_strided_slice %132 {offsets = [0, 0], sizes = [8, 1], strides = [1, 1]} : vector<8x3xf32> to vector<8x1xf32>
    %cst_47 = arith.constant 1.000000e+00 : f32
    %134 = vector.broadcast %cst_47 : f32 to vector<8x1xf32>
    %135 = arith.addf %133, %134 : vector<8x1xf32>
    %136 = vector.extract_strided_slice %132 {offsets = [0, 1], sizes = [8, 1], strides = [1, 1]} : vector<8x3xf32> to vector<8x1xf32>
    %137 = vector.extract_strided_slice %132 {offsets = [0, 2], sizes = [8, 1], strides = [1, 1]} : vector<8x3xf32> to vector<8x1xf32>
    %cst_48 = arith.constant 1.000000e+00 : f32
    %138 = vector.broadcast %cst_48 : f32 to vector<8x1xf32>
    %139 = arith.addf %137, %138 : vector<8x1xf32>
    %140 = vector.extract_strided_slice %129 {offsets = [0, 0], sizes = [8, 1], strides = [1, 1]} : vector<8x2xf32> to vector<8x1xf32>
    %141 = vector.extract_strided_slice %131 {offsets = [0, 0], sizes = [8, 1], strides = [1, 1]} : vector<8x2xf32> to vector<8x1xf32>
    %142 = arith.subf %140, %141 : vector<8x1xf32>
    %143 = vector.extract_strided_slice %129 {offsets = [0, 1], sizes = [8, 1], strides = [1, 1]} : vector<8x2xf32> to vector<8x1xf32>
    %144 = vector.extract_strided_slice %131 {offsets = [0, 1], sizes = [8, 1], strides = [1, 1]} : vector<8x2xf32> to vector<8x1xf32>
    %145 = arith.subf %143, %144 : vector<8x1xf32>
    %146 = arith.mulf %135, %139 : vector<8x1xf32>
    %147 = arith.mulf %136, %136 : vector<8x1xf32>
    %148 = arith.subf %146, %147 : vector<8x1xf32>
    %cst_49 = arith.constant 1.000000e+00 : f32
    %149 = vector.broadcast %cst_49 : f32 to vector<8x1xf32>
    %150 = arith.divf %149, %148 : vector<8x1xf32>
    %151 = arith.mulf %139, %142 : vector<8x1xf32>
    %152 = arith.mulf %136, %145 : vector<8x1xf32>
    %153 = arith.subf %151, %152 : vector<8x1xf32>
    %154 = arith.mulf %135, %145 : vector<8x1xf32>
    %155 = arith.mulf %136, %142 : vector<8x1xf32>
    %156 = arith.subf %154, %155 : vector<8x1xf32>
    %157 = tpu.concatenate %153, %156 in 1 : vector<8x1xf32>, vector<8x1xf32> -> vector<8x2xf32>
    %158 = vector.broadcast %150 : vector<8x1xf32> to vector<8x2xf32>
    %159 = arith.mulf %157, %158 : vector<8x2xf32>
    %160 = tpu.concatenate %116, %159 in 1 : vector<8x2xf32>, vector<8x2xf32> -> vector<8x4xf32>
    %cst_50 = arith.constant 1.000000e-01 : f32
    %161 = vector.broadcast %cst_50 : f32 to vector<8x4xf32>
    %162 = arith.mulf %160, %161 : vector<8x4xf32>
    %163 = arith.addf %111, %162 : vector<8x4xf32>
    %164 = arith.index_cast %c2_i32 : i32 to index
    %c0_51 = arith.constant 0 : index
    %c0_52 = arith.constant 0 : index
    %165 = vector.load %arg8[%164, %c0_51, %c0_52] : memref<10x8x4xf32, #tpu.memory_space<vmem>>, vector<1x8x4xf32>
    %166 = vector.shape_cast %165 : vector<1x8x4xf32> to vector<8x4xf32>
    %167 = vector.shape_cast %163 : vector<8x4xf32> to vector<1x8x4xf32>
    tpu.vector_store %arg8[%164, %c0_51, %c0_52], %167 {strides = array<i32>} : memref<10x8x4xf32, #tpu.memory_space<vmem>>, vector<1x8x4xf32>,
    %c3_i32 = arith.constant 3 : i32
    %168 = vector.extract_strided_slice %163 {offsets = [0, 2], sizes = [8, 2], strides = [1, 1]} : vector<8x4xf32> to vector<8x2xf32>
    %cst_53 = arith.constant dense<0.000000e+00> : vector<8x32xf32>
    %169 = tpu.matmul %163, %0, %cst_53 {dimension_numbers = #tpu.dot_dimension_numbers<[1], [0], [0], [1], [0, 0, 1, 1], [], []>} : vector<8x4xf32>, vector<4x32xf32>, vector<8x32xf32> -> vector<8x32xf32>
    %170 = arith.addf %169, %7 : vector<8x32xf32>
    %cst_54 = arith.constant dense<0.000000e+00> : vector<8x32xf32>
    %171 = tpu.matmul %163, %1, %cst_54 {dimension_numbers = #tpu.dot_dimension_numbers<[1], [0], [0], [1], [0, 0, 1, 1], [], []>} : vector<8x4xf32>, vector<4x32xf32>, vector<8x32xf32> -> vector<8x32xf32>
    %172 = math.tanh %170 : vector<8x32xf32>
    %173 = arith.mulf %172, %172 : vector<8x32xf32>
    %cst_55 = arith.constant 1.000000e+00 : f32
    %174 = vector.broadcast %cst_55 : f32 to vector<8x32xf32>
    %175 = arith.subf %174, %173 : vector<8x32xf32>
    %176 = arith.mulf %10, %175 : vector<8x32xf32>
    %cst_56 = arith.constant -2.000000e+00 : f32
    %177 = vector.broadcast %cst_56 : f32 to vector<8x32xf32>
    %178 = arith.mulf %177, %10 : vector<8x32xf32>
    %179 = arith.mulf %178, %172 : vector<8x32xf32>
    %180 = arith.mulf %179, %175 : vector<8x32xf32>
    %cst_57 = arith.constant dense<0.000000e+00> : vector<8x2xf32>
    %181 = tpu.matmul %176, %2, %cst_57 {dimension_numbers = #tpu.dot_dimension_numbers<[1], [0], [0], [1], [0, 0, 1, 1], [], []>} : vector<8x32xf32>, vector<32x2xf32>, vector<8x2xf32> -> vector<8x2xf32>
    %182 = arith.mulf %180, %171 : vector<8x32xf32>
    %cst_58 = arith.constant dense<0.000000e+00> : vector<8x2xf32>
    %183 = tpu.matmul %182, %3, %cst_58 {dimension_numbers = #tpu.dot_dimension_numbers<[1], [0], [0], [1], [0, 0, 1, 1], [], []>} : vector<8x32xf32>, vector<32x2xf32>, vector<8x2xf32> -> vector<8x2xf32>
    %cst_59 = arith.constant dense<0.000000e+00> : vector<8x3xf32>
    %184 = tpu.matmul %180, %4, %cst_59 {dimension_numbers = #tpu.dot_dimension_numbers<[1], [0], [0], [1], [0, 0, 1, 1], [], []>} : vector<8x32xf32>, vector<32x3xf32>, vector<8x3xf32> -> vector<8x3xf32>
    %185 = vector.extract_strided_slice %184 {offsets = [0, 0], sizes = [8, 1], strides = [1, 1]} : vector<8x3xf32> to vector<8x1xf32>
    %cst_60 = arith.constant 1.000000e+00 : f32
    %186 = vector.broadcast %cst_60 : f32 to vector<8x1xf32>
    %187 = arith.addf %185, %186 : vector<8x1xf32>
    %188 = vector.extract_strided_slice %184 {offsets = [0, 1], sizes = [8, 1], strides = [1, 1]} : vector<8x3xf32> to vector<8x1xf32>
    %189 = vector.extract_strided_slice %184 {offsets = [0, 2], sizes = [8, 1], strides = [1, 1]} : vector<8x3xf32> to vector<8x1xf32>
    %cst_61 = arith.constant 1.000000e+00 : f32
    %190 = vector.broadcast %cst_61 : f32 to vector<8x1xf32>
    %191 = arith.addf %189, %190 : vector<8x1xf32>
    %192 = vector.extract_strided_slice %181 {offsets = [0, 0], sizes = [8, 1], strides = [1, 1]} : vector<8x2xf32> to vector<8x1xf32>
    %193 = vector.extract_strided_slice %183 {offsets = [0, 0], sizes = [8, 1], strides = [1, 1]} : vector<8x2xf32> to vector<8x1xf32>
    %194 = arith.subf %192, %193 : vector<8x1xf32>
    %195 = vector.extract_strided_slice %181 {offsets = [0, 1], sizes = [8, 1], strides = [1, 1]} : vector<8x2xf32> to vector<8x1xf32>
    %196 = vector.extract_strided_slice %183 {offsets = [0, 1], sizes = [8, 1], strides = [1, 1]} : vector<8x2xf32> to vector<8x1xf32>
    %197 = arith.subf %195, %196 : vector<8x1xf32>
    %198 = arith.mulf %187, %191 : vector<8x1xf32>
    %199 = arith.mulf %188, %188 : vector<8x1xf32>
    %200 = arith.subf %198, %199 : vector<8x1xf32>
    %cst_62 = arith.constant 1.000000e+00 : f32
    %201 = vector.broadcast %cst_62 : f32 to vector<8x1xf32>
    %202 = arith.divf %201, %200 : vector<8x1xf32>
    %203 = arith.mulf %191, %194 : vector<8x1xf32>
    %204 = arith.mulf %188, %197 : vector<8x1xf32>
    %205 = arith.subf %203, %204 : vector<8x1xf32>
    %206 = arith.mulf %187, %197 : vector<8x1xf32>
    %207 = arith.mulf %188, %194 : vector<8x1xf32>
    %208 = arith.subf %206, %207 : vector<8x1xf32>
    %209 = tpu.concatenate %205, %208 in 1 : vector<8x1xf32>, vector<8x1xf32> -> vector<8x2xf32>
    %210 = vector.broadcast %202 : vector<8x1xf32> to vector<8x2xf32>
    %211 = arith.mulf %209, %210 : vector<8x2xf32>
    %212 = tpu.concatenate %168, %211 in 1 : vector<8x2xf32>, vector<8x2xf32> -> vector<8x4xf32>
    %cst_63 = arith.constant 1.000000e-01 : f32
    %213 = vector.broadcast %cst_63 : f32 to vector<8x4xf32>
    %214 = arith.mulf %212, %213 : vector<8x4xf32>
    %215 = arith.addf %163, %214 : vector<8x4xf32>
    %216 = arith.index_cast %c3_i32 : i32 to index
    %c0_64 = arith.constant 0 : index
    %c0_65 = arith.constant 0 : index
    %217 = vector.load %arg8[%216, %c0_64, %c0_65] : memref<10x8x4xf32, #tpu.memory_space<vmem>>, vector<1x8x4xf32>
    %218 = vector.shape_cast %217 : vector<1x8x4xf32> to vector<8x4xf32>
    %219 = vector.shape_cast %215 : vector<8x4xf32> to vector<1x8x4xf32>
    tpu.vector_store %arg8[%216, %c0_64, %c0_65], %219 {strides = array<i32>} : memref<10x8x4xf32, #tpu.memory_space<vmem>>, vector<1x8x4xf32>,
    %c4_i32 = arith.constant 4 : i32
    %220 = vector.extract_strided_slice %215 {offsets = [0, 2], sizes = [8, 2], strides = [1, 1]} : vector<8x4xf32> to vector<8x2xf32>
    %cst_66 = arith.constant dense<0.000000e+00> : vector<8x32xf32>
    %221 = tpu.matmul %215, %0, %cst_66 {dimension_numbers = #tpu.dot_dimension_numbers<[1], [0], [0], [1], [0, 0, 1, 1], [], []>} : vector<8x4xf32>, vector<4x32xf32>, vector<8x32xf32> -> vector<8x32xf32>
    %222 = arith.addf %221, %7 : vector<8x32xf32>
    %cst_67 = arith.constant dense<0.000000e+00> : vector<8x32xf32>
    %223 = tpu.matmul %215, %1, %cst_67 {dimension_numbers = #tpu.dot_dimension_numbers<[1], [0], [0], [1], [0, 0, 1, 1], [], []>} : vector<8x4xf32>, vector<4x32xf32>, vector<8x32xf32> -> vector<8x32xf32>
    %224 = math.tanh %222 : vector<8x32xf32>
    %225 = arith.mulf %224, %224 : vector<8x32xf32>
    %cst_68 = arith.constant 1.000000e+00 : f32
    %226 = vector.broadcast %cst_68 : f32 to vector<8x32xf32>
    %227 = arith.subf %226, %225 : vector<8x32xf32>
    %228 = arith.mulf %10, %227 : vector<8x32xf32>
    %cst_69 = arith.constant -2.000000e+00 : f32
    %229 = vector.broadcast %cst_69 : f32 to vector<8x32xf32>
    %230 = arith.mulf %229, %10 : vector<8x32xf32>
    %231 = arith.mulf %230, %224 : vector<8x32xf32>
    %232 = arith.mulf %231, %227 : vector<8x32xf32>
    %cst_70 = arith.constant dense<0.000000e+00> : vector<8x2xf32>
    %233 = tpu.matmul %228, %2, %cst_70 {dimension_numbers = #tpu.dot_dimension_numbers<[1], [0], [0], [1], [0, 0, 1, 1], [], []>} : vector<8x32xf32>, vector<32x2xf32>, vector<8x2xf32> -> vector<8x2xf32>
    %234 = arith.mulf %232, %223 : vector<8x32xf32>
    %cst_71 = arith.constant dense<0.000000e+00> : vector<8x2xf32>
    %235 = tpu.matmul %234, %3, %cst_71 {dimension_numbers = #tpu.dot_dimension_numbers<[1], [0], [0], [1], [0, 0, 1, 1], [], []>} : vector<8x32xf32>, vector<32x2xf32>, vector<8x2xf32> -> vector<8x2xf32>
    %cst_72 = arith.constant dense<0.000000e+00> : vector<8x3xf32>
    %236 = tpu.matmul %232, %4, %cst_72 {dimension_numbers = #tpu.dot_dimension_numbers<[1], [0], [0], [1], [0, 0, 1, 1], [], []>} : vector<8x32xf32>, vector<32x3xf32>, vector<8x3xf32> -> vector<8x3xf32>
    %237 = vector.extract_strided_slice %236 {offsets = [0, 0], sizes = [8, 1], strides = [1, 1]} : vector<8x3xf32> to vector<8x1xf32>
    %cst_73 = arith.constant 1.000000e+00 : f32
    %238 = vector.broadcast %cst_73 : f32 to vector<8x1xf32>
    %239 = arith.addf %237, %238 : vector<8x1xf32>
    %240 = vector.extract_strided_slice %236 {offsets = [0, 1], sizes = [8, 1], strides = [1, 1]} : vector<8x3xf32> to vector<8x1xf32>
    %241 = vector.extract_strided_slice %236 {offsets = [0, 2], sizes = [8, 1], strides = [1, 1]} : vector<8x3xf32> to vector<8x1xf32>
    %cst_74 = arith.constant 1.000000e+00 : f32
    %242 = vector.broadcast %cst_74 : f32 to vector<8x1xf32>
    %243 = arith.addf %241, %242 : vector<8x1xf32>
    %244 = vector.extract_strided_slice %233 {offsets = [0, 0], sizes = [8, 1], strides = [1, 1]} : vector<8x2xf32> to vector<8x1xf32>
    %245 = vector.extract_strided_slice %235 {offsets = [0, 0], sizes = [8, 1], strides = [1, 1]} : vector<8x2xf32> to vector<8x1xf32>
    %246 = arith.subf %244, %245 : vector<8x1xf32>
    %247 = vector.extract_strided_slice %233 {offsets = [0, 1], sizes = [8, 1], strides = [1, 1]} : vector<8x2xf32> to vector<8x1xf32>
    %248 = vector.extract_strided_slice %235 {offsets = [0, 1], sizes = [8, 1], strides = [1, 1]} : vector<8x2xf32> to vector<8x1xf32>
    %249 = arith.subf %247, %248 : vector<8x1xf32>
    %250 = arith.mulf %239, %243 : vector<8x1xf32>
    %251 = arith.mulf %240, %240 : vector<8x1xf32>
    %252 = arith.subf %250, %251 : vector<8x1xf32>
    %cst_75 = arith.constant 1.000000e+00 : f32
    %253 = vector.broadcast %cst_75 : f32 to vector<8x1xf32>
    %254 = arith.divf %253, %252 : vector<8x1xf32>
    %255 = arith.mulf %243, %246 : vector<8x1xf32>
    %256 = arith.mulf %240, %249 : vector<8x1xf32>
    %257 = arith.subf %255, %256 : vector<8x1xf32>
    %258 = arith.mulf %239, %249 : vector<8x1xf32>
    %259 = arith.mulf %240, %246 : vector<8x1xf32>
    %260 = arith.subf %258, %259 : vector<8x1xf32>
    %261 = tpu.concatenate %257, %260 in 1 : vector<8x1xf32>, vector<8x1xf32> -> vector<8x2xf32>
    %262 = vector.broadcast %254 : vector<8x1xf32> to vector<8x2xf32>
    %263 = arith.mulf %261, %262 : vector<8x2xf32>
    %264 = tpu.concatenate %220, %263 in 1 : vector<8x2xf32>, vector<8x2xf32> -> vector<8x4xf32>
    %cst_76 = arith.constant 1.000000e-01 : f32
    %265 = vector.broadcast %cst_76 : f32 to vector<8x4xf32>
    %266 = arith.mulf %264, %265 : vector<8x4xf32>
    %267 = arith.addf %215, %266 : vector<8x4xf32>
    %268 = arith.index_cast %c4_i32 : i32 to index
    %c0_77 = arith.constant 0 : index
    %c0_78 = arith.constant 0 : index
    %269 = vector.load %arg8[%268, %c0_77, %c0_78] : memref<10x8x4xf32, #tpu.memory_space<vmem>>, vector<1x8x4xf32>
    %270 = vector.shape_cast %269 : vector<1x8x4xf32> to vector<8x4xf32>
    %271 = vector.shape_cast %267 : vector<8x4xf32> to vector<1x8x4xf32>
    tpu.vector_store %arg8[%268, %c0_77, %c0_78], %271 {strides = array<i32>} : memref<10x8x4xf32, #tpu.memory_space<vmem>>, vector<1x8x4xf32>,
    %c5_i32 = arith.constant 5 : i32
    %272 = vector.extract_strided_slice %267 {offsets = [0, 2], sizes = [8, 2], strides = [1, 1]} : vector<8x4xf32> to vector<8x2xf32>
    %cst_79 = arith.constant dense<0.000000e+00> : vector<8x32xf32>
    %273 = tpu.matmul %267, %0, %cst_79 {dimension_numbers = #tpu.dot_dimension_numbers<[1], [0], [0], [1], [0, 0, 1, 1], [], []>} : vector<8x4xf32>, vector<4x32xf32>, vector<8x32xf32> -> vector<8x32xf32>
    %274 = arith.addf %273, %7 : vector<8x32xf32>
    %cst_80 = arith.constant dense<0.000000e+00> : vector<8x32xf32>
    %275 = tpu.matmul %267, %1, %cst_80 {dimension_numbers = #tpu.dot_dimension_numbers<[1], [0], [0], [1], [0, 0, 1, 1], [], []>} : vector<8x4xf32>, vector<4x32xf32>, vector<8x32xf32> -> vector<8x32xf32>
    %276 = math.tanh %274 : vector<8x32xf32>
    %277 = arith.mulf %276, %276 : vector<8x32xf32>
    %cst_81 = arith.constant 1.000000e+00 : f32
    %278 = vector.broadcast %cst_81 : f32 to vector<8x32xf32>
    %279 = arith.subf %278, %277 : vector<8x32xf32>
    %280 = arith.mulf %10, %279 : vector<8x32xf32>
    %cst_82 = arith.constant -2.000000e+00 : f32
    %281 = vector.broadcast %cst_82 : f32 to vector<8x32xf32>
    %282 = arith.mulf %281, %10 : vector<8x32xf32>
    %283 = arith.mulf %282, %276 : vector<8x32xf32>
    %284 = arith.mulf %283, %279 : vector<8x32xf32>
    %cst_83 = arith.constant dense<0.000000e+00> : vector<8x2xf32>
    %285 = tpu.matmul %280, %2, %cst_83 {dimension_numbers = #tpu.dot_dimension_numbers<[1], [0], [0], [1], [0, 0, 1, 1], [], []>} : vector<8x32xf32>, vector<32x2xf32>, vector<8x2xf32> -> vector<8x2xf32>
    %286 = arith.mulf %284, %275 : vector<8x32xf32>
    %cst_84 = arith.constant dense<0.000000e+00> : vector<8x2xf32>
    %287 = tpu.matmul %286, %3, %cst_84 {dimension_numbers = #tpu.dot_dimension_numbers<[1], [0], [0], [1], [0, 0, 1, 1], [], []>} : vector<8x32xf32>, vector<32x2xf32>, vector<8x2xf32> -> vector<8x2xf32>
    %cst_85 = arith.constant dense<0.000000e+00> : vector<8x3xf32>
    %288 = tpu.matmul %284, %4, %cst_85 {dimension_numbers = #tpu.dot_dimension_numbers<[1], [0], [0], [1], [0, 0, 1, 1], [], []>} : vector<8x32xf32>, vector<32x3xf32>, vector<8x3xf32> -> vector<8x3xf32>
    %289 = vector.extract_strided_slice %288 {offsets = [0, 0], sizes = [8, 1], strides = [1, 1]} : vector<8x3xf32> to vector<8x1xf32>
    %cst_86 = arith.constant 1.000000e+00 : f32
    %290 = vector.broadcast %cst_86 : f32 to vector<8x1xf32>
    %291 = arith.addf %289, %290 : vector<8x1xf32>
    %292 = vector.extract_strided_slice %288 {offsets = [0, 1], sizes = [8, 1], strides = [1, 1]} : vector<8x3xf32> to vector<8x1xf32>
    %293 = vector.extract_strided_slice %288 {offsets = [0, 2], sizes = [8, 1], strides = [1, 1]} : vector<8x3xf32> to vector<8x1xf32>
    %cst_87 = arith.constant 1.000000e+00 : f32
    %294 = vector.broadcast %cst_87 : f32 to vector<8x1xf32>
    %295 = arith.addf %293, %294 : vector<8x1xf32>
    %296 = vector.extract_strided_slice %285 {offsets = [0, 0], sizes = [8, 1], strides = [1, 1]} : vector<8x2xf32> to vector<8x1xf32>
    %297 = vector.extract_strided_slice %287 {offsets = [0, 0], sizes = [8, 1], strides = [1, 1]} : vector<8x2xf32> to vector<8x1xf32>
    %298 = arith.subf %296, %297 : vector<8x1xf32>
    %299 = vector.extract_strided_slice %285 {offsets = [0, 1], sizes = [8, 1], strides = [1, 1]} : vector<8x2xf32> to vector<8x1xf32>
    %300 = vector.extract_strided_slice %287 {offsets = [0, 1], sizes = [8, 1], strides = [1, 1]} : vector<8x2xf32> to vector<8x1xf32>
    %301 = arith.subf %299, %300 : vector<8x1xf32>
    %302 = arith.mulf %291, %295 : vector<8x1xf32>
    %303 = arith.mulf %292, %292 : vector<8x1xf32>
    %304 = arith.subf %302, %303 : vector<8x1xf32>
    %cst_88 = arith.constant 1.000000e+00 : f32
    %305 = vector.broadcast %cst_88 : f32 to vector<8x1xf32>
    %306 = arith.divf %305, %304 : vector<8x1xf32>
    %307 = arith.mulf %295, %298 : vector<8x1xf32>
    %308 = arith.mulf %292, %301 : vector<8x1xf32>
    %309 = arith.subf %307, %308 : vector<8x1xf32>
    %310 = arith.mulf %291, %301 : vector<8x1xf32>
    %311 = arith.mulf %292, %298 : vector<8x1xf32>
    %312 = arith.subf %310, %311 : vector<8x1xf32>
    %313 = tpu.concatenate %309, %312 in 1 : vector<8x1xf32>, vector<8x1xf32> -> vector<8x2xf32>
    %314 = vector.broadcast %306 : vector<8x1xf32> to vector<8x2xf32>
    %315 = arith.mulf %313, %314 : vector<8x2xf32>
    %316 = tpu.concatenate %272, %315 in 1 : vector<8x2xf32>, vector<8x2xf32> -> vector<8x4xf32>
    %cst_89 = arith.constant 1.000000e-01 : f32
    %317 = vector.broadcast %cst_89 : f32 to vector<8x4xf32>
    %318 = arith.mulf %316, %317 : vector<8x4xf32>
    %319 = arith.addf %267, %318 : vector<8x4xf32>
    %320 = arith.index_cast %c5_i32 : i32 to index
    %c0_90 = arith.constant 0 : index
    %c0_91 = arith.constant 0 : index
    %321 = vector.load %arg8[%320, %c0_90, %c0_91] : memref<10x8x4xf32, #tpu.memory_space<vmem>>, vector<1x8x4xf32>
    %322 = vector.shape_cast %321 : vector<1x8x4xf32> to vector<8x4xf32>
    %323 = vector.shape_cast %319 : vector<8x4xf32> to vector<1x8x4xf32>
    tpu.vector_store %arg8[%320, %c0_90, %c0_91], %323 {strides = array<i32>} : memref<10x8x4xf32, #tpu.memory_space<vmem>>, vector<1x8x4xf32>,
    %c6_i32 = arith.constant 6 : i32
    %324 = vector.extract_strided_slice %319 {offsets = [0, 2], sizes = [8, 2], strides = [1, 1]} : vector<8x4xf32> to vector<8x2xf32>
    %cst_92 = arith.constant dense<0.000000e+00> : vector<8x32xf32>
    %325 = tpu.matmul %319, %0, %cst_92 {dimension_numbers = #tpu.dot_dimension_numbers<[1], [0], [0], [1], [0, 0, 1, 1], [], []>} : vector<8x4xf32>, vector<4x32xf32>, vector<8x32xf32> -> vector<8x32xf32>
    %326 = arith.addf %325, %7 : vector<8x32xf32>
    %cst_93 = arith.constant dense<0.000000e+00> : vector<8x32xf32>
    %327 = tpu.matmul %319, %1, %cst_93 {dimension_numbers = #tpu.dot_dimension_numbers<[1], [0], [0], [1], [0, 0, 1, 1], [], []>} : vector<8x4xf32>, vector<4x32xf32>, vector<8x32xf32> -> vector<8x32xf32>
    %328 = math.tanh %326 : vector<8x32xf32>
    %329 = arith.mulf %328, %328 : vector<8x32xf32>
    %cst_94 = arith.constant 1.000000e+00 : f32
    %330 = vector.broadcast %cst_94 : f32 to vector<8x32xf32>
    %331 = arith.subf %330, %329 : vector<8x32xf32>
    %332 = arith.mulf %10, %331 : vector<8x32xf32>
    %cst_95 = arith.constant -2.000000e+00 : f32
    %333 = vector.broadcast %cst_95 : f32 to vector<8x32xf32>
    %334 = arith.mulf %333, %10 : vector<8x32xf32>
    %335 = arith.mulf %334, %328 : vector<8x32xf32>
    %336 = arith.mulf %335, %331 : vector<8x32xf32>
    %cst_96 = arith.constant dense<0.000000e+00> : vector<8x2xf32>
    %337 = tpu.matmul %332, %2, %cst_96 {dimension_numbers = #tpu.dot_dimension_numbers<[1], [0], [0], [1], [0, 0, 1, 1], [], []>} : vector<8x32xf32>, vector<32x2xf32>, vector<8x2xf32> -> vector<8x2xf32>
    %338 = arith.mulf %336, %327 : vector<8x32xf32>
    %cst_97 = arith.constant dense<0.000000e+00> : vector<8x2xf32>
    %339 = tpu.matmul %338, %3, %cst_97 {dimension_numbers = #tpu.dot_dimension_numbers<[1], [0], [0], [1], [0, 0, 1, 1], [], []>} : vector<8x32xf32>, vector<32x2xf32>, vector<8x2xf32> -> vector<8x2xf32>
    %cst_98 = arith.constant dense<0.000000e+00> : vector<8x3xf32>
    %340 = tpu.matmul %336, %4, %cst_98 {dimension_numbers = #tpu.dot_dimension_numbers<[1], [0], [0], [1], [0, 0, 1, 1], [], []>} : vector<8x32xf32>, vector<32x3xf32>, vector<8x3xf32> -> vector<8x3xf32>
    %341 = vector.extract_strided_slice %340 {offsets = [0, 0], sizes = [8, 1], strides = [1, 1]} : vector<8x3xf32> to vector<8x1xf32>
    %cst_99 = arith.constant 1.000000e+00 : f32
    %342 = vector.broadcast %cst_99 : f32 to vector<8x1xf32>
    %343 = arith.addf %341, %342 : vector<8x1xf32>
    %344 = vector.extract_strided_slice %340 {offsets = [0, 1], sizes = [8, 1], strides = [1, 1]} : vector<8x3xf32> to vector<8x1xf32>
    %345 = vector.extract_strided_slice %340 {offsets = [0, 2], sizes = [8, 1], strides = [1, 1]} : vector<8x3xf32> to vector<8x1xf32>
    %cst_100 = arith.constant 1.000000e+00 : f32
    %346 = vector.broadcast %cst_100 : f32 to vector<8x1xf32>
    %347 = arith.addf %345, %346 : vector<8x1xf32>
    %348 = vector.extract_strided_slice %337 {offsets = [0, 0], sizes = [8, 1], strides = [1, 1]} : vector<8x2xf32> to vector<8x1xf32>
    %349 = vector.extract_strided_slice %339 {offsets = [0, 0], sizes = [8, 1], strides = [1, 1]} : vector<8x2xf32> to vector<8x1xf32>
    %350 = arith.subf %348, %349 : vector<8x1xf32>
    %351 = vector.extract_strided_slice %337 {offsets = [0, 1], sizes = [8, 1], strides = [1, 1]} : vector<8x2xf32> to vector<8x1xf32>
    %352 = vector.extract_strided_slice %339 {offsets = [0, 1], sizes = [8, 1], strides = [1, 1]} : vector<8x2xf32> to vector<8x1xf32>
    %353 = arith.subf %351, %352 : vector<8x1xf32>
    %354 = arith.mulf %343, %347 : vector<8x1xf32>
    %355 = arith.mulf %344, %344 : vector<8x1xf32>
    %356 = arith.subf %354, %355 : vector<8x1xf32>
    %cst_101 = arith.constant 1.000000e+00 : f32
    %357 = vector.broadcast %cst_101 : f32 to vector<8x1xf32>
    %358 = arith.divf %357, %356 : vector<8x1xf32>
    %359 = arith.mulf %347, %350 : vector<8x1xf32>
    %360 = arith.mulf %344, %353 : vector<8x1xf32>
    %361 = arith.subf %359, %360 : vector<8x1xf32>
    %362 = arith.mulf %343, %353 : vector<8x1xf32>
    %363 = arith.mulf %344, %350 : vector<8x1xf32>
    %364 = arith.subf %362, %363 : vector<8x1xf32>
    %365 = tpu.concatenate %361, %364 in 1 : vector<8x1xf32>, vector<8x1xf32> -> vector<8x2xf32>
    %366 = vector.broadcast %358 : vector<8x1xf32> to vector<8x2xf32>
    %367 = arith.mulf %365, %366 : vector<8x2xf32>
    %368 = tpu.concatenate %324, %367 in 1 : vector<8x2xf32>, vector<8x2xf32> -> vector<8x4xf32>
    %cst_102 = arith.constant 1.000000e-01 : f32
    %369 = vector.broadcast %cst_102 : f32 to vector<8x4xf32>
    %370 = arith.mulf %368, %369 : vector<8x4xf32>
    %371 = arith.addf %319, %370 : vector<8x4xf32>
    %372 = arith.index_cast %c6_i32 : i32 to index
    %c0_103 = arith.constant 0 : index
    %c0_104 = arith.constant 0 : index
    %373 = vector.load %arg8[%372, %c0_103, %c0_104] : memref<10x8x4xf32, #tpu.memory_space<vmem>>, vector<1x8x4xf32>
    %374 = vector.shape_cast %373 : vector<1x8x4xf32> to vector<8x4xf32>
    %375 = vector.shape_cast %371 : vector<8x4xf32> to vector<1x8x4xf32>
    tpu.vector_store %arg8[%372, %c0_103, %c0_104], %375 {strides = array<i32>} : memref<10x8x4xf32, #tpu.memory_space<vmem>>, vector<1x8x4xf32>,
    %c7_i32 = arith.constant 7 : i32
    %376 = vector.extract_strided_slice %371 {offsets = [0, 2], sizes = [8, 2], strides = [1, 1]} : vector<8x4xf32> to vector<8x2xf32>
    %cst_105 = arith.constant dense<0.000000e+00> : vector<8x32xf32>
    %377 = tpu.matmul %371, %0, %cst_105 {dimension_numbers = #tpu.dot_dimension_numbers<[1], [0], [0], [1], [0, 0, 1, 1], [], []>} : vector<8x4xf32>, vector<4x32xf32>, vector<8x32xf32> -> vector<8x32xf32>
    %378 = arith.addf %377, %7 : vector<8x32xf32>
    %cst_106 = arith.constant dense<0.000000e+00> : vector<8x32xf32>
    %379 = tpu.matmul %371, %1, %cst_106 {dimension_numbers = #tpu.dot_dimension_numbers<[1], [0], [0], [1], [0, 0, 1, 1], [], []>} : vector<8x4xf32>, vector<4x32xf32>, vector<8x32xf32> -> vector<8x32xf32>
    %380 = math.tanh %378 : vector<8x32xf32>
    %381 = arith.mulf %380, %380 : vector<8x32xf32>
    %cst_107 = arith.constant 1.000000e+00 : f32
    %382 = vector.broadcast %cst_107 : f32 to vector<8x32xf32>
    %383 = arith.subf %382, %381 : vector<8x32xf32>
    %384 = arith.mulf %10, %383 : vector<8x32xf32>
    %cst_108 = arith.constant -2.000000e+00 : f32
    %385 = vector.broadcast %cst_108 : f32 to vector<8x32xf32>
    %386 = arith.mulf %385, %10 : vector<8x32xf32>
    %387 = arith.mulf %386, %380 : vector<8x32xf32>
    %388 = arith.mulf %387, %383 : vector<8x32xf32>
    %cst_109 = arith.constant dense<0.000000e+00> : vector<8x2xf32>
    %389 = tpu.matmul %384, %2, %cst_109 {dimension_numbers = #tpu.dot_dimension_numbers<[1], [0], [0], [1], [0, 0, 1, 1], [], []>} : vector<8x32xf32>, vector<32x2xf32>, vector<8x2xf32> -> vector<8x2xf32>
    %390 = arith.mulf %388, %379 : vector<8x32xf32>
    %cst_110 = arith.constant dense<0.000000e+00> : vector<8x2xf32>
    %391 = tpu.matmul %390, %3, %cst_110 {dimension_numbers = #tpu.dot_dimension_numbers<[1], [0], [0], [1], [0, 0, 1, 1], [], []>} : vector<8x32xf32>, vector<32x2xf32>, vector<8x2xf32> -> vector<8x2xf32>
    %cst_111 = arith.constant dense<0.000000e+00> : vector<8x3xf32>
    %392 = tpu.matmul %388, %4, %cst_111 {dimension_numbers = #tpu.dot_dimension_numbers<[1], [0], [0], [1], [0, 0, 1, 1], [], []>} : vector<8x32xf32>, vector<32x3xf32>, vector<8x3xf32> -> vector<8x3xf32>
    %393 = vector.extract_strided_slice %392 {offsets = [0, 0], sizes = [8, 1], strides = [1, 1]} : vector<8x3xf32> to vector<8x1xf32>
    %cst_112 = arith.constant 1.000000e+00 : f32
    %394 = vector.broadcast %cst_112 : f32 to vector<8x1xf32>
    %395 = arith.addf %393, %394 : vector<8x1xf32>
    %396 = vector.extract_strided_slice %392 {offsets = [0, 1], sizes = [8, 1], strides = [1, 1]} : vector<8x3xf32> to vector<8x1xf32>
    %397 = vector.extract_strided_slice %392 {offsets = [0, 2], sizes = [8, 1], strides = [1, 1]} : vector<8x3xf32> to vector<8x1xf32>
    %cst_113 = arith.constant 1.000000e+00 : f32
    %398 = vector.broadcast %cst_113 : f32 to vector<8x1xf32>
    %399 = arith.addf %397, %398 : vector<8x1xf32>
    %400 = vector.extract_strided_slice %389 {offsets = [0, 0], sizes = [8, 1], strides = [1, 1]} : vector<8x2xf32> to vector<8x1xf32>
    %401 = vector.extract_strided_slice %391 {offsets = [0, 0], sizes = [8, 1], strides = [1, 1]} : vector<8x2xf32> to vector<8x1xf32>
    %402 = arith.subf %400, %401 : vector<8x1xf32>
    %403 = vector.extract_strided_slice %389 {offsets = [0, 1], sizes = [8, 1], strides = [1, 1]} : vector<8x2xf32> to vector<8x1xf32>
    %404 = vector.extract_strided_slice %391 {offsets = [0, 1], sizes = [8, 1], strides = [1, 1]} : vector<8x2xf32> to vector<8x1xf32>
    %405 = arith.subf %403, %404 : vector<8x1xf32>
    %406 = arith.mulf %395, %399 : vector<8x1xf32>
    %407 = arith.mulf %396, %396 : vector<8x1xf32>
    %408 = arith.subf %406, %407 : vector<8x1xf32>
    %cst_114 = arith.constant 1.000000e+00 : f32
    %409 = vector.broadcast %cst_114 : f32 to vector<8x1xf32>
    %410 = arith.divf %409, %408 : vector<8x1xf32>
    %411 = arith.mulf %399, %402 : vector<8x1xf32>
    %412 = arith.mulf %396, %405 : vector<8x1xf32>
    %413 = arith.subf %411, %412 : vector<8x1xf32>
    %414 = arith.mulf %395, %405 : vector<8x1xf32>
    %415 = arith.mulf %396, %402 : vector<8x1xf32>
    %416 = arith.subf %414, %415 : vector<8x1xf32>
    %417 = tpu.concatenate %413, %416 in 1 : vector<8x1xf32>, vector<8x1xf32> -> vector<8x2xf32>
    %418 = vector.broadcast %410 : vector<8x1xf32> to vector<8x2xf32>
    %419 = arith.mulf %417, %418 : vector<8x2xf32>
    %420 = tpu.concatenate %376, %419 in 1 : vector<8x2xf32>, vector<8x2xf32> -> vector<8x4xf32>
    %cst_115 = arith.constant 1.000000e-01 : f32
    %421 = vector.broadcast %cst_115 : f32 to vector<8x4xf32>
    %422 = arith.mulf %420, %421 : vector<8x4xf32>
    %423 = arith.addf %371, %422 : vector<8x4xf32>
    %424 = arith.index_cast %c7_i32 : i32 to index
    %c0_116 = arith.constant 0 : index
    %c0_117 = arith.constant 0 : index
    %425 = vector.load %arg8[%424, %c0_116, %c0_117] : memref<10x8x4xf32, #tpu.memory_space<vmem>>, vector<1x8x4xf32>
    %426 = vector.shape_cast %425 : vector<1x8x4xf32> to vector<8x4xf32>
    %427 = vector.shape_cast %423 : vector<8x4xf32> to vector<1x8x4xf32>
    tpu.vector_store %arg8[%424, %c0_116, %c0_117], %427 {strides = array<i32>} : memref<10x8x4xf32, #tpu.memory_space<vmem>>, vector<1x8x4xf32>,
    %c8_i32 = arith.constant 8 : i32
    %428 = vector.extract_strided_slice %423 {offsets = [0, 2], sizes = [8, 2], strides = [1, 1]} : vector<8x4xf32> to vector<8x2xf32>
    %cst_118 = arith.constant dense<0.000000e+00> : vector<8x32xf32>
    %429 = tpu.matmul %423, %0, %cst_118 {dimension_numbers = #tpu.dot_dimension_numbers<[1], [0], [0], [1], [0, 0, 1, 1], [], []>} : vector<8x4xf32>, vector<4x32xf32>, vector<8x32xf32> -> vector<8x32xf32>
    %430 = arith.addf %429, %7 : vector<8x32xf32>
    %cst_119 = arith.constant dense<0.000000e+00> : vector<8x32xf32>
    %431 = tpu.matmul %423, %1, %cst_119 {dimension_numbers = #tpu.dot_dimension_numbers<[1], [0], [0], [1], [0, 0, 1, 1], [], []>} : vector<8x4xf32>, vector<4x32xf32>, vector<8x32xf32> -> vector<8x32xf32>
    %432 = math.tanh %430 : vector<8x32xf32>
    %433 = arith.mulf %432, %432 : vector<8x32xf32>
    %cst_120 = arith.constant 1.000000e+00 : f32
    %434 = vector.broadcast %cst_120 : f32 to vector<8x32xf32>
    %435 = arith.subf %434, %433 : vector<8x32xf32>
    %436 = arith.mulf %10, %435 : vector<8x32xf32>
    %cst_121 = arith.constant -2.000000e+00 : f32
    %437 = vector.broadcast %cst_121 : f32 to vector<8x32xf32>
    %438 = arith.mulf %437, %10 : vector<8x32xf32>
    %439 = arith.mulf %438, %432 : vector<8x32xf32>
    %440 = arith.mulf %439, %435 : vector<8x32xf32>
    %cst_122 = arith.constant dense<0.000000e+00> : vector<8x2xf32>
    %441 = tpu.matmul %436, %2, %cst_122 {dimension_numbers = #tpu.dot_dimension_numbers<[1], [0], [0], [1], [0, 0, 1, 1], [], []>} : vector<8x32xf32>, vector<32x2xf32>, vector<8x2xf32> -> vector<8x2xf32>
    %442 = arith.mulf %440, %431 : vector<8x32xf32>
    %cst_123 = arith.constant dense<0.000000e+00> : vector<8x2xf32>
    %443 = tpu.matmul %442, %3, %cst_123 {dimension_numbers = #tpu.dot_dimension_numbers<[1], [0], [0], [1], [0, 0, 1, 1], [], []>} : vector<8x32xf32>, vector<32x2xf32>, vector<8x2xf32> -> vector<8x2xf32>
    %cst_124 = arith.constant dense<0.000000e+00> : vector<8x3xf32>
    %444 = tpu.matmul %440, %4, %cst_124 {dimension_numbers = #tpu.dot_dimension_numbers<[1], [0], [0], [1], [0, 0, 1, 1], [], []>} : vector<8x32xf32>, vector<32x3xf32>, vector<8x3xf32> -> vector<8x3xf32>
    %445 = vector.extract_strided_slice %444 {offsets = [0, 0], sizes = [8, 1], strides = [1, 1]} : vector<8x3xf32> to vector<8x1xf32>
    %cst_125 = arith.constant 1.000000e+00 : f32
    %446 = vector.broadcast %cst_125 : f32 to vector<8x1xf32>
    %447 = arith.addf %445, %446 : vector<8x1xf32>
    %448 = vector.extract_strided_slice %444 {offsets = [0, 1], sizes = [8, 1], strides = [1, 1]} : vector<8x3xf32> to vector<8x1xf32>
    %449 = vector.extract_strided_slice %444 {offsets = [0, 2], sizes = [8, 1], strides = [1, 1]} : vector<8x3xf32> to vector<8x1xf32>
    %cst_126 = arith.constant 1.000000e+00 : f32
    %450 = vector.broadcast %cst_126 : f32 to vector<8x1xf32>
    %451 = arith.addf %449, %450 : vector<8x1xf32>
    %452 = vector.extract_strided_slice %441 {offsets = [0, 0], sizes = [8, 1], strides = [1, 1]} : vector<8x2xf32> to vector<8x1xf32>
    %453 = vector.extract_strided_slice %443 {offsets = [0, 0], sizes = [8, 1], strides = [1, 1]} : vector<8x2xf32> to vector<8x1xf32>
    %454 = arith.subf %452, %453 : vector<8x1xf32>
    %455 = vector.extract_strided_slice %441 {offsets = [0, 1], sizes = [8, 1], strides = [1, 1]} : vector<8x2xf32> to vector<8x1xf32>
    %456 = vector.extract_strided_slice %443 {offsets = [0, 1], sizes = [8, 1], strides = [1, 1]} : vector<8x2xf32> to vector<8x1xf32>
    %457 = arith.subf %455, %456 : vector<8x1xf32>
    %458 = arith.mulf %447, %451 : vector<8x1xf32>
    %459 = arith.mulf %448, %448 : vector<8x1xf32>
    %460 = arith.subf %458, %459 : vector<8x1xf32>
    %cst_127 = arith.constant 1.000000e+00 : f32
    %461 = vector.broadcast %cst_127 : f32 to vector<8x1xf32>
    %462 = arith.divf %461, %460 : vector<8x1xf32>
    %463 = arith.mulf %451, %454 : vector<8x1xf32>
    %464 = arith.mulf %448, %457 : vector<8x1xf32>
    %465 = arith.subf %463, %464 : vector<8x1xf32>
    %466 = arith.mulf %447, %457 : vector<8x1xf32>
    %467 = arith.mulf %448, %454 : vector<8x1xf32>
    %468 = arith.subf %466, %467 : vector<8x1xf32>
    %469 = tpu.concatenate %465, %468 in 1 : vector<8x1xf32>, vector<8x1xf32> -> vector<8x2xf32>
    %470 = vector.broadcast %462 : vector<8x1xf32> to vector<8x2xf32>
    %471 = arith.mulf %469, %470 : vector<8x2xf32>
    %472 = tpu.concatenate %428, %471 in 1 : vector<8x2xf32>, vector<8x2xf32> -> vector<8x4xf32>
    %cst_128 = arith.constant 1.000000e-01 : f32
    %473 = vector.broadcast %cst_128 : f32 to vector<8x4xf32>
    %474 = arith.mulf %472, %473 : vector<8x4xf32>
    %475 = arith.addf %423, %474 : vector<8x4xf32>
    %476 = arith.index_cast %c8_i32 : i32 to index
    %c0_129 = arith.constant 0 : index
    %c0_130 = arith.constant 0 : index
    %477 = vector.load %arg8[%476, %c0_129, %c0_130] : memref<10x8x4xf32, #tpu.memory_space<vmem>>, vector<1x8x4xf32>
    %478 = vector.shape_cast %477 : vector<1x8x4xf32> to vector<8x4xf32>
    %479 = vector.shape_cast %475 : vector<8x4xf32> to vector<1x8x4xf32>
    tpu.vector_store %arg8[%476, %c0_129, %c0_130], %479 {strides = array<i32>} : memref<10x8x4xf32, #tpu.memory_space<vmem>>, vector<1x8x4xf32>,
    %c9_i32 = arith.constant 9 : i32
    %480 = vector.extract_strided_slice %475 {offsets = [0, 2], sizes = [8, 2], strides = [1, 1]} : vector<8x4xf32> to vector<8x2xf32>
    %cst_131 = arith.constant dense<0.000000e+00> : vector<8x32xf32>
    %481 = tpu.matmul %475, %0, %cst_131 {dimension_numbers = #tpu.dot_dimension_numbers<[1], [0], [0], [1], [0, 0, 1, 1], [], []>} : vector<8x4xf32>, vector<4x32xf32>, vector<8x32xf32> -> vector<8x32xf32>
    %482 = arith.addf %481, %7 : vector<8x32xf32>
    %cst_132 = arith.constant dense<0.000000e+00> : vector<8x32xf32>
    %483 = tpu.matmul %475, %1, %cst_132 {dimension_numbers = #tpu.dot_dimension_numbers<[1], [0], [0], [1], [0, 0, 1, 1], [], []>} : vector<8x4xf32>, vector<4x32xf32>, vector<8x32xf32> -> vector<8x32xf32>
    %484 = math.tanh %482 : vector<8x32xf32>
    %485 = arith.mulf %484, %484 : vector<8x32xf32>
    %cst_133 = arith.constant 1.000000e+00 : f32
    %486 = vector.broadcast %cst_133 : f32 to vector<8x32xf32>
    %487 = arith.subf %486, %485 : vector<8x32xf32>
    %488 = arith.mulf %10, %487 : vector<8x32xf32>
    %cst_134 = arith.constant -2.000000e+00 : f32
    %489 = vector.broadcast %cst_134 : f32 to vector<8x32xf32>
    %490 = arith.mulf %489, %10 : vector<8x32xf32>
    %491 = arith.mulf %490, %484 : vector<8x32xf32>
    %492 = arith.mulf %491, %487 : vector<8x32xf32>
    %cst_135 = arith.constant dense<0.000000e+00> : vector<8x2xf32>
    %493 = tpu.matmul %488, %2, %cst_135 {dimension_numbers = #tpu.dot_dimension_numbers<[1], [0], [0], [1], [0, 0, 1, 1], [], []>} : vector<8x32xf32>, vector<32x2xf32>, vector<8x2xf32> -> vector<8x2xf32>
    %494 = arith.mulf %492, %483 : vector<8x32xf32>
    %cst_136 = arith.constant dense<0.000000e+00> : vector<8x2xf32>
    %495 = tpu.matmul %494, %3, %cst_136 {dimension_numbers = #tpu.dot_dimension_numbers<[1], [0], [0], [1], [0, 0, 1, 1], [], []>} : vector<8x32xf32>, vector<32x2xf32>, vector<8x2xf32> -> vector<8x2xf32>
    %cst_137 = arith.constant dense<0.000000e+00> : vector<8x3xf32>
    %496 = tpu.matmul %492, %4, %cst_137 {dimension_numbers = #tpu.dot_dimension_numbers<[1], [0], [0], [1], [0, 0, 1, 1], [], []>} : vector<8x32xf32>, vector<32x3xf32>, vector<8x3xf32> -> vector<8x3xf32>
    %497 = vector.extract_strided_slice %496 {offsets = [0, 0], sizes = [8, 1], strides = [1, 1]} : vector<8x3xf32> to vector<8x1xf32>
    %cst_138 = arith.constant 1.000000e+00 : f32
    %498 = vector.broadcast %cst_138 : f32 to vector<8x1xf32>
    %499 = arith.addf %497, %498 : vector<8x1xf32>
    %500 = vector.extract_strided_slice %496 {offsets = [0, 1], sizes = [8, 1], strides = [1, 1]} : vector<8x3xf32> to vector<8x1xf32>
    %501 = vector.extract_strided_slice %496 {offsets = [0, 2], sizes = [8, 1], strides = [1, 1]} : vector<8x3xf32> to vector<8x1xf32>
    %cst_139 = arith.constant 1.000000e+00 : f32
    %502 = vector.broadcast %cst_139 : f32 to vector<8x1xf32>
    %503 = arith.addf %501, %502 : vector<8x1xf32>
    %504 = vector.extract_strided_slice %493 {offsets = [0, 0], sizes = [8, 1], strides = [1, 1]} : vector<8x2xf32> to vector<8x1xf32>
    %505 = vector.extract_strided_slice %495 {offsets = [0, 0], sizes = [8, 1], strides = [1, 1]} : vector<8x2xf32> to vector<8x1xf32>
    %506 = arith.subf %504, %505 : vector<8x1xf32>
    %507 = vector.extract_strided_slice %493 {offsets = [0, 1], sizes = [8, 1], strides = [1, 1]} : vector<8x2xf32> to vector<8x1xf32>
    %508 = vector.extract_strided_slice %495 {offsets = [0, 1], sizes = [8, 1], strides = [1, 1]} : vector<8x2xf32> to vector<8x1xf32>
    %509 = arith.subf %507, %508 : vector<8x1xf32>
    %510 = arith.mulf %499, %503 : vector<8x1xf32>
    %511 = arith.mulf %500, %500 : vector<8x1xf32>
    %512 = arith.subf %510, %511 : vector<8x1xf32>
    %cst_140 = arith.constant 1.000000e+00 : f32
    %513 = vector.broadcast %cst_140 : f32 to vector<8x1xf32>
    %514 = arith.divf %513, %512 : vector<8x1xf32>
    %515 = arith.mulf %503, %506 : vector<8x1xf32>
    %516 = arith.mulf %500, %509 : vector<8x1xf32>
    %517 = arith.subf %515, %516 : vector<8x1xf32>
    %518 = arith.mulf %499, %509 : vector<8x1xf32>
    %519 = arith.mulf %500, %506 : vector<8x1xf32>
    %520 = arith.subf %518, %519 : vector<8x1xf32>
    %521 = tpu.concatenate %517, %520 in 1 : vector<8x1xf32>, vector<8x1xf32> -> vector<8x2xf32>
    %522 = vector.broadcast %514 : vector<8x1xf32> to vector<8x2xf32>
    %523 = arith.mulf %521, %522 : vector<8x2xf32>
    %524 = tpu.concatenate %480, %523 in 1 : vector<8x2xf32>, vector<8x2xf32> -> vector<8x4xf32>
    %cst_141 = arith.constant 1.000000e-01 : f32
    %525 = vector.broadcast %cst_141 : f32 to vector<8x4xf32>
    %526 = arith.mulf %524, %525 : vector<8x4xf32>
    %527 = arith.addf %475, %526 : vector<8x4xf32>
    %528 = arith.index_cast %c9_i32 : i32 to index
    %c0_142 = arith.constant 0 : index
    %c0_143 = arith.constant 0 : index
    %529 = vector.load %arg8[%528, %c0_142, %c0_143] : memref<10x8x4xf32, #tpu.memory_space<vmem>>, vector<1x8x4xf32>
    %530 = vector.shape_cast %529 : vector<1x8x4xf32> to vector<8x4xf32>
    %531 = vector.shape_cast %527 : vector<8x4xf32> to vector<1x8x4xf32>
    tpu.vector_store %arg8[%528, %c0_142, %c0_143], %531 {strides = array<i32>} : memref<10x8x4xf32, #tpu.memory_space<vmem>>, vector<1x8x4xf32>,
    %c10_i32 = arith.constant 10 : i32
    return
  }
}

</mosaic_0001>

<llo_original>
// kernel: tpu_custom_call.1
$region0: #{tpu_custom_call.1}
  #allocation0 [shape = 'u32[]', space=smem, size = 0x4, offset = 0x4, fixed_abs, tag = 'smem constant byte address 0x4 - core index']
  #allocation1 [shape = 'u32[144,128]{1,0:T(1,128)}', space=vmem, size = 0x12000, scoped, tag = 'internal scratch']
  %s0 = inlined_call_operand.vmem [shape: f32[8,4], index: 0, kind: input, shape index: {}]
  %s1 = inlined_call_operand.vmem [shape: f32[4,32], index: 1, kind: input, shape index: {}]
  %s2 = inlined_call_operand.vmem [shape: f32[4,32], index: 2, kind: input, shape index: {}]
  %s3 = inlined_call_operand.vmem [shape: f32[32,2], index: 3, kind: input, shape index: {}]
  %s4 = inlined_call_operand.vmem [shape: f32[32,2], index: 4, kind: input, shape index: {}]
  %s5 = inlined_call_operand.vmem [shape: f32[32,3], index: 5, kind: input, shape index: {}]
  %s6 = inlined_call_operand.vmem [shape: f32[1,32], index: 6, kind: input, shape index: {}]
  %s7 = inlined_call_operand.vmem [shape: f32[1,32], index: 7, kind: input, shape index: {}]
  %s8 = inlined_call_operand.vmem [shape: f32[10,8,4], index: 8, kind: output, shape index: {}]
  %s9 = sld [smem:[#allocation0]]
  $region42: #{tpu_custom_call.1} parent=0
    _
  %s11 = ssub.s32 1, %s9
  %s12 = scalar_select 0, %s11, %s9
  // Predicated region
  $region2: #{tpu_custom_call.1} parent=0 // pred_check
    _
  $region3: #{tpu_custom_call.1} parent=0 // pred_check_branch
    %14 = sbr.rel (0) target = $region5
  $region4: #{tpu_custom_call.1} parent=0 // pred_region
    _
  $region5: #{tpu_custom_call.1} parent=0 // pred_fallthru
    _
  // Predicated region
  $region6: #{tpu_custom_call.1} parent=0 // pred_check
    _
  $region7: #{tpu_custom_call.1} parent=0 // pred_check_branch
    %16 = sbr.rel (0) target = $region9
  $region8: #{tpu_custom_call.1} parent=0 // pred_region
    _
  $region9: #{tpu_custom_call.1} parent=0 // pred_fallthru
    _
  // Predicated region
  $region10: #{tpu_custom_call.1} parent=0 // pred_check
    _
  $region11: #{tpu_custom_call.1} parent=0 // pred_check_branch
    %18 = sbr.rel (0) target = $region13
  $region12: #{tpu_custom_call.1} parent=0 // pred_region
    _
  $region13: #{tpu_custom_call.1} parent=0 // pred_fallthru
    _
  // Predicated region
  $region14: #{tpu_custom_call.1} parent=0 // pred_check
    _
  $region15: #{tpu_custom_call.1} parent=0 // pred_check_branch
    %20 = sbr.rel (0) target = $region17
  $region16: #{tpu_custom_call.1} parent=0 // pred_region
    _
  $region17: #{tpu_custom_call.1} parent=0 // pred_fallthru
    _
  // Predicated region
  $region18: #{tpu_custom_call.1} parent=0 // pred_check
    _
  $region19: #{tpu_custom_call.1} parent=0 // pred_check_branch
    %22 = sbr.rel (0) target = $region21
  $region20: #{tpu_custom_call.1} parent=0 // pred_region
    _
  $region21: #{tpu_custom_call.1} parent=0 // pred_fallthru
    _
  // Predicated region
  $region22: #{tpu_custom_call.1} parent=0 // pred_check
    _
  $region23: #{tpu_custom_call.1} parent=0 // pred_check_branch
    %24 = sbr.rel (0) target = $region25
  $region24: #{tpu_custom_call.1} parent=0 // pred_region
    _
  $region25: #{tpu_custom_call.1} parent=0 // pred_fallthru
    _
  // Predicated region
  $region26: #{tpu_custom_call.1} parent=0 // pred_check
    _
  $region27: #{tpu_custom_call.1} parent=0 // pred_check_branch
    %26 = sbr.rel (0) target = $region29
  $region28: #{tpu_custom_call.1} parent=0 // pred_region
    _
  $region29: #{tpu_custom_call.1} parent=0 // pred_fallthru
    _
  // Predicated region
  $region30: #{tpu_custom_call.1} parent=0 // pred_check
    _
  $region31: #{tpu_custom_call.1} parent=0 // pred_check_branch
    %28 = sbr.rel (0) target = $region33
  $region32: #{tpu_custom_call.1} parent=0 // pred_region
    _
  $region33: #{tpu_custom_call.1} parent=0 // pred_fallthru
    _
  %v29 = vld [vmem:[%s1] sm:$0xf]
  %v30 = vld [vmem:[%s2] sm:$0xf]
  %v31 = vld [vmem:[%s3] sm:$0xff]
  %v32 = vld [vmem:[%s3 + $0x8] sm:$0xff]
  %v33 = vld [vmem:[%s3 + $0x10] sm:$0xff]
  %v34 = vld [vmem:[%s3 + $0x18] sm:$0xff]
  %v35 = vld [vmem:[%s4] sm:$0xff]
  %v36 = vld [vmem:[%s4 + $0x8] sm:$0xff]
  %v37 = vld [vmem:[%s4 + $0x10] sm:$0xff]
  %v38 = vld [vmem:[%s4 + $0x18] sm:$0xff]
  %v39 = vld [vmem:[%s5] sm:$0xff]
  %v40 = vld [vmem:[%s5 + $0x8] sm:$0xff]
  %v41 = vld [vmem:[%s5 + $0x10] sm:$0xff]
  %v42 = vld [vmem:[%s5 + $0x18] sm:$0xff]
  %v43 = vld [vmem:[%s6] sm:$0x1]
  %v45 = vlaneseq
  %v46 = vshrl.u32 %v45, 7
  %v47 = vsub.s32 0, %v46
  %v48 = vrot.slane %v43, %v47
  %v50 = vld [vmem:[%s7] sm:$0x1]
  %v52 = vlaneseq
  %v53 = vshrl.u32 %v52, 7
  %v54 = vsub.s32 0, %v53
  %v55 = vrot.slane %v50, %v54
  %v57 = vld [vmem:[%s0] sm:$0xff]
  %vm58 = vcmask 31744
  %v60 = vsel %vm58, %v57, 0
  %vm62 = vcmask 1043456
  %v64 = vsel %vm62, %v29, 0
  %66 = vmatprep.subr.mxu0 0.0
  %67 = vmatpush1.msra.mxu0 %v64
  %68 = vmatprep.subr.mxu0 0.0
  %69 = vmatpush1.msra.mxu0 0.0
  %70 = vmatprep.subr.mxu0 0.0
  %71 = vmatpush1.msra.mxu0 0.0
  %72 = vmatprep.subr.mxu0 0.0
  %73 = vmatpush1.msra.mxu0 0.0
  %74 = vmatprep.subr.mxu0 0.0
  %75 = vmatpush1.msra.mxu0 0.0
  %76 = vmatprep.subr.mxu0 0.0
  %77 = vmatpush1.msra.mxu0 0.0
  %78 = vmatprep.subr.mxu0 0.0
  %79 = vmatpush1.msra.mxu0 0.0
  %80 = vmatprep.subr.mxu0 0.0
  %81 = vmatpush1.msra.mxu0 0.0
  %82 = vmatprep.subr.mxu0 0.0
  %83 = vmatpush1.msra.mxu0 0.0
  %84 = vmatprep.subr.mxu0 0.0
  %85 = vmatpush1.msra.mxu0 0.0
  %86 = vmatprep.subr.mxu0 0.0
  %87 = vmatpush1.msra.mxu0 0.0
  %88 = vmatprep.subr.mxu0 0.0
  %89 = vmatpush1.msra.mxu0 0.0
  %90 = vmatprep.subr.mxu0 0.0
  %91 = vmatpush1.msra.mxu0 0.0
  %92 = vmatprep.subr.mxu0 0.0
  %93 = vmatpush1.msra.mxu0 0.0
  %94 = vmatprep.subr.mxu0 0.0
  %95 = vmatpush1.msra.mxu0 0.0
  %96 = vmatprep.subr.mxu0 0.0
  %97 = vmatpush1.msra.mxu0 0.0
  %98 = vmatprep.subr.mxu0 0.0
  %99 = vmatpush1.msra.mxu0 0.0
  %100 = vmatprep.subr.mxu0 0.0
  %101 = vmatpush1.msra.mxu0 0.0
  %102 = vmatprep.subr.mxu0 0.0
  %103 = vmatpush1.msra.mxu0 0.0
  %104 = vmatprep.subr.mxu0 0.0
  %105 = vmatpush1.msra.mxu0 0.0
  %106 = vmatprep.subr.mxu0 0.0
  %107 = vmatpush1.msra.mxu0 0.0
  %108 = vmatprep.subr.mxu0 0.0
  %109 = vmatpush1.msra.mxu0 0.0
  %110 = vmatprep.subr.mxu0 0.0
  %111 = vmatpush1.msra.mxu0 0.0
  %112 = vmatprep.subr.mxu0 0.0
  %113 = vmatpush1.msra.mxu0 0.0
  %114 = vmatprep.subr.mxu0 0.0
  %115 = vmatpush1.msra.mxu0 0.0
  %116 = vmatprep.subr.mxu0 0.0
  %117 = vmatpush1.msra.mxu0 0.0
  %118 = vmatprep.subr.mxu0 0.0
  %119 = vmatpush1.msra.mxu0 0.0
  %120 = vmatprep.subr.mxu0 0.0
  %121 = vmatpush1.msra.mxu0 0.0
  %122 = vmatprep.subr.mxu0 0.0
  %123 = vmatpush1.msra.mxu0 0.0
  %124 = vmatprep.subr.mxu0 0.0
  %125 = vmatpush1.msra.mxu0 0.0
  %126 = vmatprep.subr.mxu0 0.0
  %127 = vmatpush1.msra.mxu0 0.0
  %128 = vmatprep.subr.mxu0 0.0
  %129 = vmatpush1.msra.mxu0 0.0
  %130 = vmatprep.mubr.f32.mxu0 0.0
  %131 = vmatmul.mubr.f32.gmra.mrb[0].mxu0 %v60
  %v132 = vpop.f32.mrb[0].mxu0
  %v133 = vadd.f32 %v48, %v132
  %v134 = vpop.f32.mrb[0].mxu0
  %135 = vdwg.mxu0
  %v137 = vsel %vm62, %v30, 0
  %139 = vmatprep.subr.mxu0 0.0
  %140 = vmatpush1.msra.mxu0 %v137
  %141 = vmatprep.subr.mxu0 0.0
  %142 = vmatpush1.msra.mxu0 0.0
  %143 = vmatprep.subr.mxu0 0.0
  %144 = vmatpush1.msra.mxu0 0.0
  %145 = vmatprep.subr.mxu0 0.0
  %146 = vmatpush1.msra.mxu0 0.0
  %147 = vmatprep.subr.mxu0 0.0
  %148 = vmatpush1.msra.mxu0 0.0
  %149 = vmatprep.subr.mxu0 0.0
  %150 = vmatpush1.msra.mxu0 0.0
  %151 = vmatprep.subr.mxu0 0.0
  %152 = vmatpush1.msra.mxu0 0.0
  %153 = vmatprep.subr.mxu0 0.0
  %154 = vmatpush1.msra.mxu0 0.0
  %155 = vmatprep.subr.mxu0 0.0
  %156 = vmatpush1.msra.mxu0 0.0
  %157 = vmatprep.subr.mxu0 0.0
  %158 = vmatpush1.msra.mxu0 0.0
  %159 = vmatprep.subr.mxu0 0.0
  %160 = vmatpush1.msra.mxu0 0.0
  %161 = vmatprep.subr.mxu0 0.0
  %162 = vmatpush1.msra.mxu0 0.0
  %163 = vmatprep.subr.mxu0 0.0
  %164 = vmatpush1.msra.mxu0 0.0
  %165 = vmatprep.subr.mxu0 0.0
  %166 = vmatpush1.msra.mxu0 0.0
  %167 = vmatprep.subr.mxu0 0.0
  %168 = vmatpush1.msra.mxu0 0.0
  %169 = vmatprep.subr.mxu0 0.0
  %170 = vmatpush1.msra.mxu0 0.0
  %171 = vmatprep.subr.mxu0 0.0
  %172 = vmatpush1.msra.mxu0 0.0
  %173 = vmatprep.subr.mxu0 0.0
  %174 = vmatpush1.msra.mxu0 0.0
  %175 = vmatprep.subr.mxu0 0.0
  %176 = vmatpush1.msra.mxu0 0.0
  %177 = vmatprep.subr.mxu0 0.0
  %178 = vmatpush1.msra.mxu0 0.0
  %179 = vmatprep.subr.mxu0 0.0
  %180 = vmatpush1.msra.mxu0 0.0
  %181 = vmatprep.subr.mxu0 0.0
  %182 = vmatpush1.msra.mxu0 0.0
  %183 = vmatprep.subr.mxu0 0.0
  %184 = vmatpush1.msra.mxu0 0.0
  %185 = vmatprep.subr.mxu0 0.0
  %186 = vmatpush1.msra.mxu0 0.0
  %187 = vmatprep.subr.mxu0 0.0
  %188 = vmatpush1.msra.mxu0 0.0
  %189 = vmatprep.subr.mxu0 0.0
  %190 = vmatpush1.msra.mxu0 0.0
  %191 = vmatprep.subr.mxu0 0.0
  %192 = vmatpush1.msra.mxu0 0.0
  %193 = vmatprep.subr.mxu0 0.0
  %194 = vmatpush1.msra.mxu0 0.0
  %195 = vmatprep.subr.mxu0 0.0
  %196 = vmatpush1.msra.mxu0 0.0
  %197 = vmatprep.subr.mxu0 0.0
  %198 = vmatpush1.msra.mxu0 0.0
  %199 = vmatprep.subr.mxu0 0.0
  %200 = vmatpush1.msra.mxu0 0.0
  %201 = vmatprep.subr.mxu0 0.0
  %202 = vmatpush1.msra.mxu0 0.0
  %203 = vmatprep.mubr.f32.mxu0 0.0
  %204 = vmatmul.mubr.f32.gmra.mrb[0].mxu0 %v60
  %v205 = vpop.f32.mrb[0].mxu0
  %v206 = vadd.f32 0.0, %v205
  %v207 = vpop.f32.mrb[0].mxu0
  %208 = vdwg.mxu0
  %v209 = vtanh.pop %v133
  %v210 = vmul.f32 %v209, %v209
  %v211 = vsub.f32 1.0, %v210
  %v212 = vmul.f32 %v55, %v211
  %v213 = vmul.f32 %v55, -2.0
  %v214 = vmul.f32 %v213, %v209
  %v215 = vmul.f32 %v214, %v211
  %vm216 = vcmask 261120
  %v218 = vsel %vm216, %v212, 0
  %220 = vmatprep.subr.mxu0 0.0
  %221 = vmatpush1.msra.mxu0 %v31
  %222 = vmatprep.subr.mxu0 0.0
  %223 = vmatpush1.msra.mxu0 %v32
  %224 = vmatprep.subr.mxu0 0.0
  %225 = vmatpush1.msra.mxu0 %v33
  %226 = vmatprep.subr.mxu0 0.0
  %227 = vmatpush1.msra.mxu0 %v34
  %228 = vmatprep.subr.mxu0 0.0
  %229 = vmatpush1.msra.mxu0 0.0
  %230 = vmatprep.subr.mxu0 0.0
  %231 = vmatpush1.msra.mxu0 0.0
  %232 = vmatprep.subr.mxu0 0.0
  %233 = vmatpush1.msra.mxu0 0.0
  %234 = vmatprep.subr.mxu0 0.0
  %235 = vmatpush1.msra.mxu0 0.0
  %236 = vmatprep.subr.mxu0 0.0
  %237 = vmatpush1.msra.mxu0 0.0
  %238 = vmatprep.subr.mxu0 0.0
  %239 = vmatpush1.msra.mxu0 0.0
  %240 = vmatprep.subr.mxu0 0.0
  %241 = vmatpush1.msra.mxu0 0.0
  %242 = vmatprep.subr.mxu0 0.0
  %243 = vmatpush1.msra.mxu0 0.0
  %244 = vmatprep.subr.mxu0 0.0
  %245 = vmatpush1.msra.mxu0 0.0
  %246 = vmatprep.subr.mxu0 0.0
  %247 = vmatpush1.msra.mxu0 0.0
  %248 = vmatprep.subr.mxu0 0.0
  %249 = vmatpush1.msra.mxu0 0.0
  %250 = vmatprep.subr.mxu0 0.0
  %251 = vmatpush1.msra.mxu0 0.0
  %252 = vmatprep.subr.mxu0 0.0
  %253 = vmatpush1.msra.mxu0 0.0
  %254 = vmatprep.subr.mxu0 0.0
  %255 = vmatpush1.msra.mxu0 0.0
  %256 = vmatprep.subr.mxu0 0.0
  %257 = vmatpush1.msra.mxu0 0.0
  %258 = vmatprep.subr.mxu0 0.0
  %259 = vmatpush1.msra.mxu0 0.0
  %260 = vmatprep.subr.mxu0 0.0
  %261 = vmatpush1.msra.mxu0 0.0
  %262 = vmatprep.subr.mxu0 0.0
  %263 = vmatpush1.msra.mxu0 0.0
  %264 = vmatprep.subr.mxu0 0.0
  %265 = vmatpush1.msra.mxu0 0.0
  %266 = vmatprep.subr.mxu0 0.0
  %267 = vmatpush1.msra.mxu0 0.0
  %268 = vmatprep.subr.mxu0 0.0
  %269 = vmatpush1.msra.mxu0 0.0
  %270 = vmatprep.subr.mxu0 0.0
  %271 = vmatpush1.msra.mxu0 0.0
  %272 = vmatprep.subr.mxu0 0.0
  %273 = vmatpush1.msra.mxu0 0.0
  %274 = vmatprep.subr.mxu0 0.0
  %275 = vmatpush1.msra.mxu0 0.0
  %276 = vmatprep.subr.mxu0 0.0
  %277 = vmatpush1.msra.mxu0 0.0
  %278 = vmatprep.subr.mxu0 0.0
  %279 = vmatpush1.msra.mxu0 0.0
  %280 = vmatprep.subr.mxu0 0.0
  %281 = vmatpush1.msra.mxu0 0.0
  %282 = vmatprep.subr.mxu0 0.0
  %283 = vmatpush1.msra.mxu0 0.0
  %284 = vmatprep.mubr.f32.mxu0 0.0
  %285 = vmatmul.mubr.f32.gmra.mrb[0].mxu0 %v218
  %v286 = vpop.f32.mrb[0].mxu0
  %v287 = vadd.f32 0.0, %v286
  %v288 = vpop.f32.mrb[0].mxu0
  %289 = vdwg.mxu0
  %v290 = vmul.f32 %v215, %v206
  %v292 = vsel %vm216, %v290, 0
  %294 = vmatprep.subr.mxu0 0.0
  %295 = vmatpush1.msra.mxu0 %v35
  %296 = vmatprep.subr.mxu0 0.0
  %297 = vmatpush1.msra.mxu0 %v36
  %298 = vmatprep.subr.mxu0 0.0
  %299 = vmatpush1.msra.mxu0 %v37
  %300 = vmatprep.subr.mxu0 0.0
  %301 = vmatpush1.msra.mxu0 %v38
  %302 = vmatprep.subr.mxu0 0.0
  %303 = vmatpush1.msra.mxu0 0.0
  %304 = vmatprep.subr.mxu0 0.0
  %305 = vmatpush1.msra.mxu0 0.0
  %306 = vmatprep.subr.mxu0 0.0
  %307 = vmatpush1.msra.mxu0 0.0
  %308 = vmatprep.subr.mxu0 0.0
  %309 = vmatpush1.msra.mxu0 0.0
  %310 = vmatprep.subr.mxu0 0.0
  %311 = vmatpush1.msra.mxu0 0.0
  %312 = vmatprep.subr.mxu0 0.0
  %313 = vmatpush1.msra.mxu0 0.0
  %314 = vmatprep.subr.mxu0 0.0
  %315 = vmatpush1.msra.mxu0 0.0
  %316 = vmatprep.subr.mxu0 0.0
  %317 = vmatpush1.msra.mxu0 0.0
  %318 = vmatprep.subr.mxu0 0.0
  %319 = vmatpush1.msra.mxu0 0.0
  %320 = vmatprep.subr.mxu0 0.0
  %321 = vmatpush1.msra.mxu0 0.0
  %322 = vmatprep.subr.mxu0 0.0
  %323 = vmatpush1.msra.mxu0 0.0
  %324 = vmatprep.subr.mxu0 0.0
  %325 = vmatpush1.msra.mxu0 0.0
  %326 = vmatprep.subr.mxu0 0.0
  %327 = vmatpush1.msra.mxu0 0.0
  %328 = vmatprep.subr.mxu0 0.0
  %329 = vmatpush1.msra.mxu0 0.0
  %330 = vmatprep.subr.mxu0 0.0
  %331 = vmatpush1.msra.mxu0 0.0
  %332 = vmatprep.subr.mxu0 0.0
  %333 = vmatpush1.msra.mxu0 0.0
  %334 = vmatprep.subr.mxu0 0.0
  %335 = vmatpush1.msra.mxu0 0.0
  %336 = vmatprep.subr.mxu0 0.0
  %337 = vmatpush1.msra.mxu0 0.0
  %338 = vmatprep.subr.mxu0 0.0
  %339 = vmatpush1.msra.mxu0 0.0
  %340 = vmatprep.subr.mxu0 0.0
  %341 = vmatpush1.msra.mxu0 0.0
  %342 = vmatprep.subr.mxu0 0.0
  %343 = vmatpush1.msra.mxu0 0.0
  %344 = vmatprep.subr.mxu0 0.0
  %345 = vmatpush1.msra.mxu0 0.0
  %346 = vmatprep.subr.mxu0 0.0
  %347 = vmatpush1.msra.mxu0 0.0
  %348 = vmatprep.subr.mxu0 0.0
  %349 = vmatpush1.msra.mxu0 0.0
  %350 = vmatprep.subr.mxu0 0.0
  %351 = vmatpush1.msra.mxu0 0.0
  %352 = vmatprep.subr.mxu0 0.0
  %353 = vmatpush1.msra.mxu0 0.0
  %354 = vmatprep.subr.mxu0 0.0
  %355 = vmatpush1.msra.mxu0 0.0
  %356 = vmatprep.subr.mxu0 0.0
  %357 = vmatpush1.msra.mxu0 0.0
  %358 = vmatprep.mubr.f32.mxu0 0.0
  %359 = vmatmul.mubr.f32.gmra.mrb[0].mxu0 %v292
  %v360 = vpop.f32.mrb[0].mxu0
  %v361 = vadd.f32 0.0, %v360
  %v362 = vpop.f32.mrb[0].mxu0
  %363 = vdwg.mxu0
  %v365 = vsel %vm216, %v215, 0
  %367 = vmatprep.subr.mxu0 0.0
  %368 = vmatpush1.msra.mxu0 %v39
  %369 = vmatprep.subr.mxu0 0.0
  %370 = vmatpush1.msra.mxu0 %v40
  %371 = vmatprep.subr.mxu0 0.0
  %372 = vmatpush1.msra.mxu0 %v41
  %373 = vmatprep.subr.mxu0 0.0
  %374 = vmatpush1.msra.mxu0 %v42
  %375 = vmatprep.subr.mxu0 0.0
  %376 = vmatpush1.msra.mxu0 0.0
  %377 = vmatprep.subr.mxu0 0.0
  %378 = vmatpush1.msra.mxu0 0.0
  %379 = vmatprep.subr.mxu0 0.0
  %380 = vmatpush1.msra.mxu0 0.0
  %381 = vmatprep.subr.mxu0 0.0
  %382 = vmatpush1.msra.mxu0 0.0
  %383 = vmatprep.subr.mxu0 0.0
  %384 = vmatpush1.msra.mxu0 0.0
  %385 = vmatprep.subr.mxu0 0.0
  %386 = vmatpush1.msra.mxu0 0.0
  %387 = vmatprep.subr.mxu0 0.0
  %388 = vmatpush1.msra.mxu0 0.0
  %389 = vmatprep.subr.mxu0 0.0
  %390 = vmatpush1.msra.mxu0 0.0
  %391 = vmatprep.subr.mxu0 0.0
  %392 = vmatpush1.msra.mxu0 0.0
  %393 = vmatprep.subr.mxu0 0.0
  %394 = vmatpush1.msra.mxu0 0.0
  %395 = vmatprep.subr.mxu0 0.0
  %396 = vmatpush1.msra.mxu0 0.0
  %397 = vmatprep.subr.mxu0 0.0
  %398 = vmatpush1.msra.mxu0 0.0
  %399 = vmatprep.subr.mxu0 0.0
  %400 = vmatpush1.msra.mxu0 0.0
  %401 = vmatprep.subr.mxu0 0.0
  %402 = vmatpush1.msra.mxu0 0.0
  %403 = vmatprep.subr.mxu0 0.0
  %404 = vmatpush1.msra.mxu0 0.0
  %405 = vmatprep.subr.mxu0 0.0
  %406 = vmatpush1.msra.mxu0 0.0
  %407 = vmatprep.subr.mxu0 0.0
  %408 = vmatpush1.msra.mxu0 0.0
  %409 = vmatprep.subr.mxu0 0.0
  %410 = vmatpush1.msra.mxu0 0.0
  %411 = vmatprep.subr.mxu0 0.0
  %412 = vmatpush1.msra.mxu0 0.0
  %413 = vmatprep.subr.mxu0 0.0
  %414 = vmatpush1.msra.mxu0 0.0
  %415 = vmatprep.subr.mxu0 0.0
  %416 = vmatpush1.msra.mxu0 0.0
  %417 = vmatprep.subr.mxu0 0.0
  %418 = vmatpush1.msra.mxu0 0.0
  %419 = vmatprep.subr.mxu0 0.0
  %420 = vmatpush1.msra.mxu0 0.0
  %421 = vmatprep.subr.mxu0 0.0
  %422 = vmatpush1.msra.mxu0 0.0
  %423 = vmatprep.subr.mxu0 0.0
  %424 = vmatpush1.msra.mxu0 0.0
  %425 = vmatprep.subr.mxu0 0.0
  %426 = vmatpush1.msra.mxu0 0.0
  %427 = vmatprep.subr.mxu0 0.0
  %428 = vmatpush1.msra.mxu0 0.0
  %429 = vmatprep.subr.mxu0 0.0
  %430 = vmatpush1.msra.mxu0 0.0
  %431 = vmatprep.mubr.f32.mxu0 0.0
  %432 = vmatmul.mubr.f32.gmra.mrb[0].mxu0 %v365
  %v433 = vpop.f32.mrb[0].mxu0
  %v434 = vadd.f32 0.0, %v433
  %v435 = vpop.f32.mrb[0].mxu0
  %436 = vdwg.mxu0
  %v437 = vadd.f32 %v434, 1.0
  %v438 = vsub.f32 %v287, %v361
  %440 = vrot.lane.b32.xlu0 %v437, 126
  %v441 = vpop.permute.xlu0 %440
  %v443 = vmul.f32 %v437, %v441
  %v444 = vmul.f32 %v434, %v434
  %446 = vrot.lane.b32.xlu0 %v444, 127
  %v447 = vpop.permute.xlu0 %446
  %v449 = vsub.f32 %v443, %v447
  %v450 = vrcp.pop %v449
  %v451 = vmul.f32 1.0, %v450
  %453 = vrot.lane.b32.xlu0 %v438, 2
  %v454 = vpop.permute.xlu0 %453
  %v456 = vmul.f32 %v437, %v454
  %v457 = vmul.f32 %v434, %v438
  %459 = vrot.lane.b32.xlu0 %v457, 1
  %v460 = vpop.permute.xlu0 %459
  %v462 = vsub.f32 %v456, %v460
  %463 = vrot.lane.b32.xlu0 %v438, 127
  %v464 = vpop.permute.xlu0 %463
  %v466 = vmul.f32 %v437, %v464
  %467 = vrot.lane.b32.xlu0 %v438, 1
  %v468 = vpop.permute.xlu0 %467
  %v470 = vmul.f32 %v434, %v468
  %472 = vrot.lane.b32.xlu0 %v470, 127
  %v473 = vpop.permute.xlu0 %472
  %v475 = vsub.f32 %v466, %v473
  %477 = vrot.lane.b32.xlu0 %v462, 126
  %v478 = vpop.permute.xlu0 %477
  %481 = vrot.lane.b32.xlu0 %v475, 1
  %v482 = vpop.permute.xlu0 %481
  %vm484 = vcmask 7168
  %v485 = vsel %vm484, %v478, %v482
  %487 = vset.pattern.permute.xlu0 0
  %488 = vperm.xlu0 %487, %v451
  %v489 = vpop.permute.xlu0 %488
  %v491 = vmul.f32 %v485, %v489
  %492 = vrot.lane.b32.xlu0 %v57, 126
  %v493 = vpop.permute.xlu0 %492
  %496 = vrot.lane.b32.xlu0 %v491, 2
  %v497 = vpop.permute.xlu0 %496
  %vm499 = vcmask 15360
  %v500 = vsel %vm499, %v493, %v497
  %v501 = vmul.f32 %v500, 0.1
  %v502 = vadd.f32 %v57, %v501
  %503 = vst.msk [vmem:[%s8] sm:$0xff] %vm58, %v502
  %v505 = vsel %vm58, %v502, 0
  %507 = vmatprep.subr.mxu0 0.0
  %508 = vmatpush1.msra.mxu0 %v64
  %509 = vmatprep.subr.mxu0 0.0
  %510 = vmatpush1.msra.mxu0 0.0
  %511 = vmatprep.subr.mxu0 0.0
  %512 = vmatpush1.msra.mxu0 0.0
  %513 = vmatprep.subr.mxu0 0.0
  %514 = vmatpush1.msra.mxu0 0.0
  %515 = vmatprep.subr.mxu0 0.0
  %516 = vmatpush1.msra.mxu0 0.0
  %517 = vmatprep.subr.mxu0 0.0
  %518 = vmatpush1.msra.mxu0 0.0
  %519 = vmatprep.subr.mxu0 0.0
  %520 = vmatpush1.msra.mxu0 0.0
  %521 = vmatprep.subr.mxu0 0.0
  %522 = vmatpush1.msra.mxu0 0.0
  %523 = vmatprep.subr.mxu0 0.0
  %524 = vmatpush1.msra.mxu0 0.0
  %525 = vmatprep.subr.mxu0 0.0
  %526 = vmatpush1.msra.mxu0 0.0
  %527 = vmatprep.subr.mxu0 0.0
  %528 = vmatpush1.msra.mxu0 0.0
  %529 = vmatprep.subr.mxu0 0.0
  %530 = vmatpush1.msra.mxu0 0.0
  %531 = vmatprep.subr.mxu0 0.0
  %532 = vmatpush1.msra.mxu0 0.0
  %533 = vmatprep.subr.mxu0 0.0
  %534 = vmatpush1.msra.mxu0 0.0
  %535 = vmatprep.subr.mxu0 0.0
  %536 = vmatpush1.msra.mxu0 0.0
  %537 = vmatprep.subr.mxu0 0.0
  %538 = vmatpush1.msra.mxu0 0.0
  %539 = vmatprep.subr.mxu0 0.0
  %540 = vmatpush1.msra.mxu0 0.0
  %541 = vmatprep.subr.mxu0 0.0
  %542 = vmatpush1.msra.mxu0 0.0
  %543 = vmatprep.subr.mxu0 0.0
  %544 = vmatpush1.msra.mxu0 0.0
  %545 = vmatprep.subr.mxu0 0.0
  %546 = vmatpush1.msra.mxu0 0.0
  %547 = vmatprep.subr.mxu0 0.0
  %548 = vmatpush1.msra.mxu0 0.0
  %549 = vmatprep.subr.mxu0 0.0
  %550 = vmatpush1.msra.mxu0 0.0
  %551 = vmatprep.subr.mxu0 0.0
  %552 = vmatpush1.msra.mxu0 0.0
  %553 = vmatprep.subr.mxu0 0.0
  %554 = vmatpush1.msra.mxu0 0.0
  %555 = vmatprep.subr.mxu0 0.0
  %556 = vmatpush1.msra.mxu0 0.0
  %557 = vmatprep.subr.mxu0 0.0
  %558 = vmatpush1.msra.mxu0 0.0
  %559 = vmatprep.subr.mxu0 0.0
  %560 = vmatpush1.msra.mxu0 0.0
  %561 = vmatprep.subr.mxu0 0.0
  %562 = vmatpush1.msra.mxu0 0.0
  %563 = vmatprep.subr.mxu0 0.0
  %564 = vmatpush1.msra.mxu0 0.0
  %565 = vmatprep.subr.mxu0 0.0
  %566 = vmatpush1.msra.mxu0 0.0
  %567 = vmatprep.subr.mxu0 0.0
  %568 = vmatpush1.msra.mxu0 0.0
  %569 = vmatprep.subr.mxu0 0.0
  %570 = vmatpush1.msra.mxu0 0.0
  %571 = vmatprep.mubr.f32.mxu0 0.0
  %572 = vmatmul.mubr.f32.gmra.mrb[0].mxu0 %v505
  %v573 = vpop.f32.mrb[0].mxu0
  %v574 = vadd.f32 %v48, %v573
  %v575 = vpop.f32.mrb[0].mxu0
  %576 = vdwg.mxu0
  %577 = vmatprep.subr.mxu0 0.0
  %578 = vmatpush1.msra.mxu0 %v137
  %579 = vmatprep.subr.mxu0 0.0
  %580 = vmatpush1.msra.mxu0 0.0
  %581 = vmatprep.subr.mxu0 0.0
  %582 = vmatpush1.msra.mxu0 0.0
  %583 = vmatprep.subr.mxu0 0.0
  %584 = vmatpush1.msra.mxu0 0.0
  %585 = vmatprep.subr.mxu0 0.0
  %586 = vmatpush1.msra.mxu0 0.0
  %587 = vmatprep.subr.mxu0 0.0
  %588 = vmatpush1.msra.mxu0 0.0
  %589 = vmatprep.subr.mxu0 0.0
  %590 = vmatpush1.msra.mxu0 0.0
  %591 = vmatprep.subr.mxu0 0.0
  %592 = vmatpush1.msra.mxu0 0.0
  %593 = vmatprep.subr.mxu0 0.0
  %594 = vmatpush1.msra.mxu0 0.0
  %595 = vmatprep.subr.mxu0 0.0
  %596 = vmatpush1.msra.mxu0 0.0
  %597 = vmatprep.subr.mxu0 0.0
  %598 = vmatpush1.msra.mxu0 0.0
  %599 = vmatprep.subr.mxu0 0.0
  %600 = vmatpush1.msra.mxu0 0.0
  %601 = vmatprep.subr.mxu0 0.0
  %602 = vmatpush1.msra.mxu0 0.0
  %603 = vmatprep.subr.mxu0 0.0
  %604 = vmatpush1.msra.mxu0 0.0
  %605 = vmatprep.subr.mxu0 0.0
  %606 = vmatpush1.msra.mxu0 0.0
  %607 = vmatprep.subr.mxu0 0.0
  %608 = vmatpush1.msra.mxu0 0.0
  %609 = vmatprep.subr.mxu0 0.0
  %610 = vmatpush1.msra.mxu0 0.0
  %611 = vmatprep.subr.mxu0 0.0
  %612 = vmatpush1.msra.mxu0 0.0
  %613 = vmatprep.subr.mxu0 0.0
  %614 = vmatpush1.msra.mxu0 0.0
  %615 = vmatprep.subr.mxu0 0.0
  %616 = vmatpush1.msra.mxu0 0.0
  %617 = vmatprep.subr.mxu0 0.0
  %618 = vmatpush1.msra.mxu0 0.0
  %619 = vmatprep.subr.mxu0 0.0
  %620 = vmatpush1.msra.mxu0 0.0
  %621 = vmatprep.subr.mxu0 0.0
  %622 = vmatpush1.msra.mxu0 0.0
  %623 = vmatprep.subr.mxu0 0.0
  %624 = vmatpush1.msra.mxu0 0.0
  %625 = vmatprep.subr.mxu0 0.0
  %626 = vmatpush1.msra.mxu0 0.0
  %627 = vmatprep.subr.mxu0 0.0
  %628 = vmatpush1.msra.mxu0 0.0
  %629 = vmatprep.subr.mxu0 0.0
  %630 = vmatpush1.msra.mxu0 0.0
  %631 = vmatprep.subr.mxu0 0.0
  %632 = vmatpush1.msra.mxu0 0.0
  %633 = vmatprep.subr.mxu0 0.0
  %634 = vmatpush1.msra.mxu0 0.0
  %635 = vmatprep.subr.mxu0 0.0
  %636 = vmatpush1.msra.mxu0 0.0
  %637 = vmatprep.subr.mxu0 0.0
  %638 = vmatpush1.msra.mxu0 0.0
  %639 = vmatprep.subr.mxu0 0.0
  %640 = vmatpush1.msra.mxu0 0.0
  %641 = vmatprep.mubr.f32.mxu0 0.0
  %642 = vmatmul.mubr.f32.gmra.mrb[0].mxu0 %v505
  %v643 = vpop.f32.mrb[0].mxu0
  %v644 = vadd.f32 0.0, %v643
  %v645 = vpop.f32.mrb[0].mxu0
  %646 = vdwg.mxu0
  %v647 = vtanh.pop %v574
  %v648 = vmul.f32 %v647, %v647
  %v649 = vsub.f32 1.0, %v648
  %v650 = vmul.f32 %v55, %v649
  %v651 = vmul.f32 %v213, %v647
  %v652 = vmul.f32 %v651, %v649
  %v654 = vsel %vm216, %v650, 0
  %656 = vmatprep.subr.mxu0 0.0
  %657 = vmatpush1.msra.mxu0 %v31
  %658 = vmatprep.subr.mxu0 0.0
  %659 = vmatpush1.msra.mxu0 %v32
  %660 = vmatprep.subr.mxu0 0.0
  %661 = vmatpush1.msra.mxu0 %v33
  %662 = vmatprep.subr.mxu0 0.0
  %663 = vmatpush1.msra.mxu0 %v34
  %664 = vmatprep.subr.mxu0 0.0
  %665 = vmatpush1.msra.mxu0 0.0
  %666 = vmatprep.subr.mxu0 0.0
  %667 = vmatpush1.msra.mxu0 0.0
  %668 = vmatprep.subr.mxu0 0.0
  %669 = vmatpush1.msra.mxu0 0.0
  %670 = vmatprep.subr.mxu0 0.0
  %671 = vmatpush1.msra.mxu0 0.0
  %672 = vmatprep.subr.mxu0 0.0
  %673 = vmatpush1.msra.mxu0 0.0
  %674 = vmatprep.subr.mxu0 0.0
  %675 = vmatpush1.msra.mxu0 0.0
  %676 = vmatprep.subr.mxu0 0.0
  %677 = vmatpush1.msra.mxu0 0.0
  %678 = vmatprep.subr.mxu0 0.0
  %679 = vmatpush1.msra.mxu0 0.0
  %680 = vmatprep.subr.mxu0 0.0
  %681 = vmatpush1.msra.mxu0 0.0
  %682 = vmatprep.subr.mxu0 0.0
  %683 = vmatpush1.msra.mxu0 0.0
  %684 = vmatprep.subr.mxu0 0.0
  %685 = vmatpush1.msra.mxu0 0.0
  %686 = vmatprep.subr.mxu0 0.0
  %687 = vmatpush1.msra.mxu0 0.0
  %688 = vmatprep.subr.mxu0 0.0
  %689 = vmatpush1.msra.mxu0 0.0
  %690 = vmatprep.subr.mxu0 0.0
  %691 = vmatpush1.msra.mxu0 0.0
  %692 = vmatprep.subr.mxu0 0.0
  %693 = vmatpush1.msra.mxu0 0.0
  %694 = vmatprep.subr.mxu0 0.0
  %695 = vmatpush1.msra.mxu0 0.0
  %696 = vmatprep.subr.mxu0 0.0
  %697 = vmatpush1.msra.mxu0 0.0
  %698 = vmatprep.subr.mxu0 0.0
  %699 = vmatpush1.msra.mxu0 0.0
  %700 = vmatprep.subr.mxu0 0.0
  %701 = vmatpush1.msra.mxu0 0.0
  %702 = vmatprep.subr.mxu0 0.0
  %703 = vmatpush1.msra.mxu0 0.0
  %704 = vmatprep.subr.mxu0 0.0
  %705 = vmatpush1.msra.mxu0 0.0
  %706 = vmatprep.subr.mxu0 0.0
  %707 = vmatpush1.msra.mxu0 0.0
  %708 = vmatprep.subr.mxu0 0.0
  %709 = vmatpush1.msra.mxu0 0.0
  %710 = vmatprep.subr.mxu0 0.0
  %711 = vmatpush1.msra.mxu0 0.0
  %712 = vmatprep.subr.mxu0 0.0
  %713 = vmatpush1.msra.mxu0 0.0
  %714 = vmatprep.subr.mxu0 0.0
  %715 = vmatpush1.msra.mxu0 0.0
  %716 = vmatprep.subr.mxu0 0.0
  %717 = vmatpush1.msra.mxu0 0.0
  %718 = vmatprep.subr.mxu0 0.0
  %719 = vmatpush1.msra.mxu0 0.0
  %720 = vmatprep.mubr.f32.mxu0 0.0
  %721 = vmatmul.mubr.f32.gmra.mrb[0].mxu0 %v654
  %v722 = vpop.f32.mrb[0].mxu0
  %v723 = vadd.f32 0.0, %v722
  %v724 = vpop.f32.mrb[0].mxu0
  %725 = vdwg.mxu0
  %v726 = vmul.f32 %v652, %v644
  %v728 = vsel %vm216, %v726, 0
  %730 = vmatprep.subr.mxu0 0.0
  %731 = vmatpush1.msra.mxu0 %v35
  %732 = vmatprep.subr.mxu0 0.0
  %733 = vmatpush1.msra.mxu0 %v36
  %734 = vmatprep.subr.mxu0 0.0
  %735 = vmatpush1.msra.mxu0 %v37
  %736 = vmatprep.subr.mxu0 0.0
  %737 = vmatpush1.msra.mxu0 %v38
  %738 = vmatprep.subr.mxu0 0.0
  %739 = vmatpush1.msra.mxu0 0.0
  %740 = vmatprep.subr.mxu0 0.0
  %741 = vmatpush1.msra.mxu0 0.0
  %742 = vmatprep.subr.mxu0 0.0
  %743 = vmatpush1.msra.mxu0 0.0
  %744 = vmatprep.subr.mxu0 0.0
  %745 = vmatpush1.msra.mxu0 0.0
  %746 = vmatprep.subr.mxu0 0.0
  %747 = vmatpush1.msra.mxu0 0.0
  %748 = vmatprep.subr.mxu0 0.0
  %749 = vmatpush1.msra.mxu0 0.0
  %750 = vmatprep.subr.mxu0 0.0
  %751 = vmatpush1.msra.mxu0 0.0
  %752 = vmatprep.subr.mxu0 0.0
  %753 = vmatpush1.msra.mxu0 0.0
  %754 = vmatprep.subr.mxu0 0.0
  %755 = vmatpush1.msra.mxu0 0.0
  %756 = vmatprep.subr.mxu0 0.0
  %757 = vmatpush1.msra.mxu0 0.0
  %758 = vmatprep.subr.mxu0 0.0
  %759 = vmatpush1.msra.mxu0 0.0
  %760 = vmatprep.subr.mxu0 0.0
  %761 = vmatpush1.msra.mxu0 0.0
  %762 = vmatprep.subr.mxu0 0.0
  %763 = vmatpush1.msra.mxu0 0.0
  %764 = vmatprep.subr.mxu0 0.0
  %765 = vmatpush1.msra.mxu0 0.0
  %766 = vmatprep.subr.mxu0 0.0
  %767 = vmatpush1.msra.mxu0 0.0
  %768 = vmatprep.subr.mxu0 0.0
  %769 = vmatpush1.msra.mxu0 0.0
  %770 = vmatprep.subr.mxu0 0.0
  %771 = vmatpush1.msra.mxu0 0.0
  %772 = vmatprep.subr.mxu0 0.0
  %773 = vmatpush1.msra.mxu0 0.0
  %774 = vmatprep.subr.mxu0 0.0
  %775 = vmatpush1.msra.mxu0 0.0
  %776 = vmatprep.subr.mxu0 0.0
  %777 = vmatpush1.msra.mxu0 0.0
  %778 = vmatprep.subr.mxu0 0.0
  %779 = vmatpush1.msra.mxu0 0.0
  %780 = vmatprep.subr.mxu0 0.0
  %781 = vmatpush1.msra.mxu0 0.0
  %782 = vmatprep.subr.mxu0 0.0
  %783 = vmatpush1.msra.mxu0 0.0
  %784 = vmatprep.subr.mxu0 0.0
  %785 = vmatpush1.msra.mxu0 0.0
  %786 = vmatprep.subr.mxu0 0.0
  %787 = vmatpush1.msra.mxu0 0.0
  %788 = vmatprep.subr.mxu0 0.0
  %789 = vmatpush1.msra.mxu0 0.0
  %790 = vmatprep.subr.mxu0 0.0
  %791 = vmatpush1.msra.mxu0 0.0
  %792 = vmatprep.subr.mxu0 0.0
  %793 = vmatpush1.msra.mxu0 0.0
  %794 = vmatprep.mubr.f32.mxu0 0.0
  %795 = vmatmul.mubr.f32.gmra.mrb[0].mxu0 %v728
  %v796 = vpop.f32.mrb[0].mxu0
  %v797 = vadd.f32 0.0, %v796
  %v798 = vpop.f32.mrb[0].mxu0
  %799 = vdwg.mxu0
  %v801 = vsel %vm216, %v652, 0
  %803 = vmatprep.subr.mxu0 0.0
  %804 = vmatpush1.msra.mxu0 %v39
  %805 = vmatprep.subr.mxu0 0.0
  %806 = vmatpush1.msra.mxu0 %v40
  %807 = vmatprep.subr.mxu0 0.0
  %808 = vmatpush1.msra.mxu0 %v41
  %809 = vmatprep.subr.mxu0 0.0
  %810 = vmatpush1.msra.mxu0 %v42
  %811 = vmatprep.subr.mxu0 0.0
  %812 = vmatpush1.msra.mxu0 0.0
  %813 = vmatprep.subr.mxu0 0.0
  %814 = vmatpush1.msra.mxu0 0.0
  %815 = vmatprep.subr.mxu0 0.0
  %816 = vmatpush1.msra.mxu0 0.0
  %817 = vmatprep.subr.mxu0 0.0
  %818 = vmatpush1.msra.mxu0 0.0
  %819 = vmatprep.subr.mxu0 0.0
  %820 = vmatpush1.msra.mxu0 0.0
  %821 = vmatprep.subr.mxu0 0.0
  %822 = vmatpush1.msra.mxu0 0.0
  %823 = vmatprep.subr.mxu0 0.0
  %824 = vmatpush1.msra.mxu0 0.0
  %825 = vmatprep.subr.mxu0 0.0
  %826 = vmatpush1.msra.mxu0 0.0
  %827 = vmatprep.subr.mxu0 0.0
  %828 = vmatpush1.msra.mxu0 0.0
  %829 = vmatprep.subr.mxu0 0.0
  %830 = vmatpush1.msra.mxu0 0.0
  %831 = vmatprep.subr.mxu0 0.0
  %832 = vmatpush1.msra.mxu0 0.0
  %833 = vmatprep.subr.mxu0 0.0
  %834 = vmatpush1.msra.mxu0 0.0
  %835 = vmatprep.subr.mxu0 0.0
  %836 = vmatpush1.msra.mxu0 0.0
  %837 = vmatprep.subr.mxu0 0.0
  %838 = vmatpush1.msra.mxu0 0.0
  %839 = vmatprep.subr.mxu0 0.0
  %840 = vmatpush1.msra.mxu0 0.0
  %841 = vmatprep.subr.mxu0 0.0
  %842 = vmatpush1.msra.mxu0 0.0
  %843 = vmatprep.subr.mxu0 0.0
  %844 = vmatpush1.msra.mxu0 0.0
  %845 = vmatprep.subr.mxu0 0.0
  %846 = vmatpush1.msra.mxu0 0.0
  %847 = vmatprep.subr.mxu0 0.0
  %848 = vmatpush1.msra.mxu0 0.0
  %849 = vmatprep.subr.mxu0 0.0
  %850 = vmatpush1.msra.mxu0 0.0
  %851 = vmatprep.subr.mxu0 0.0
  %852 = vmatpush1.msra.mxu0 0.0
  %853 = vmatprep.subr.mxu0 0.0
  %854 = vmatpush1.msra.mxu0 0.0
  %855 = vmatprep.subr.mxu0 0.0
  %856 = vmatpush1.msra.mxu0 0.0
  %857 = vmatprep.subr.mxu0 0.0
  %858 = vmatpush1.msra.mxu0 0.0
  %859 = vmatprep.subr.mxu0 0.0
  %860 = vmatpush1.msra.mxu0 0.0
  %861 = vmatprep.subr.mxu0 0.0
  %862 = vmatpush1.msra.mxu0 0.0
  %863 = vmatprep.subr.mxu0 0.0
  %864 = vmatpush1.msra.mxu0 0.0
  %865 = vmatprep.subr.mxu0 0.0
  %866 = vmatpush1.msra.mxu0 0.0
  %867 = vmatprep.mubr.f32.mxu0 0.0
  %868 = vmatmul.mubr.f32.gmra.mrb[0].mxu0 %v801
  %v869 = vpop.f32.mrb[0].mxu0
  %v870 = vadd.f32 0.0, %v869
  %v871 = vpop.f32.mrb[0].mxu0
  %872 = vdwg.mxu0
  %v873 = vadd.f32 %v870, 1.0
  %v874 = vsub.f32 %v723, %v797
  %876 = vrot.lane.b32.xlu0 %v873, 126
  %v877 = vpop.permute.xlu0 %876
  %v879 = vmul.f32 %v873, %v877
  %v880 = vmul.f32 %v870, %v870
  %882 = vrot.lane.b32.xlu0 %v880, 127
  %v883 = vpop.permute.xlu0 %882
  %v885 = vsub.f32 %v879, %v883
  %v886 = vrcp.pop %v885
  %v887 = vmul.f32 1.0, %v886
  %889 = vrot.lane.b32.xlu0 %v874, 2
  %v890 = vpop.permute.xlu0 %889
  %v892 = vmul.f32 %v873, %v890
  %v893 = vmul.f32 %v870, %v874
  %895 = vrot.lane.b32.xlu0 %v893, 1
  %v896 = vpop.permute.xlu0 %895
  %v898 = vsub.f32 %v892, %v896
  %899 = vrot.lane.b32.xlu0 %v874, 127
  %v900 = vpop.permute.xlu0 %899
  %v902 = vmul.f32 %v873, %v900
  %903 = vrot.lane.b32.xlu0 %v874, 1
  %v904 = vpop.permute.xlu0 %903
  %v906 = vmul.f32 %v870, %v904
  %908 = vrot.lane.b32.xlu0 %v906, 127
  %v909 = vpop.permute.xlu0 %908
  %v911 = vsub.f32 %v902, %v909
  %913 = vrot.lane.b32.xlu0 %v898, 126
  %v914 = vpop.permute.xlu0 %913
  %917 = vrot.lane.b32.xlu0 %v911, 1
  %v918 = vpop.permute.xlu0 %917
  %v920 = vsel %vm484, %v914, %v918
  %922 = vset.pattern.permute.xlu0 0
  %923 = vperm.xlu0 %922, %v887
  %v924 = vpop.permute.xlu0 %923
  %v926 = vmul.f32 %v920, %v924
  %927 = vrot.lane.b32.xlu0 %v502, 126
  %v928 = vpop.permute.xlu0 %927
  %931 = vrot.lane.b32.xlu0 %v926, 2
  %v932 = vpop.permute.xlu0 %931
  %v934 = vsel %vm499, %v928, %v932
  %v935 = vmul.f32 %v934, 0.1
  %v936 = vadd.f32 %v502, %v935
  %s937 = scalar_lea.vmem %s8, 8
  %938 = vst.msk [vmem:[%s937] sm:$0xff] %vm58, %v936
  %v940 = vsel %vm58, %v936, 0
  %942 = vmatprep.subr.mxu0 0.0
  %943 = vmatpush1.msra.mxu0 %v64
  %944 = vmatprep.subr.mxu0 0.0
  %945 = vmatpush1.msra.mxu0 0.0
  %946 = vmatprep.subr.mxu0 0.0
  %947 = vmatpush1.msra.mxu0 0.0
  %948 = vmatprep.subr.mxu0 0.0
  %949 = vmatpush1.msra.mxu0 0.0
  %950 = vmatprep.subr.mxu0 0.0
  %951 = vmatpush1.msra.mxu0 0.0
  %952 = vmatprep.subr.mxu0 0.0
  %953 = vmatpush1.msra.mxu0 0.0
  %954 = vmatprep.subr.mxu0 0.0
  %955 = vmatpush1.msra.mxu0 0.0
  %956 = vmatprep.subr.mxu0 0.0
  %957 = vmatpush1.msra.mxu0 0.0
  %958 = vmatprep.subr.mxu0 0.0
  %959 = vmatpush1.msra.mxu0 0.0
  %960 = vmatprep.subr.mxu0 0.0
  %961 = vmatpush1.msra.mxu0 0.0
  %962 = vmatprep.subr.mxu0 0.0
  %963 = vmatpush1.msra.mxu0 0.0
  %964 = vmatprep.subr.mxu0 0.0
  %965 = vmatpush1.msra.mxu0 0.0
  %966 = vmatprep.subr.mxu0 0.0
  %967 = vmatpush1.msra.mxu0 0.0
  %968 = vmatprep.subr.mxu0 0.0
  %969 = vmatpush1.msra.mxu0 0.0
  %970 = vmatprep.subr.mxu0 0.0
  %971 = vmatpush1.msra.mxu0 0.0
  %972 = vmatprep.subr.mxu0 0.0
  %973 = vmatpush1.msra.mxu0 0.0
  %974 = vmatprep.subr.mxu0 0.0
  %975 = vmatpush1.msra.mxu0 0.0
  %976 = vmatprep.subr.mxu0 0.0
  %977 = vmatpush1.msra.mxu0 0.0
  %978 = vmatprep.subr.mxu0 0.0
  %979 = vmatpush1.msra.mxu0 0.0
  %980 = vmatprep.subr.mxu0 0.0
  %981 = vmatpush1.msra.mxu0 0.0
  %982 = vmatprep.subr.mxu0 0.0
  %983 = vmatpush1.msra.mxu0 0.0
  %984 = vmatprep.subr.mxu0 0.0
  %985 = vmatpush1.msra.mxu0 0.0
  %986 = vmatprep.subr.mxu0 0.0
  %987 = vmatpush1.msra.mxu0 0.0
  %988 = vmatprep.subr.mxu0 0.0
  %989 = vmatpush1.msra.mxu0 0.0
  %990 = vmatprep.subr.mxu0 0.0
  %991 = vmatpush1.msra.mxu0 0.0
  %992 = vmatprep.subr.mxu0 0.0
  %993 = vmatpush1.msra.mxu0 0.0
  %994 = vmatprep.subr.mxu0 0.0
  %995 = vmatpush1.msra.mxu0 0.0
  %996 = vmatprep.subr.mxu0 0.0
  %997 = vmatpush1.msra.mxu0 0.0
  %998 = vmatprep.subr.mxu0 0.0
  %999 = vmatpush1.msra.mxu0 0.0
  %1000 = vmatprep.subr.mxu0 0.0
  %1001 = vmatpush1.msra.mxu0 0.0
  %1002 = vmatprep.subr.mxu0 0.0
  %1003 = vmatpush1.msra.mxu0 0.0
  %1004 = vmatprep.subr.mxu0 0.0
  %1005 = vmatpush1.msra.mxu0 0.0
  %1006 = vmatprep.mubr.f32.mxu0 0.0
  %1007 = vmatmul.mubr.f32.gmra.mrb[0].mxu0 %v940
  %v1008 = vpop.f32.mrb[0].mxu0
  %v1009 = vadd.f32 %v48, %v1008
  %v1010 = vpop.f32.mrb[0].mxu0
  %1011 = vdwg.mxu0
  %1012 = vmatprep.subr.mxu0 0.0
  %1013 = vmatpush1.msra.mxu0 %v137
  %1014 = vmatprep.subr.mxu0 0.0
  %1015 = vmatpush1.msra.mxu0 0.0
  %1016 = vmatprep.subr.mxu0 0.0
  %1017 = vmatpush1.msra.mxu0 0.0
  %1018 = vmatprep.subr.mxu0 0.0
  %1019 = vmatpush1.msra.mxu0 0.0
  %1020 = vmatprep.subr.mxu0 0.0
  %1021 = vmatpush1.msra.mxu0 0.0
  %1022 = vmatprep.subr.mxu0 0.0
  %1023 = vmatpush1.msra.mxu0 0.0
  %1024 = vmatprep.subr.mxu0 0.0
  %1025 = vmatpush1.msra.mxu0 0.0
  %1026 = vmatprep.subr.mxu0 0.0
  %1027 = vmatpush1.msra.mxu0 0.0
  %1028 = vmatprep.subr.mxu0 0.0
  %1029 = vmatpush1.msra.mxu0 0.0
  %1030 = vmatprep.subr.mxu0 0.0
  %1031 = vmatpush1.msra.mxu0 0.0
  %1032 = vmatprep.subr.mxu0 0.0
  %1033 = vmatpush1.msra.mxu0 0.0
  %1034 = vmatprep.subr.mxu0 0.0
  %1035 = vmatpush1.msra.mxu0 0.0
  %1036 = vmatprep.subr.mxu0 0.0
  %1037 = vmatpush1.msra.mxu0 0.0
  %1038 = vmatprep.subr.mxu0 0.0
  %1039 = vmatpush1.msra.mxu0 0.0
  %1040 = vmatprep.subr.mxu0 0.0
  %1041 = vmatpush1.msra.mxu0 0.0
  %1042 = vmatprep.subr.mxu0 0.0
  %1043 = vmatpush1.msra.mxu0 0.0
  %1044 = vmatprep.subr.mxu0 0.0
  %1045 = vmatpush1.msra.mxu0 0.0
  %1046 = vmatprep.subr.mxu0 0.0
  %1047 = vmatpush1.msra.mxu0 0.0
  %1048 = vmatprep.subr.mxu0 0.0
  %1049 = vmatpush1.msra.mxu0 0.0
  %1050 = vmatprep.subr.mxu0 0.0
  %1051 = vmatpush1.msra.mxu0 0.0
  %1052 = vmatprep.subr.mxu0 0.0
  %1053 = vmatpush1.msra.mxu0 0.0
  %1054 = vmatprep.subr.mxu0 0.0
  %1055 = vmatpush1.msra.mxu0 0.0
  %1056 = vmatprep.subr.mxu0 0.0
  %1057 = vmatpush1.msra.mxu0 0.0
  %1058 = vmatprep.subr.mxu0 0.0
  %1059 = vmatpush1.msra.mxu0 0.0
  %1060 = vmatprep.subr.mxu0 0.0
  %1061 = vmatpush1.msra.mxu0 0.0
  %1062 = vmatprep.subr.mxu0 0.0
  %1063 = vmatpush1.msra.mxu0 0.0
  %1064 = vmatprep.subr.mxu0 0.0
  %1065 = vmatpush1.msra.mxu0 0.0
  %1066 = vmatprep.subr.mxu0 0.0
  %1067 = vmatpush1.msra.mxu0 0.0
  %1068 = vmatprep.subr.mxu0 0.0
  %1069 = vmatpush1.msra.mxu0 0.0
  %1070 = vmatprep.subr.mxu0 0.0
  %1071 = vmatpush1.msra.mxu0 0.0
  %1072 = vmatprep.subr.mxu0 0.0
  %1073 = vmatpush1.msra.mxu0 0.0
  %1074 = vmatprep.subr.mxu0 0.0
  %1075 = vmatpush1.msra.mxu0 0.0
  %1076 = vmatprep.mubr.f32.mxu0 0.0
  %1077 = vmatmul.mubr.f32.gmra.mrb[0].mxu0 %v940
  %v1078 = vpop.f32.mrb[0].mxu0
  %v1079 = vadd.f32 0.0, %v1078
  %v1080 = vpop.f32.mrb[0].mxu0
  %1081 = vdwg.mxu0
  %v1082 = vtanh.pop %v1009
  %v1083 = vmul.f32 %v1082, %v1082
  %v1084 = vsub.f32 1.0, %v1083
  %v1085 = vmul.f32 %v55, %v1084
  %v1086 = vmul.f32 %v213, %v1082
  %v1087 = vmul.f32 %v1086, %v1084
  %v1089 = vsel %vm216, %v1085, 0
  %1091 = vmatprep.subr.mxu0 0.0
  %1092 = vmatpush1.msra.mxu0 %v31
  %1093 = vmatprep.subr.mxu0 0.0
  %1094 = vmatpush1.msra.mxu0 %v32
  %1095 = vmatprep.subr.mxu0 0.0
  %1096 = vmatpush1.msra.mxu0 %v33
  %1097 = vmatprep.subr.mxu0 0.0
  %1098 = vmatpush1.msra.mxu0 %v34
  %1099 = vmatprep.subr.mxu0 0.0
  %1100 = vmatpush1.msra.mxu0 0.0
  %1101 = vmatprep.subr.mxu0 0.0
  %1102 = vmatpush1.msra.mxu0 0.0
  %1103 = vmatprep.subr.mxu0 0.0
  %1104 = vmatpush1.msra.mxu0 0.0
  %1105 = vmatprep.subr.mxu0 0.0
  %1106 = vmatpush1.msra.mxu0 0.0
  %1107 = vmatprep.subr.mxu0 0.0
  %1108 = vmatpush1.msra.mxu0 0.0
  %1109 = vmatprep.subr.mxu0 0.0
  %1110 = vmatpush1.msra.mxu0 0.0
  %1111 = vmatprep.subr.mxu0 0.0
  %1112 = vmatpush1.msra.mxu0 0.0
  %1113 = vmatprep.subr.mxu0 0.0
  %1114 = vmatpush1.msra.mxu0 0.0
  %1115 = vmatprep.subr.mxu0 0.0
  %1116 = vmatpush1.msra.mxu0 0.0
  %1117 = vmatprep.subr.mxu0 0.0
  %1118 = vmatpush1.msra.mxu0 0.0
  %1119 = vmatprep.subr.mxu0 0.0
  %1120 = vmatpush1.msra.mxu0 0.0
  %1121 = vmatprep.subr.mxu0 0.0
  %1122 = vmatpush1.msra.mxu0 0.0
  %1123 = vmatprep.subr.mxu0 0.0
  %1124 = vmatpush1.msra.mxu0 0.0
  %1125 = vmatprep.subr.mxu0 0.0
  %1126 = vmatpush1.msra.mxu0 0.0
  %1127 = vmatprep.subr.mxu0 0.0
  %1128 = vmatpush1.msra.mxu0 0.0
  %1129 = vmatprep.subr.mxu0 0.0
  %1130 = vmatpush1.msra.mxu0 0.0
  %1131 = vmatprep.subr.mxu0 0.0
  %1132 = vmatpush1.msra.mxu0 0.0
  %1133 = vmatprep.subr.mxu0 0.0
  %1134 = vmatpush1.msra.mxu0 0.0
  %1135 = vmatprep.subr.mxu0 0.0
  %1136 = vmatpush1.msra.mxu0 0.0
  %1137 = vmatprep.subr.mxu0 0.0
  %1138 = vmatpush1.msra.mxu0 0.0
  %1139 = vmatprep.subr.mxu0 0.0
  %1140 = vmatpush1.msra.mxu0 0.0
  %1141 = vmatprep.subr.mxu0 0.0
  %1142 = vmatpush1.msra.mxu0 0.0
  %1143 = vmatprep.subr.mxu0 0.0
  %1144 = vmatpush1.msra.mxu0 0.0
  %1145 = vmatprep.subr.mxu0 0.0
  %1146 = vmatpush1.msra.mxu0 0.0
  %1147 = vmatprep.subr.mxu0 0.0
  %1148 = vmatpush1.msra.mxu0 0.0
  %1149 = vmatprep.subr.mxu0 0.0
  %1150 = vmatpush1.msra.mxu0 0.0
  %1151 = vmatprep.subr.mxu0 0.0
  %1152 = vmatpush1.msra.mxu0 0.0
  %1153 = vmatprep.subr.mxu0 0.0
  %1154 = vmatpush1.msra.mxu0 0.0
  %1155 = vmatprep.mubr.f32.mxu0 0.0
  %1156 = vmatmul.mubr.f32.gmra.mrb[0].mxu0 %v1089
  %v1157 = vpop.f32.mrb[0].mxu0
  %v1158 = vadd.f32 0.0, %v1157
  %v1159 = vpop.f32.mrb[0].mxu0
  %1160 = vdwg.mxu0
  %v1161 = vmul.f32 %v1087, %v1079
  %v1163 = vsel %vm216, %v1161, 0
  %1165 = vmatprep.subr.mxu0 0.0
  %1166 = vmatpush1.msra.mxu0 %v35
  %1167 = vmatprep.subr.mxu0 0.0
  %1168 = vmatpush1.msra.mxu0 %v36
  %1169 = vmatprep.subr.mxu0 0.0
  %1170 = vmatpush1.msra.mxu0 %v37
  %1171 = vmatprep.subr.mxu0 0.0
  %1172 = vmatpush1.msra.mxu0 %v38
  %1173 = vmatprep.subr.mxu0 0.0
  %1174 = vmatpush1.msra.mxu0 0.0
  %1175 = vmatprep.subr.mxu0 0.0
  %1176 = vmatpush1.msra.mxu0 0.0
  %1177 = vmatprep.subr.mxu0 0.0
  %1178 = vmatpush1.msra.mxu0 0.0
  %1179 = vmatprep.subr.mxu0 0.0
  %1180 = vmatpush1.msra.mxu0 0.0
  %1181 = vmatprep.subr.mxu0 0.0
  %1182 = vmatpush1.msra.mxu0 0.0
  %1183 = vmatprep.subr.mxu0 0.0
  %1184 = vmatpush1.msra.mxu0 0.0
  %1185 = vmatprep.subr.mxu0 0.0
  %1186 = vmatpush1.msra.mxu0 0.0
  %1187 = vmatprep.subr.mxu0 0.0
  %1188 = vmatpush1.msra.mxu0 0.0
  %1189 = vmatprep.subr.mxu0 0.0
  %1190 = vmatpush1.msra.mxu0 0.0
  %1191 = vmatprep.subr.mxu0 0.0
  %1192 = vmatpush1.msra.mxu0 0.0
  %1193 = vmatprep.subr.mxu0 0.0
  %1194 = vmatpush1.msra.mxu0 0.0
  %1195 = vmatprep.subr.mxu0 0.0
  %1196 = vmatpush1.msra.mxu0 0.0
  %1197 = vmatprep.subr.mxu0 0.0
  %1198 = vmatpush1.msra.mxu0 0.0
  %1199 = vmatprep.subr.mxu0 0.0
  %1200 = vmatpush1.msra.mxu0 0.0
  %1201 = vmatprep.subr.mxu0 0.0
  %1202 = vmatpush1.msra.mxu0 0.0
  %1203 = vmatprep.subr.mxu0 0.0
  %1204 = vmatpush1.msra.mxu0 0.0
  %1205 = vmatprep.subr.mxu0 0.0
  %1206 = vmatpush1.msra.mxu0 0.0
  %1207 = vmatprep.subr.mxu0 0.0
  %1208 = vmatpush1.msra.mxu0 0.0
  %1209 = vmatprep.subr.mxu0 0.0
  %1210 = vmatpush1.msra.mxu0 0.0
  %1211 = vmatprep.subr.mxu0 0.0
  %1212 = vmatpush1.msra.mxu0 0.0
  %1213 = vmatprep.subr.mxu0 0.0
  %1214 = vmatpush1.msra.mxu0 0.0
  %1215 = vmatprep.subr.mxu0 0.0
  %1216 = vmatpush1.msra.mxu0 0.0
  %1217 = vmatprep.subr.mxu0 0.0
  %1218 = vmatpush1.msra.mxu0 0.0
  %1219 = vmatprep.subr.mxu0 0.0
  %1220 = vmatpush1.msra.mxu0 0.0
  %1221 = vmatprep.subr.mxu0 0.0
  %1222 = vmatpush1.msra.mxu0 0.0
  %1223 = vmatprep.subr.mxu0 0.0
  %1224 = vmatpush1.msra.mxu0 0.0
  %1225 = vmatprep.subr.mxu0 0.0
  %1226 = vmatpush1.msra.mxu0 0.0
  %1227 = vmatprep.subr.mxu0 0.0
  %1228 = vmatpush1.msra.mxu0 0.0
  %1229 = vmatprep.mubr.f32.mxu0 0.0
  %1230 = vmatmul.mubr.f32.gmra.mrb[0].mxu0 %v1163
  %v1231 = vpop.f32.mrb[0].mxu0
  %v1232 = vadd.f32 0.0, %v1231
  %v1233 = vpop.f32.mrb[0].mxu0
  %1234 = vdwg.mxu0
  %v1236 = vsel %vm216, %v1087, 0
  %1238 = vmatprep.subr.mxu0 0.0
  %1239 = vmatpush1.msra.mxu0 %v39
  %1240 = vmatprep.subr.mxu0 0.0
  %1241 = vmatpush1.msra.mxu0 %v40
  %1242 = vmatprep.subr.mxu0 0.0
  %1243 = vmatpush1.msra.mxu0 %v41
  %1244 = vmatprep.subr.mxu0 0.0
  %1245 = vmatpush1.msra.mxu0 %v42
  %1246 = vmatprep.subr.mxu0 0.0
  %1247 = vmatpush1.msra.mxu0 0.0
  %1248 = vmatprep.subr.mxu0 0.0
  %1249 = vmatpush1.msra.mxu0 0.0
  %1250 = vmatprep.subr.mxu0 0.0
  %1251 = vmatpush1.msra.mxu0 0.0
  %1252 = vmatprep.subr.mxu0 0.0
  %1253 = vmatpush1.msra.mxu0 0.0
  %1254 = vmatprep.subr.mxu0 0.0
  %1255 = vmatpush1.msra.mxu0 0.0
  %1256 = vmatprep.subr.mxu0 0.0
  %1257 = vmatpush1.msra.mxu0 0.0
  %1258 = vmatprep.subr.mxu0 0.0
  %1259 = vmatpush1.msra.mxu0 0.0
  %1260 = vmatprep.subr.mxu0 0.0
  %1261 = vmatpush1.msra.mxu0 0.0
  %1262 = vmatprep.subr.mxu0 0.0
  %1263 = vmatpush1.msra.mxu0 0.0
  %1264 = vmatprep.subr.mxu0 0.0
  %1265 = vmatpush1.msra.mxu0 0.0
  %1266 = vmatprep.subr.mxu0 0.0
  %1267 = vmatpush1.msra.mxu0 0.0
  %1268 = vmatprep.subr.mxu0 0.0
  %1269 = vmatpush1.msra.mxu0 0.0
  %1270 = vmatprep.subr.mxu0 0.0
  %1271 = vmatpush1.msra.mxu0 0.0
  %1272 = vmatprep.subr.mxu0 0.0
  %1273 = vmatpush1.msra.mxu0 0.0
  %1274 = vmatprep.subr.mxu0 0.0
  %1275 = vmatpush1.msra.mxu0 0.0
  %1276 = vmatprep.subr.mxu0 0.0
  %1277 = vmatpush1.msra.mxu0 0.0
  %1278 = vmatprep.subr.mxu0 0.0
  %1279 = vmatpush1.msra.mxu0 0.0
  %1280 = vmatprep.subr.mxu0 0.0
  %1281 = vmatpush1.msra.mxu0 0.0
  %1282 = vmatprep.subr.mxu0 0.0
  %1283 = vmatpush1.msra.mxu0 0.0
  %1284 = vmatprep.subr.mxu0 0.0
  %1285 = vmatpush1.msra.mxu0 0.0
  %1286 = vmatprep.subr.mxu0 0.0
  %1287 = vmatpush1.msra.mxu0 0.0
  %1288 = vmatprep.subr.mxu0 0.0
  %1289 = vmatpush1.msra.mxu0 0.0
  %1290 = vmatprep.subr.mxu0 0.0
  %1291 = vmatpush1.msra.mxu0 0.0
  %1292 = vmatprep.subr.mxu0 0.0
  %1293 = vmatpush1.msra.mxu0 0.0
  %1294 = vmatprep.subr.mxu0 0.0
  %1295 = vmatpush1.msra.mxu0 0.0
  %1296 = vmatprep.subr.mxu0 0.0
  %1297 = vmatpush1.msra.mxu0 0.0
  %1298 = vmatprep.subr.mxu0 0.0
  %1299 = vmatpush1.msra.mxu0 0.0
  %1300 = vmatprep.subr.mxu0 0.0
  %1301 = vmatpush1.msra.mxu0 0.0
  %1302 = vmatprep.mubr.f32.mxu0 0.0
  %1303 = vmatmul.mubr.f32.gmra.mrb[0].mxu0 %v1236
  %v1304 = vpop.f32.mrb[0].mxu0
  %v1305 = vadd.f32 0.0, %v1304
  %v1306 = vpop.f32.mrb[0].mxu0
  %1307 = vdwg.mxu0
  %v1308 = vadd.f32 %v1305, 1.0
  %v1309 = vsub.f32 %v1158, %v1232
  %1311 = vrot.lane.b32.xlu0 %v1308, 126
  %v1312 = vpop.permute.xlu0 %1311
  %v1314 = vmul.f32 %v1308, %v1312
  %v1315 = vmul.f32 %v1305, %v1305
  %1317 = vrot.lane.b32.xlu0 %v1315, 127
  %v1318 = vpop.permute.xlu0 %1317
  %v1320 = vsub.f32 %v1314, %v1318
  %v1321 = vrcp.pop %v1320
  %v1322 = vmul.f32 1.0, %v1321
  %1324 = vrot.lane.b32.xlu0 %v1309, 2
  %v1325 = vpop.permute.xlu0 %1324
  %v1327 = vmul.f32 %v1308, %v1325
  %v1328 = vmul.f32 %v1305, %v1309
  %1330 = vrot.lane.b32.xlu0 %v1328, 1
  %v1331 = vpop.permute.xlu0 %1330
  %v1333 = vsub.f32 %v1327, %v1331
  %1334 = vrot.lane.b32.xlu0 %v1309, 127
  %v1335 = vpop.permute.xlu0 %1334
  %v1337 = vmul.f32 %v1308, %v1335
  %1338 = vrot.lane.b32.xlu0 %v1309, 1
  %v1339 = vpop.permute.xlu0 %1338
  %v1341 = vmul.f32 %v1305, %v1339
  %1343 = vrot.lane.b32.xlu0 %v1341, 127
  %v1344 = vpop.permute.xlu0 %1343
  %v1346 = vsub.f32 %v1337, %v1344
  %1348 = vrot.lane.b32.xlu0 %v1333, 126
  %v1349 = vpop.permute.xlu0 %1348
  %1352 = vrot.lane.b32.xlu0 %v1346, 1
  %v1353 = vpop.permute.xlu0 %1352
  %v1355 = vsel %vm484, %v1349, %v1353
  %1357 = vset.pattern.permute.xlu0 0
  %1358 = vperm.xlu0 %1357, %v1322
  %v1359 = vpop.permute.xlu0 %1358
  %v1361 = vmul.f32 %v1355, %v1359
  %1362 = vrot.lane.b32.xlu0 %v936, 126
  %v1363 = vpop.permute.xlu0 %1362
  %1366 = vrot.lane.b32.xlu0 %v1361, 2
  %v1367 = vpop.permute.xlu0 %1366
  %v1369 = vsel %vm499, %v1363, %v1367
  %v1370 = vmul.f32 %v1369, 0.1
  %v1371 = vadd.f32 %v936, %v1370
  %s1372 = scalar_lea.vmem %s8, 16
  %1373 = vst.msk [vmem:[%s1372] sm:$0xff] %vm58, %v1371
  %v1375 = vsel %vm58, %v1371, 0
  %1377 = vmatprep.subr.mxu0 0.0
  %1378 = vmatpush1.msra.mxu0 %v64
  %1379 = vmatprep.subr.mxu0 0.0
  %1380 = vmatpush1.msra.mxu0 0.0
  %1381 = vmatprep.subr.mxu0 0.0
  %1382 = vmatpush1.msra.mxu0 0.0
  %1383 = vmatprep.subr.mxu0 0.0
  %1384 = vmatpush1.msra.mxu0 0.0
  %1385 = vmatprep.subr.mxu0 0.0
  %1386 = vmatpush1.msra.mxu0 0.0
  %1387 = vmatprep.subr.mxu0 0.0
  %1388 = vmatpush1.msra.mxu0 0.0
  %1389 = vmatprep.subr.mxu0 0.0
  %1390 = vmatpush1.msra.mxu0 0.0
  %1391 = vmatprep.subr.mxu0 0.0
  %1392 = vmatpush1.msra.mxu0 0.0
  %1393 = vmatprep.subr.mxu0 0.0
  %1394 = vmatpush1.msra.mxu0 0.0
  %1395 = vmatprep.subr.mxu0 0.0
  %1396 = vmatpush1.msra.mxu0 0.0
  %1397 = vmatprep.subr.mxu0 0.0
  %1398 = vmatpush1.msra.mxu0 0.0
  %1399 = vmatprep.subr.mxu0 0.0
  %1400 = vmatpush1.msra.mxu0 0.0
  %1401 = vmatprep.subr.mxu0 0.0
  %1402 = vmatpush1.msra.mxu0 0.0
  %1403 = vmatprep.subr.mxu0 0.0
  %1404 = vmatpush1.msra.mxu0 0.0
  %1405 = vmatprep.subr.mxu0 0.0
  %1406 = vmatpush1.msra.mxu0 0.0
  %1407 = vmatprep.subr.mxu0 0.0
  %1408 = vmatpush1.msra.mxu0 0.0
  %1409 = vmatprep.subr.mxu0 0.0
  %1410 = vmatpush1.msra.mxu0 0.0
  %1411 = vmatprep.subr.mxu0 0.0
  %1412 = vmatpush1.msra.mxu0 0.0
  %1413 = vmatprep.subr.mxu0 0.0
  %1414 = vmatpush1.msra.mxu0 0.0
  %1415 = vmatprep.subr.mxu0 0.0
  %1416 = vmatpush1.msra.mxu0 0.0
  %1417 = vmatprep.subr.mxu0 0.0
  %1418 = vmatpush1.msra.mxu0 0.0
  %1419 = vmatprep.subr.mxu0 0.0
  %1420 = vmatpush1.msra.mxu0 0.0
  %1421 = vmatprep.subr.mxu0 0.0
  %1422 = vmatpush1.msra.mxu0 0.0
  %1423 = vmatprep.subr.mxu0 0.0
  %1424 = vmatpush1.msra.mxu0 0.0
  %1425 = vmatprep.subr.mxu0 0.0
  %1426 = vmatpush1.msra.mxu0 0.0
  %1427 = vmatprep.subr.mxu0 0.0
  %1428 = vmatpush1.msra.mxu0 0.0
  %1429 = vmatprep.subr.mxu0 0.0
  %1430 = vmatpush1.msra.mxu0 0.0
  %1431 = vmatprep.subr.mxu0 0.0
  %1432 = vmatpush1.msra.mxu0 0.0
  %1433 = vmatprep.subr.mxu0 0.0
  %1434 = vmatpush1.msra.mxu0 0.0
  %1435 = vmatprep.subr.mxu0 0.0
  %1436 = vmatpush1.msra.mxu0 0.0
  %1437 = vmatprep.subr.mxu0 0.0
  %1438 = vmatpush1.msra.mxu0 0.0
  %1439 = vmatprep.subr.mxu0 0.0
  %1440 = vmatpush1.msra.mxu0 0.0
  %1441 = vmatprep.mubr.f32.mxu0 0.0
  %1442 = vmatmul.mubr.f32.gmra.mrb[0].mxu0 %v1375
  %v1443 = vpop.f32.mrb[0].mxu0
  %v1444 = vadd.f32 %v48, %v1443
  %v1445 = vpop.f32.mrb[0].mxu0
  %1446 = vdwg.mxu0
  %1447 = vmatprep.subr.mxu0 0.0
  %1448 = vmatpush1.msra.mxu0 %v137
  %1449 = vmatprep.subr.mxu0 0.0
  %1450 = vmatpush1.msra.mxu0 0.0
  %1451 = vmatprep.subr.mxu0 0.0
  %1452 = vmatpush1.msra.mxu0 0.0
  %1453 = vmatprep.subr.mxu0 0.0
  %1454 = vmatpush1.msra.mxu0 0.0
  %1455 = vmatprep.subr.mxu0 0.0
  %1456 = vmatpush1.msra.mxu0 0.0
  %1457 = vmatprep.subr.mxu0 0.0
  %1458 = vmatpush1.msra.mxu0 0.0
  %1459 = vmatprep.subr.mxu0 0.0
  %1460 = vmatpush1.msra.mxu0 0.0
  %1461 = vmatprep.subr.mxu0 0.0
  %1462 = vmatpush1.msra.mxu0 0.0
  %1463 = vmatprep.subr.mxu0 0.0
  %1464 = vmatpush1.msra.mxu0 0.0
  %1465 = vmatprep.subr.mxu0 0.0
  %1466 = vmatpush1.msra.mxu0 0.0
  %1467 = vmatprep.subr.mxu0 0.0
  %1468 = vmatpush1.msra.mxu0 0.0
  %1469 = vmatprep.subr.mxu0 0.0
  %1470 = vmatpush1.msra.mxu0 0.0
  %1471 = vmatprep.subr.mxu0 0.0
  %1472 = vmatpush1.msra.mxu0 0.0
  %1473 = vmatprep.subr.mxu0 0.0
  %1474 = vmatpush1.msra.mxu0 0.0
  %1475 = vmatprep.subr.mxu0 0.0
  %1476 = vmatpush1.msra.mxu0 0.0
  %1477 = vmatprep.subr.mxu0 0.0
  %1478 = vmatpush1.msra.mxu0 0.0
  %1479 = vmatprep.subr.mxu0 0.0
  %1480 = vmatpush1.msra.mxu0 0.0
  %1481 = vmatprep.subr.mxu0 0.0
  %1482 = vmatpush1.msra.mxu0 0.0
  %1483 = vmatprep.subr.mxu0 0.0
  %1484 = vmatpush1.msra.mxu0 0.0
  %1485 = vmatprep.subr.mxu0 0.0
  %1486 = vmatpush1.msra.mxu0 0.0
  %1487 = vmatprep.subr.mxu0 0.0
  %1488 = vmatpush1.msra.mxu0 0.0
  %1489 = vmatprep.subr.mxu0 0.0
  %1490 = vmatpush1.msra.mxu0 0.0
  %1491 = vmatprep.subr.mxu0 0.0
  %1492 = vmatpush1.msra.mxu0 0.0
  %1493 = vmatprep.subr.mxu0 0.0
  %1494 = vmatpush1.msra.mxu0 0.0
  %1495 = vmatprep.subr.mxu0 0.0
  %1496 = vmatpush1.msra.mxu0 0.0
  %1497 = vmatprep.subr.mxu0 0.0
  %1498 = vmatpush1.msra.mxu0 0.0
  %1499 = vmatprep.subr.mxu0 0.0
  %1500 = vmatpush1.msra.mxu0 0.0
  %1501 = vmatprep.subr.mxu0 0.0
  %1502 = vmatpush1.msra.mxu0 0.0
  %1503 = vmatprep.subr.mxu0 0.0
  %1504 = vmatpush1.msra.mxu0 0.0
  %1505 = vmatprep.subr.mxu0 0.0
  %1506 = vmatpush1.msra.mxu0 0.0
  %1507 = vmatprep.subr.mxu0 0.0
  %1508 = vmatpush1.msra.mxu0 0.0
  %1509 = vmatprep.subr.mxu0 0.0
  %1510 = vmatpush1.msra.mxu0 0.0
  %1511 = vmatprep.mubr.f32.mxu0 0.0
  %1512 = vmatmul.mubr.f32.gmra.mrb[0].mxu0 %v1375
  %v1513 = vpop.f32.mrb[0].mxu0
  %v1514 = vadd.f32 0.0, %v1513
  %v1515 = vpop.f32.mrb[0].mxu0
  %1516 = vdwg.mxu0
  %v1517 = vtanh.pop %v1444
  %v1518 = vmul.f32 %v1517, %v1517
  %v1519 = vsub.f32 1.0, %v1518
  %v1520 = vmul.f32 %v55, %v1519
  %v1521 = vmul.f32 %v213, %v1517
  %v1522 = vmul.f32 %v1521, %v1519
  %v1524 = vsel %vm216, %v1520, 0
  %1526 = vmatprep.subr.mxu0 0.0
  %1527 = vmatpush1.msra.mxu0 %v31
  %1528 = vmatprep.subr.mxu0 0.0
  %1529 = vmatpush1.msra.mxu0 %v32
  %1530 = vmatprep.subr.mxu0 0.0
  %1531 = vmatpush1.msra.mxu0 %v33
  %1532 = vmatprep.subr.mxu0 0.0
  %1533 = vmatpush1.msra.mxu0 %v34
  %1534 = vmatprep.subr.mxu0 0.0
  %1535 = vmatpush1.msra.mxu0 0.0
  %1536 = vmatprep.subr.mxu0 0.0
  %1537 = vmatpush1.msra.mxu0 0.0
  %1538 = vmatprep.subr.mxu0 0.0
  %1539 = vmatpush1.msra.mxu0 0.0
  %1540 = vmatprep.subr.mxu0 0.0
  %1541 = vmatpush1.msra.mxu0 0.0
  %1542 = vmatprep.subr.mxu0 0.0
  %1543 = vmatpush1.msra.mxu0 0.0
  %1544 = vmatprep.subr.mxu0 0.0
  %1545 = vmatpush1.msra.mxu0 0.0
  %1546 = vmatprep.subr.mxu0 0.0
  %1547 = vmatpush1.msra.mxu0 0.0
  %1548 = vmatprep.subr.mxu0 0.0
  %1549 = vmatpush1.msra.mxu0 0.0
  %1550 = vmatprep.subr.mxu0 0.0
  %1551 = vmatpush1.msra.mxu0 0.0
  %1552 = vmatprep.subr.mxu0 0.0
  %1553 = vmatpush1.msra.mxu0 0.0
  %1554 = vmatprep.subr.mxu0 0.0
  %1555 = vmatpush1.msra.mxu0 0.0
  %1556 = vmatprep.subr.mxu0 0.0
  %1557 = vmatpush1.msra.mxu0 0.0
  %1558 = vmatprep.subr.mxu0 0.0
  %1559 = vmatpush1.msra.mxu0 0.0
  %1560 = vmatprep.subr.mxu0 0.0
  %1561 = vmatpush1.msra.mxu0 0.0
  %1562 = vmatprep.subr.mxu0 0.0
  %1563 = vmatpush1.msra.mxu0 0.0
  %1564 = vmatprep.subr.mxu0 0.0
  %1565 = vmatpush1.msra.mxu0 0.0
  %1566 = vmatprep.subr.mxu0 0.0
  %1567 = vmatpush1.msra.mxu0 0.0
  %1568 = vmatprep.subr.mxu0 0.0
  %1569 = vmatpush1.msra.mxu0 0.0
  %1570 = vmatprep.subr.mxu0 0.0
  %1571 = vmatpush1.msra.mxu0 0.0
  %1572 = vmatprep.subr.mxu0 0.0
  %1573 = vmatpush1.msra.mxu0 0.0
  %1574 = vmatprep.subr.mxu0 0.0
  %1575 = vmatpush1.msra.mxu0 0.0
  %1576 = vmatprep.subr.mxu0 0.0
  %1577 = vmatpush1.msra.mxu0 0.0
  %1578 = vmatprep.subr.mxu0 0.0
  %1579 = vmatpush1.msra.mxu0 0.0
  %1580 = vmatprep.subr.mxu0 0.0
  %1581 = vmatpush1.msra.mxu0 0.0
  %1582 = vmatprep.subr.mxu0 0.0
  %1583 = vmatpush1.msra.mxu0 0.0
  %1584 = vmatprep.subr.mxu0 0.0
  %1585 = vmatpush1.msra.mxu0 0.0
  %1586 = vmatprep.subr.mxu0 0.0
  %1587 = vmatpush1.msra.mxu0 0.0
  %1588 = vmatprep.subr.mxu0 0.0
  %1589 = vmatpush1.msra.mxu0 0.0
  %1590 = vmatprep.mubr.f32.mxu0 0.0
  %1591 = vmatmul.mubr.f32.gmra.mrb[0].mxu0 %v1524
  %v1592 = vpop.f32.mrb[0].mxu0
  %v1593 = vadd.f32 0.0, %v1592
  %v1594 = vpop.f32.mrb[0].mxu0
  %1595 = vdwg.mxu0
  %v1596 = vmul.f32 %v1522, %v1514
  %v1598 = vsel %vm216, %v1596, 0
  %1600 = vmatprep.subr.mxu0 0.0
  %1601 = vmatpush1.msra.mxu0 %v35
  %1602 = vmatprep.subr.mxu0 0.0
  %1603 = vmatpush1.msra.mxu0 %v36
  %1604 = vmatprep.subr.mxu0 0.0
  %1605 = vmatpush1.msra.mxu0 %v37
  %1606 = vmatprep.subr.mxu0 0.0
  %1607 = vmatpush1.msra.mxu0 %v38
  %1608 = vmatprep.subr.mxu0 0.0
  %1609 = vmatpush1.msra.mxu0 0.0
  %1610 = vmatprep.subr.mxu0 0.0
  %1611 = vmatpush1.msra.mxu0 0.0
  %1612 = vmatprep.subr.mxu0 0.0
  %1613 = vmatpush1.msra.mxu0 0.0
  %1614 = vmatprep.subr.mxu0 0.0
  %1615 = vmatpush1.msra.mxu0 0.0
  %1616 = vmatprep.subr.mxu0 0.0
  %1617 = vmatpush1.msra.mxu0 0.0
  %1618 = vmatprep.subr.mxu0 0.0
  %1619 = vmatpush1.msra.mxu0 0.0
  %1620 = vmatprep.subr.mxu0 0.0
  %1621 = vmatpush1.msra.mxu0 0.0
  %1622 = vmatprep.subr.mxu0 0.0
  %1623 = vmatpush1.msra.mxu0 0.0
  %1624 = vmatprep.subr.mxu0 0.0
  %1625 = vmatpush1.msra.mxu0 0.0
  %1626 = vmatprep.subr.mxu0 0.0
  %1627 = vmatpush1.msra.mxu0 0.0
  %1628 = vmatprep.subr.mxu0 0.0
  %1629 = vmatpush1.msra.mxu0 0.0
  %1630 = vmatprep.subr.mxu0 0.0
  %1631 = vmatpush1.msra.mxu0 0.0
  %1632 = vmatprep.subr.mxu0 0.0
  %1633 = vmatpush1.msra.mxu0 0.0
  %1634 = vmatprep.subr.mxu0 0.0
  %1635 = vmatpush1.msra.mxu0 0.0
  %1636 = vmatprep.subr.mxu0 0.0
  %1637 = vmatpush1.msra.mxu0 0.0
  %1638 = vmatprep.subr.mxu0 0.0
  %1639 = vmatpush1.msra.mxu0 0.0
  %1640 = vmatprep.subr.mxu0 0.0
  %1641 = vmatpush1.msra.mxu0 0.0
  %1642 = vmatprep.subr.mxu0 0.0
  %1643 = vmatpush1.msra.mxu0 0.0
  %1644 = vmatprep.subr.mxu0 0.0
  %1645 = vmatpush1.msra.mxu0 0.0
  %1646 = vmatprep.subr.mxu0 0.0
  %1647 = vmatpush1.msra.mxu0 0.0
  %1648 = vmatprep.subr.mxu0 0.0
  %1649 = vmatpush1.msra.mxu0 0.0
  %1650 = vmatprep.subr.mxu0 0.0
  %1651 = vmatpush1.msra.mxu0 0.0
  %1652 = vmatprep.subr.mxu0 0.0
  %1653 = vmatpush1.msra.mxu0 0.0
  %1654 = vmatprep.subr.mxu0 0.0
  %1655 = vmatpush1.msra.mxu0 0.0
  %1656 = vmatprep.subr.mxu0 0.0
  %1657 = vmatpush1.msra.mxu0 0.0
  %1658 = vmatprep.subr.mxu0 0.0
  %1659 = vmatpush1.msra.mxu0 0.0
  %1660 = vmatprep.subr.mxu0 0.0
  %1661 = vmatpush1.msra.mxu0 0.0
  %1662 = vmatprep.subr.mxu0 0.0
  %1663 = vmatpush1.msra.mxu0 0.0
  %1664 = vmatprep.mubr.f32.mxu0 0.0
  %1665 = vmatmul.mubr.f32.gmra.mrb[0].mxu0 %v1598
  %v1666 = vpop.f32.mrb[0].mxu0
  %v1667 = vadd.f32 0.0, %v1666
  %v1668 = vpop.f32.mrb[0].mxu0
  %1669 = vdwg.mxu0
  %v1671 = vsel %vm216, %v1522, 0
  %1673 = vmatprep.subr.mxu0 0.0
  %1674 = vmatpush1.msra.mxu0 %v39
  %1675 = vmatprep.subr.mxu0 0.0
  %1676 = vmatpush1.msra.mxu0 %v40
  %1677 = vmatprep.subr.mxu0 0.0
  %1678 = vmatpush1.msra.mxu0 %v41
  %1679 = vmatprep.subr.mxu0 0.0
  %1680 = vmatpush1.msra.mxu0 %v42
  %1681 = vmatprep.subr.mxu0 0.0
  %1682 = vmatpush1.msra.mxu0 0.0
  %1683 = vmatprep.subr.mxu0 0.0
  %1684 = vmatpush1.msra.mxu0 0.0
  %1685 = vmatprep.subr.mxu0 0.0
  %1686 = vmatpush1.msra.mxu0 0.0
  %1687 = vmatprep.subr.mxu0 0.0
  %1688 = vmatpush1.msra.mxu0 0.0
  %1689 = vmatprep.subr.mxu0 0.0
  %1690 = vmatpush1.msra.mxu0 0.0
  %1691 = vmatprep.subr.mxu0 0.0
  %1692 = vmatpush1.msra.mxu0 0.0
  %1693 = vmatprep.subr.mxu0 0.0
  %1694 = vmatpush1.msra.mxu0 0.0
  %1695 = vmatprep.subr.mxu0 0.0
  %1696 = vmatpush1.msra.mxu0 0.0
  %1697 = vmatprep.subr.mxu0 0.0
  %1698 = vmatpush1.msra.mxu0 0.0
  %1699 = vmatprep.subr.mxu0 0.0
  %1700 = vmatpush1.msra.mxu0 0.0
  %1701 = vmatprep.subr.mxu0 0.0
  %1702 = vmatpush1.msra.mxu0 0.0
  %1703 = vmatprep.subr.mxu0 0.0
  %1704 = vmatpush1.msra.mxu0 0.0
  %1705 = vmatprep.subr.mxu0 0.0
  %1706 = vmatpush1.msra.mxu0 0.0
  %1707 = vmatprep.subr.mxu0 0.0
  %1708 = vmatpush1.msra.mxu0 0.0
  %1709 = vmatprep.subr.mxu0 0.0
  %1710 = vmatpush1.msra.mxu0 0.0
  %1711 = vmatprep.subr.mxu0 0.0
  %1712 = vmatpush1.msra.mxu0 0.0
  %1713 = vmatprep.subr.mxu0 0.0
  %1714 = vmatpush1.msra.mxu0 0.0
  %1715 = vmatprep.subr.mxu0 0.0
  %1716 = vmatpush1.msra.mxu0 0.0
  %1717 = vmatprep.subr.mxu0 0.0
  %1718 = vmatpush1.msra.mxu0 0.0
  %1719 = vmatprep.subr.mxu0 0.0
  %1720 = vmatpush1.msra.mxu0 0.0
  %1721 = vmatprep.subr.mxu0 0.0
  %1722 = vmatpush1.msra.mxu0 0.0
  %1723 = vmatprep.subr.mxu0 0.0
  %1724 = vmatpush1.msra.mxu0 0.0
  %1725 = vmatprep.subr.mxu0 0.0
  %1726 = vmatpush1.msra.mxu0 0.0
  %1727 = vmatprep.subr.mxu0 0.0
  %1728 = vmatpush1.msra.mxu0 0.0
  %1729 = vmatprep.subr.mxu0 0.0
  %1730 = vmatpush1.msra.mxu0 0.0
  %1731 = vmatprep.subr.mxu0 0.0
  %1732 = vmatpush1.msra.mxu0 0.0
  %1733 = vmatprep.subr.mxu0 0.0
  %1734 = vmatpush1.msra.mxu0 0.0
  %1735 = vmatprep.subr.mxu0 0.0
  %1736 = vmatpush1.msra.mxu0 0.0
  %1737 = vmatprep.mubr.f32.mxu0 0.0
  %1738 = vmatmul.mubr.f32.gmra.mrb[0].mxu0 %v1671
  %v1739 = vpop.f32.mrb[0].mxu0
  %v1740 = vadd.f32 0.0, %v1739
  %v1741 = vpop.f32.mrb[0].mxu0
  %1742 = vdwg.mxu0
  %v1743 = vadd.f32 %v1740, 1.0
  %v1744 = vsub.f32 %v1593, %v1667
  %1746 = vrot.lane.b32.xlu0 %v1743, 126
  %v1747 = vpop.permute.xlu0 %1746
  %v1749 = vmul.f32 %v1743, %v1747
  %v1750 = vmul.f32 %v1740, %v1740
  %1752 = vrot.lane.b32.xlu0 %v1750, 127
  %v1753 = vpop.permute.xlu0 %1752
  %v1755 = vsub.f32 %v1749, %v1753
  %v1756 = vrcp.pop %v1755
  %v1757 = vmul.f32 1.0, %v1756
  %1759 = vrot.lane.b32.xlu0 %v1744, 2
  %v1760 = vpop.permute.xlu0 %1759
  %v1762 = vmul.f32 %v1743, %v1760
  %v1763 = vmul.f32 %v1740, %v1744
  %1765 = vrot.lane.b32.xlu0 %v1763, 1
  %v1766 = vpop.permute.xlu0 %1765
  %v1768 = vsub.f32 %v1762, %v1766
  %1769 = vrot.lane.b32.xlu0 %v1744, 127
  %v1770 = vpop.permute.xlu0 %1769
  %v1772 = vmul.f32 %v1743, %v1770
  %1773 = vrot.lane.b32.xlu0 %v1744, 1
  %v1774 = vpop.permute.xlu0 %1773
  %v1776 = vmul.f32 %v1740, %v1774
  %1778 = vrot.lane.b32.xlu0 %v1776, 127
  %v1779 = vpop.permute.xlu0 %1778
  %v1781 = vsub.f32 %v1772, %v1779
  %1783 = vrot.lane.b32.xlu0 %v1768, 126
  %v1784 = vpop.permute.xlu0 %1783
  %1787 = vrot.lane.b32.xlu0 %v1781, 1
  %v1788 = vpop.permute.xlu0 %1787
  %v1790 = vsel %vm484, %v1784, %v1788
  %1792 = vset.pattern.permute.xlu0 0
  %1793 = vperm.xlu0 %1792, %v1757
  %v1794 = vpop.permute.xlu0 %1793
  %v1796 = vmul.f32 %v1790, %v1794
  %1797 = vrot.lane.b32.xlu0 %v1371, 126
  %v1798 = vpop.permute.xlu0 %1797
  %1801 = vrot.lane.b32.xlu0 %v1796, 2
  %v1802 = vpop.permute.xlu0 %1801
  %v1804 = vsel %vm499, %v1798, %v1802
  %v1805 = vmul.f32 %v1804, 0.1
  %v1806 = vadd.f32 %v1371, %v1805
  %s1807 = scalar_lea.vmem %s8, 24
  %1808 = vst.msk [vmem:[%s1807] sm:$0xff] %vm58, %v1806
  %v1810 = vsel %vm58, %v1806, 0
  %1812 = vmatprep.subr.mxu0 0.0
  %1813 = vmatpush1.msra.mxu0 %v64
  %1814 = vmatprep.subr.mxu0 0.0
  %1815 = vmatpush1.msra.mxu0 0.0
  %1816 = vmatprep.subr.mxu0 0.0
  %1817 = vmatpush1.msra.mxu0 0.0
  %1818 = vmatprep.subr.mxu0 0.0
  %1819 = vmatpush1.msra.mxu0 0.0
  %1820 = vmatprep.subr.mxu0 0.0
  %1821 = vmatpush1.msra.mxu0 0.0
  %1822 = vmatprep.subr.mxu0 0.0
  %1823 = vmatpush1.msra.mxu0 0.0
  %1824 = vmatprep.subr.mxu0 0.0
  %1825 = vmatpush1.msra.mxu0 0.0
  %1826 = vmatprep.subr.mxu0 0.0
  %1827 = vmatpush1.msra.mxu0 0.0
  %1828 = vmatprep.subr.mxu0 0.0
  %1829 = vmatpush1.msra.mxu0 0.0
  %1830 = vmatprep.subr.mxu0 0.0
  %1831 = vmatpush1.msra.mxu0 0.0
  %1832 = vmatprep.subr.mxu0 0.0
  %1833 = vmatpush1.msra.mxu0 0.0
  %1834 = vmatprep.subr.mxu0 0.0
  %1835 = vmatpush1.msra.mxu0 0.0
  %1836 = vmatprep.subr.mxu0 0.0
  %1837 = vmatpush1.msra.mxu0 0.0
  %1838 = vmatprep.subr.mxu0 0.0
  %1839 = vmatpush1.msra.mxu0 0.0
  %1840 = vmatprep.subr.mxu0 0.0
  %1841 = vmatpush1.msra.mxu0 0.0
  %1842 = vmatprep.subr.mxu0 0.0
  %1843 = vmatpush1.msra.mxu0 0.0
  %1844 = vmatprep.subr.mxu0 0.0
  %1845 = vmatpush1.msra.mxu0 0.0
  %1846 = vmatprep.subr.mxu0 0.0
  %1847 = vmatpush1.msra.mxu0 0.0
  %1848 = vmatprep.subr.mxu0 0.0
  %1849 = vmatpush1.msra.mxu0 0.0
  %1850 = vmatprep.subr.mxu0 0.0
  %1851 = vmatpush1.msra.mxu0 0.0
  %1852 = vmatprep.subr.mxu0 0.0
  %1853 = vmatpush1.msra.mxu0 0.0
  %1854 = vmatprep.subr.mxu0 0.0
  %1855 = vmatpush1.msra.mxu0 0.0
  %1856 = vmatprep.subr.mxu0 0.0
  %1857 = vmatpush1.msra.mxu0 0.0
  %1858 = vmatprep.subr.mxu0 0.0
  %1859 = vmatpush1.msra.mxu0 0.0
  %1860 = vmatprep.subr.mxu0 0.0
  %1861 = vmatpush1.msra.mxu0 0.0
  %1862 = vmatprep.subr.mxu0 0.0
  %1863 = vmatpush1.msra.mxu0 0.0
  %1864 = vmatprep.subr.mxu0 0.0
  %1865 = vmatpush1.msra.mxu0 0.0
  %1866 = vmatprep.subr.mxu0 0.0
  %1867 = vmatpush1.msra.mxu0 0.0
  %1868 = vmatprep.subr.mxu0 0.0
  %1869 = vmatpush1.msra.mxu0 0.0
  %1870 = vmatprep.subr.mxu0 0.0
  %1871 = vmatpush1.msra.mxu0 0.0
  %1872 = vmatprep.subr.mxu0 0.0
  %1873 = vmatpush1.msra.mxu0 0.0
  %1874 = vmatprep.subr.mxu0 0.0
  %1875 = vmatpush1.msra.mxu0 0.0
  %1876 = vmatprep.mubr.f32.mxu0 0.0
  %1877 = vmatmul.mubr.f32.gmra.mrb[0].mxu0 %v1810
  %v1878 = vpop.f32.mrb[0].mxu0
  %v1879 = vadd.f32 %v48, %v1878
  %v1880 = vpop.f32.mrb[0].mxu0
  %1881 = vdwg.mxu0
  %1882 = vmatprep.subr.mxu0 0.0
  %1883 = vmatpush1.msra.mxu0 %v137
  %1884 = vmatprep.subr.mxu0 0.0
  %1885 = vmatpush1.msra.mxu0 0.0
  %1886 = vmatprep.subr.mxu0 0.0
  %1887 = vmatpush1.msra.mxu0 0.0
  %1888 = vmatprep.subr.mxu0 0.0
  %1889 = vmatpush1.msra.mxu0 0.0
  %1890 = vmatprep.subr.mxu0 0.0
  %1891 = vmatpush1.msra.mxu0 0.0
  %1892 = vmatprep.subr.mxu0 0.0
  %1893 = vmatpush1.msra.mxu0 0.0
  %1894 = vmatprep.subr.mxu0 0.0
  %1895 = vmatpush1.msra.mxu0 0.0
  %1896 = vmatprep.subr.mxu0 0.0
  %1897 = vmatpush1.msra.mxu0 0.0
  %1898 = vmatprep.subr.mxu0 0.0
  %1899 = vmatpush1.msra.mxu0 0.0
  %1900 = vmatprep.subr.mxu0 0.0
  %1901 = vmatpush1.msra.mxu0 0.0
  %1902 = vmatprep.subr.mxu0 0.0
  %1903 = vmatpush1.msra.mxu0 0.0
  %1904 = vmatprep.subr.mxu0 0.0
  %1905 = vmatpush1.msra.mxu0 0.0
  %1906 = vmatprep.subr.mxu0 0.0
  %1907 = vmatpush1.msra.mxu0 0.0
  %1908 = vmatprep.subr.mxu0 0.0
  %1909 = vmatpush1.msra.mxu0 0.0
  %1910 = vmatprep.subr.mxu0 0.0
  %1911 = vmatpush1.msra.mxu0 0.0
  %1912 = vmatprep.subr.mxu0 0.0
  %1913 = vmatpush1.msra.mxu0 0.0
  %1914 = vmatprep.subr.mxu0 0.0
  %1915 = vmatpush1.msra.mxu0 0.0
  %1916 = vmatprep.subr.mxu0 0.0
  %1917 = vmatpush1.msra.mxu0 0.0
  %1918 = vmatprep.subr.mxu0 0.0
  %1919 = vmatpush1.msra.mxu0 0.0
  %1920 = vmatprep.subr.mxu0 0.0
  %1921 = vmatpush1.msra.mxu0 0.0
  %1922 = vmatprep.subr.mxu0 0.0
  %1923 = vmatpush1.msra.mxu0 0.0
  %1924 = vmatprep.subr.mxu0 0.0
  %1925 = vmatpush1.msra.mxu0 0.0
  %1926 = vmatprep.subr.mxu0 0.0
  %1927 = vmatpush1.msra.mxu0 0.0
  %1928 = vmatprep.subr.mxu0 0.0
  %1929 = vmatpush1.msra.mxu0 0.0
  %1930 = vmatprep.subr.mxu0 0.0
  %1931 = vmatpush1.msra.mxu0 0.0
  %1932 = vmatprep.subr.mxu0 0.0
  %1933 = vmatpush1.msra.mxu0 0.0
  %1934 = vmatprep.subr.mxu0 0.0
  %1935 = vmatpush1.msra.mxu0 0.0
  %1936 = vmatprep.subr.mxu0 0.0
  %1937 = vmatpush1.msra.mxu0 0.0
  %1938 = vmatprep.subr.mxu0 0.0
  %1939 = vmatpush1.msra.mxu0 0.0
  %1940 = vmatprep.subr.mxu0 0.0
  %1941 = vmatpush1.msra.mxu0 0.0
  %1942 = vmatprep.subr.mxu0 0.0
  %1943 = vmatpush1.msra.mxu0 0.0
  %1944 = vmatprep.subr.mxu0 0.0
  %1945 = vmatpush1.msra.mxu0 0.0
  %1946 = vmatprep.mubr.f32.mxu0 0.0
  %1947 = vmatmul.mubr.f32.gmra.mrb[0].mxu0 %v1810
  %v1948 = vpop.f32.mrb[0].mxu0
  %v1949 = vadd.f32 0.0, %v1948
  %v1950 = vpop.f32.mrb[0].mxu0
  %1951 = vdwg.mxu0
  %v1952 = vtanh.pop %v1879
  %v1953 = vmul.f32 %v1952, %v1952
  %v1954 = vsub.f32 1.0, %v1953
  %v1955 = vmul.f32 %v55, %v1954
  %v1956 = vmul.f32 %v213, %v1952
  %v1957 = vmul.f32 %v1956, %v1954
  %v1959 = vsel %vm216, %v1955, 0
  %1961 = vmatprep.subr.mxu0 0.0
  %1962 = vmatpush1.msra.mxu0 %v31
  %1963 = vmatprep.subr.mxu0 0.0
  %1964 = vmatpush1.msra.mxu0 %v32
  %1965 = vmatprep.subr.mxu0 0.0
  %1966 = vmatpush1.msra.mxu0 %v33
  %1967 = vmatprep.subr.mxu0 0.0
  %1968 = vmatpush1.msra.mxu0 %v34
  %1969 = vmatprep.subr.mxu0 0.0
  %1970 = vmatpush1.msra.mxu0 0.0
  %1971 = vmatprep.subr.mxu0 0.0
  %1972 = vmatpush1.msra.mxu0 0.0
  %1973 = vmatprep.subr.mxu0 0.0
  %1974 = vmatpush1.msra.mxu0 0.0
  %1975 = vmatprep.subr.mxu0 0.0
  %1976 = vmatpush1.msra.mxu0 0.0
  %1977 = vmatprep.subr.mxu0 0.0
  %1978 = vmatpush1.msra.mxu0 0.0
  %1979 = vmatprep.subr.mxu0 0.0
  %1980 = vmatpush1.msra.mxu0 0.0
  %1981 = vmatprep.subr.mxu0 0.0
  %1982 = vmatpush1.msra.mxu0 0.0
  %1983 = vmatprep.subr.mxu0 0.0
  %1984 = vmatpush1.msra.mxu0 0.0
  %1985 = vmatprep.subr.mxu0 0.0
  %1986 = vmatpush1.msra.mxu0 0.0
  %1987 = vmatprep.subr.mxu0 0.0
  %1988 = vmatpush1.msra.mxu0 0.0
  %1989 = vmatprep.subr.mxu0 0.0
  %1990 = vmatpush1.msra.mxu0 0.0
  %1991 = vmatprep.subr.mxu0 0.0
  %1992 = vmatpush1.msra.mxu0 0.0
  %1993 = vmatprep.subr.mxu0 0.0
  %1994 = vmatpush1.msra.mxu0 0.0
  %1995 = vmatprep.subr.mxu0 0.0
  %1996 = vmatpush1.msra.mxu0 0.0
  %1997 = vmatprep.subr.mxu0 0.0
  %1998 = vmatpush1.msra.mxu0 0.0
  %1999 = vmatprep.subr.mxu0 0.0
  %2000 = vmatpush1.msra.mxu0 0.0
  %2001 = vmatprep.subr.mxu0 0.0
  %2002 = vmatpush1.msra.mxu0 0.0
  %2003 = vmatprep.subr.mxu0 0.0
  %2004 = vmatpush1.msra.mxu0 0.0
  %2005 = vmatprep.subr.mxu0 0.0
  %2006 = vmatpush1.msra.mxu0 0.0
  %2007 = vmatprep.subr.mxu0 0.0
  %2008 = vmatpush1.msra.mxu0 0.0
  %2009 = vmatprep.subr.mxu0 0.0
  %2010 = vmatpush1.msra.mxu0 0.0
  %2011 = vmatprep.subr.mxu0 0.0
  %2012 = vmatpush1.msra.mxu0 0.0
  %2013 = vmatprep.subr.mxu0 0.0
  %2014 = vmatpush1.msra.mxu0 0.0
  %2015 = vmatprep.subr.mxu0 0.0
  %2016 = vmatpush1.msra.mxu0 0.0
  %2017 = vmatprep.subr.mxu0 0.0
  %2018 = vmatpush1.msra.mxu0 0.0
  %2019 = vmatprep.subr.mxu0 0.0
  %2020 = vmatpush1.msra.mxu0 0.0
  %2021 = vmatprep.subr.mxu0 0.0
  %2022 = vmatpush1.msra.mxu0 0.0
  %2023 = vmatprep.subr.mxu0 0.0
  %2024 = vmatpush1.msra.mxu0 0.0
  %2025 = vmatprep.mubr.f32.mxu0 0.0
  %2026 = vmatmul.mubr.f32.gmra.mrb[0].mxu0 %v1959
  %v2027 = vpop.f32.mrb[0].mxu0
  %v2028 = vadd.f32 0.0, %v2027
  %v2029 = vpop.f32.mrb[0].mxu0
  %2030 = vdwg.mxu0
  %v2031 = vmul.f32 %v1957, %v1949
  %v2033 = vsel %vm216, %v2031, 0
  %2035 = vmatprep.subr.mxu0 0.0
  %2036 = vmatpush1.msra.mxu0 %v35
  %2037 = vmatprep.subr.mxu0 0.0
  %2038 = vmatpush1.msra.mxu0 %v36
  %2039 = vmatprep.subr.mxu0 0.0
  %2040 = vmatpush1.msra.mxu0 %v37
  %2041 = vmatprep.subr.mxu0 0.0
  %2042 = vmatpush1.msra.mxu0 %v38
  %2043 = vmatprep.subr.mxu0 0.0
  %2044 = vmatpush1.msra.mxu0 0.0
  %2045 = vmatprep.subr.mxu0 0.0
  %2046 = vmatpush1.msra.mxu0 0.0
  %2047 = vmatprep.subr.mxu0 0.0
  %2048 = vmatpush1.msra.mxu0 0.0
  %2049 = vmatprep.subr.mxu0 0.0
  %2050 = vmatpush1.msra.mxu0 0.0
  %2051 = vmatprep.subr.mxu0 0.0
  %2052 = vmatpush1.msra.mxu0 0.0
  %2053 = vmatprep.subr.mxu0 0.0
  %2054 = vmatpush1.msra.mxu0 0.0
  %2055 = vmatprep.subr.mxu0 0.0
  %2056 = vmatpush1.msra.mxu0 0.0
  %2057 = vmatprep.subr.mxu0 0.0
  %2058 = vmatpush1.msra.mxu0 0.0
  %2059 = vmatprep.subr.mxu0 0.0
  %2060 = vmatpush1.msra.mxu0 0.0
  %2061 = vmatprep.subr.mxu0 0.0
  %2062 = vmatpush1.msra.mxu0 0.0
  %2063 = vmatprep.subr.mxu0 0.0
  %2064 = vmatpush1.msra.mxu0 0.0
  %2065 = vmatprep.subr.mxu0 0.0
  %2066 = vmatpush1.msra.mxu0 0.0
  %2067 = vmatprep.subr.mxu0 0.0
  %2068 = vmatpush1.msra.mxu0 0.0
  %2069 = vmatprep.subr.mxu0 0.0
  %2070 = vmatpush1.msra.mxu0 0.0
  %2071 = vmatprep.subr.mxu0 0.0
  %2072 = vmatpush1.msra.mxu0 0.0
  %2073 = vmatprep.subr.mxu0 0.0
  %2074 = vmatpush1.msra.mxu0 0.0
  %2075 = vmatprep.subr.mxu0 0.0
  %2076 = vmatpush1.msra.mxu0 0.0
  %2077 = vmatprep.subr.mxu0 0.0
  %2078 = vmatpush1.msra.mxu0 0.0
  %2079 = vmatprep.subr.mxu0 0.0
  %2080 = vmatpush1.msra.mxu0 0.0
  %2081 = vmatprep.subr.mxu0 0.0
  %2082 = vmatpush1.msra.mxu0 0.0
  %2083 = vmatprep.subr.mxu0 0.0
  %2084 = vmatpush1.msra.mxu0 0.0
  %2085 = vmatprep.subr.mxu0 0.0
  %2086 = vmatpush1.msra.mxu0 0.0
  %2087 = vmatprep.subr.mxu0 0.0
  %2088 = vmatpush1.msra.mxu0 0.0
  %2089 = vmatprep.subr.mxu0 0.0
  %2090 = vmatpush1.msra.mxu0 0.0
  %2091 = vmatprep.subr.mxu0 0.0
  %2092 = vmatpush1.msra.mxu0 0.0
  %2093 = vmatprep.subr.mxu0 0.0
  %2094 = vmatpush1.msra.mxu0 0.0
  %2095 = vmatprep.subr.mxu0 0.0
  %2096 = vmatpush1.msra.mxu0 0.0
  %2097 = vmatprep.subr.mxu0 0.0
  %2098 = vmatpush1.msra.mxu0 0.0
  %2099 = vmatprep.mubr.f32.mxu0 0.0
  %2100 = vmatmul.mubr.f32.gmra.mrb[0].mxu0 %v2033
  %v2101 = vpop.f32.mrb[0].mxu0
  %v2102 = vadd.f32 0.0, %v2101
  %v2103 = vpop.f32.mrb[0].mxu0
  %2104 = vdwg.mxu0
  %v2106 = vsel %vm216, %v1957, 0
  %2108 = vmatprep.subr.mxu0 0.0
  %2109 = vmatpush1.msra.mxu0 %v39
  %2110 = vmatprep.subr.mxu0 0.0
  %2111 = vmatpush1.msra.mxu0 %v40
  %2112 = vmatprep.subr.mxu0 0.0
  %2113 = vmatpush1.msra.mxu0 %v41
  %2114 = vmatprep.subr.mxu0 0.0
  %2115 = vmatpush1.msra.mxu0 %v42
  %2116 = vmatprep.subr.mxu0 0.0
  %2117 = vmatpush1.msra.mxu0 0.0
  %2118 = vmatprep.subr.mxu0 0.0
  %2119 = vmatpush1.msra.mxu0 0.0
  %2120 = vmatprep.subr.mxu0 0.0
  %2121 = vmatpush1.msra.mxu0 0.0
  %2122 = vmatprep.subr.mxu0 0.0
  %2123 = vmatpush1.msra.mxu0 0.0
  %2124 = vmatprep.subr.mxu0 0.0
  %2125 = vmatpush1.msra.mxu0 0.0
  %2126 = vmatprep.subr.mxu0 0.0
  %2127 = vmatpush1.msra.mxu0 0.0
  %2128 = vmatprep.subr.mxu0 0.0
  %2129 = vmatpush1.msra.mxu0 0.0
  %2130 = vmatprep.subr.mxu0 0.0
  %2131 = vmatpush1.msra.mxu0 0.0
  %2132 = vmatprep.subr.mxu0 0.0
  %2133 = vmatpush1.msra.mxu0 0.0
  %2134 = vmatprep.subr.mxu0 0.0
  %2135 = vmatpush1.msra.mxu0 0.0
  %2136 = vmatprep.subr.mxu0 0.0
  %2137 = vmatpush1.msra.mxu0 0.0
  %2138 = vmatprep.subr.mxu0 0.0
  %2139 = vmatpush1.msra.mxu0 0.0
  %2140 = vmatprep.subr.mxu0 0.0
  %2141 = vmatpush1.msra.mxu0 0.0
  %2142 = vmatprep.subr.mxu0 0.0
  %2143 = vmatpush1.msra.mxu0 0.0
  %2144 = vmatprep.subr.mxu0 0.0
  %2145 = vmatpush1.msra.mxu0 0.0
  %2146 = vmatprep.subr.mxu0 0.0
  %2147 = vmatpush1.msra.mxu0 0.0
  %2148 = vmatprep.subr.mxu0 0.0
  %2149 = vmatpush1.msra.mxu0 0.0
  %2150 = vmatprep.subr.mxu0 0.0
  %2151 = vmatpush1.msra.mxu0 0.0
  %2152 = vmatprep.subr.mxu0 0.0
  %2153 = vmatpush1.msra.mxu0 0.0
  %2154 = vmatprep.subr.mxu0 0.0
  %2155 = vmatpush1.msra.mxu0 0.0
  %2156 = vmatprep.subr.mxu0 0.0
  %2157 = vmatpush1.msra.mxu0 0.0
  %2158 = vmatprep.subr.mxu0 0.0
  %2159 = vmatpush1.msra.mxu0 0.0
  %2160 = vmatprep.subr.mxu0 0.0
  %2161 = vmatpush1.msra.mxu0 0.0
  %2162 = vmatprep.subr.mxu0 0.0
  %2163 = vmatpush1.msra.mxu0 0.0
  %2164 = vmatprep.subr.mxu0 0.0
  %2165 = vmatpush1.msra.mxu0 0.0
  %2166 = vmatprep.subr.mxu0 0.0
  %2167 = vmatpush1.msra.mxu0 0.0
  %2168 = vmatprep.subr.mxu0 0.0
  %2169 = vmatpush1.msra.mxu0 0.0
  %2170 = vmatprep.subr.mxu0 0.0
  %2171 = vmatpush1.msra.mxu0 0.0
  %2172 = vmatprep.mubr.f32.mxu0 0.0
  %2173 = vmatmul.mubr.f32.gmra.mrb[0].mxu0 %v2106
  %v2174 = vpop.f32.mrb[0].mxu0
  %v2175 = vadd.f32 0.0, %v2174
  %v2176 = vpop.f32.mrb[0].mxu0
  %2177 = vdwg.mxu0
  %v2178 = vadd.f32 %v2175, 1.0
  %v2179 = vsub.f32 %v2028, %v2102
  %2181 = vrot.lane.b32.xlu0 %v2178, 126
  %v2182 = vpop.permute.xlu0 %2181
  %v2184 = vmul.f32 %v2178, %v2182
  %v2185 = vmul.f32 %v2175, %v2175
  %2187 = vrot.lane.b32.xlu0 %v2185, 127
  %v2188 = vpop.permute.xlu0 %2187
  %v2190 = vsub.f32 %v2184, %v2188
  %v2191 = vrcp.pop %v2190
  %v2192 = vmul.f32 1.0, %v2191
  %2194 = vrot.lane.b32.xlu0 %v2179, 2
  %v2195 = vpop.permute.xlu0 %2194
  %v2197 = vmul.f32 %v2178, %v2195
  %v2198 = vmul.f32 %v2175, %v2179
  %2200 = vrot.lane.b32.xlu0 %v2198, 1
  %v2201 = vpop.permute.xlu0 %2200
  %v2203 = vsub.f32 %v2197, %v2201
  %2204 = vrot.lane.b32.xlu0 %v2179, 127
  %v2205 = vpop.permute.xlu0 %2204
  %v2207 = vmul.f32 %v2178, %v2205
  %2208 = vrot.lane.b32.xlu0 %v2179, 1
  %v2209 = vpop.permute.xlu0 %2208
  %v2211 = vmul.f32 %v2175, %v2209
  %2213 = vrot.lane.b32.xlu0 %v2211, 127
  %v2214 = vpop.permute.xlu0 %2213
  %v2216 = vsub.f32 %v2207, %v2214
  %2218 = vrot.lane.b32.xlu0 %v2203, 126
  %v2219 = vpop.permute.xlu0 %2218
  %2222 = vrot.lane.b32.xlu0 %v2216, 1
  %v2223 = vpop.permute.xlu0 %2222
  %v2225 = vsel %vm484, %v2219, %v2223
  %2227 = vset.pattern.permute.xlu0 0
  %2228 = vperm.xlu0 %2227, %v2192
  %v2229 = vpop.permute.xlu0 %2228
  %v2231 = vmul.f32 %v2225, %v2229
  %2232 = vrot.lane.b32.xlu0 %v1806, 126
  %v2233 = vpop.permute.xlu0 %2232
  %2236 = vrot.lane.b32.xlu0 %v2231, 2
  %v2237 = vpop.permute.xlu0 %2236
  %v2239 = vsel %vm499, %v2233, %v2237
  %v2240 = vmul.f32 %v2239, 0.1
  %v2241 = vadd.f32 %v1806, %v2240
  %s2242 = scalar_lea.vmem %s8, 32
  %2243 = vst.msk [vmem:[%s2242] sm:$0xff] %vm58, %v2241
  %v2245 = vsel %vm58, %v2241, 0
  %2247 = vmatprep.subr.mxu0 0.0
  %2248 = vmatpush1.msra.mxu0 %v64
  %2249 = vmatprep.subr.mxu0 0.0
  %2250 = vmatpush1.msra.mxu0 0.0
  %2251 = vmatprep.subr.mxu0 0.0
  %2252 = vmatpush1.msra.mxu0 0.0
  %2253 = vmatprep.subr.mxu0 0.0
  %2254 = vmatpush1.msra.mxu0 0.0
  %2255 = vmatprep.subr.mxu0 0.0
  %2256 = vmatpush1.msra.mxu0 0.0
  %2257 = vmatprep.subr.mxu0 0.0
  %2258 = vmatpush1.msra.mxu0 0.0
  %2259 = vmatprep.subr.mxu0 0.0
  %2260 = vmatpush1.msra.mxu0 0.0
  %2261 = vmatprep.subr.mxu0 0.0
  %2262 = vmatpush1.msra.mxu0 0.0
  %2263 = vmatprep.subr.mxu0 0.0
  %2264 = vmatpush1.msra.mxu0 0.0
  %2265 = vmatprep.subr.mxu0 0.0
  %2266 = vmatpush1.msra.mxu0 0.0
  %2267 = vmatprep.subr.mxu0 0.0
  %2268 = vmatpush1.msra.mxu0 0.0
  %2269 = vmatprep.subr.mxu0 0.0
  %2270 = vmatpush1.msra.mxu0 0.0
  %2271 = vmatprep.subr.mxu0 0.0
  %2272 = vmatpush1.msra.mxu0 0.0
  %2273 = vmatprep.subr.mxu0 0.0
  %2274 = vmatpush1.msra.mxu0 0.0
  %2275 = vmatprep.subr.mxu0 0.0
  %2276 = vmatpush1.msra.mxu0 0.0
  %2277 = vmatprep.subr.mxu0 0.0
  %2278 = vmatpush1.msra.mxu0 0.0
  %2279 = vmatprep.subr.mxu0 0.0
  %2280 = vmatpush1.msra.mxu0 0.0
  %2281 = vmatprep.subr.mxu0 0.0
  %2282 = vmatpush1.msra.mxu0 0.0
  %2283 = vmatprep.subr.mxu0 0.0
  %2284 = vmatpush1.msra.mxu0 0.0
  %2285 = vmatprep.subr.mxu0 0.0
  %2286 = vmatpush1.msra.mxu0 0.0
  %2287 = vmatprep.subr.mxu0 0.0
  %2288 = vmatpush1.msra.mxu0 0.0
  %2289 = vmatprep.subr.mxu0 0.0
  %2290 = vmatpush1.msra.mxu0 0.0
  %2291 = vmatprep.subr.mxu0 0.0
  %2292 = vmatpush1.msra.mxu0 0.0
  %2293 = vmatprep.subr.mxu0 0.0
  %2294 = vmatpush1.msra.mxu0 0.0
  %2295 = vmatprep.subr.mxu0 0.0
  %2296 = vmatpush1.msra.mxu0 0.0
  %2297 = vmatprep.subr.mxu0 0.0
  %2298 = vmatpush1.msra.mxu0 0.0
  %2299 = vmatprep.subr.mxu0 0.0
  %2300 = vmatpush1.msra.mxu0 0.0
  %2301 = vmatprep.subr.mxu0 0.0
  %2302 = vmatpush1.msra.mxu0 0.0
  %2303 = vmatprep.subr.mxu0 0.0
  %2304 = vmatpush1.msra.mxu0 0.0
  %2305 = vmatprep.subr.mxu0 0.0
  %2306 = vmatpush1.msra.mxu0 0.0
  %2307 = vmatprep.subr.mxu0 0.0
  %2308 = vmatpush1.msra.mxu0 0.0
  %2309 = vmatprep.subr.mxu0 0.0
  %2310 = vmatpush1.msra.mxu0 0.0
  %2311 = vmatprep.mubr.f32.mxu0 0.0
  %2312 = vmatmul.mubr.f32.gmra.mrb[0].mxu0 %v2245
  %v2313 = vpop.f32.mrb[0].mxu0
  %v2314 = vadd.f32 %v48, %v2313
  %v2315 = vpop.f32.mrb[0].mxu0
  %2316 = vdwg.mxu0
  %2317 = vmatprep.subr.mxu0 0.0
  %2318 = vmatpush1.msra.mxu0 %v137
  %2319 = vmatprep.subr.mxu0 0.0
  %2320 = vmatpush1.msra.mxu0 0.0
  %2321 = vmatprep.subr.mxu0 0.0
  %2322 = vmatpush1.msra.mxu0 0.0
  %2323 = vmatprep.subr.mxu0 0.0
  %2324 = vmatpush1.msra.mxu0 0.0
  %2325 = vmatprep.subr.mxu0 0.0
  %2326 = vmatpush1.msra.mxu0 0.0
  %2327 = vmatprep.subr.mxu0 0.0
  %2328 = vmatpush1.msra.mxu0 0.0
  %2329 = vmatprep.subr.mxu0 0.0
  %2330 = vmatpush1.msra.mxu0 0.0
  %2331 = vmatprep.subr.mxu0 0.0
  %2332 = vmatpush1.msra.mxu0 0.0
  %2333 = vmatprep.subr.mxu0 0.0
  %2334 = vmatpush1.msra.mxu0 0.0
  %2335 = vmatprep.subr.mxu0 0.0
  %2336 = vmatpush1.msra.mxu0 0.0
  %2337 = vmatprep.subr.mxu0 0.0
  %2338 = vmatpush1.msra.mxu0 0.0
  %2339 = vmatprep.subr.mxu0 0.0
  %2340 = vmatpush1.msra.mxu0 0.0
  %2341 = vmatprep.subr.mxu0 0.0
  %2342 = vmatpush1.msra.mxu0 0.0
  %2343 = vmatprep.subr.mxu0 0.0
  %2344 = vmatpush1.msra.mxu0 0.0
  %2345 = vmatprep.subr.mxu0 0.0
  %2346 = vmatpush1.msra.mxu0 0.0
  %2347 = vmatprep.subr.mxu0 0.0
  %2348 = vmatpush1.msra.mxu0 0.0
  %2349 = vmatprep.subr.mxu0 0.0
  %2350 = vmatpush1.msra.mxu0 0.0
  %2351 = vmatprep.subr.mxu0 0.0
  %2352 = vmatpush1.msra.mxu0 0.0
  %2353 = vmatprep.subr.mxu0 0.0
  %2354 = vmatpush1.msra.mxu0 0.0
  %2355 = vmatprep.subr.mxu0 0.0
  %2356 = vmatpush1.msra.mxu0 0.0
  %2357 = vmatprep.subr.mxu0 0.0
  %2358 = vmatpush1.msra.mxu0 0.0
  %2359 = vmatprep.subr.mxu0 0.0
  %2360 = vmatpush1.msra.mxu0 0.0
  %2361 = vmatprep.subr.mxu0 0.0
  %2362 = vmatpush1.msra.mxu0 0.0
  %2363 = vmatprep.subr.mxu0 0.0
  %2364 = vmatpush1.msra.mxu0 0.0
  %2365 = vmatprep.subr.mxu0 0.0
  %2366 = vmatpush1.msra.mxu0 0.0
  %2367 = vmatprep.subr.mxu0 0.0
  %2368 = vmatpush1.msra.mxu0 0.0
  %2369 = vmatprep.subr.mxu0 0.0
  %2370 = vmatpush1.msra.mxu0 0.0
  %2371 = vmatprep.subr.mxu0 0.0
  %2372 = vmatpush1.msra.mxu0 0.0
  %2373 = vmatprep.subr.mxu0 0.0
  %2374 = vmatpush1.msra.mxu0 0.0
  %2375 = vmatprep.subr.mxu0 0.0
  %2376 = vmatpush1.msra.mxu0 0.0
  %2377 = vmatprep.subr.mxu0 0.0
  %2378 = vmatpush1.msra.mxu0 0.0
  %2379 = vmatprep.subr.mxu0 0.0
  %2380 = vmatpush1.msra.mxu0 0.0
  %2381 = vmatprep.mubr.f32.mxu0 0.0
  %2382 = vmatmul.mubr.f32.gmra.mrb[0].mxu0 %v2245
  %v2383 = vpop.f32.mrb[0].mxu0
  %v2384 = vadd.f32 0.0, %v2383
  %v2385 = vpop.f32.mrb[0].mxu0
  %2386 = vdwg.mxu0
  %v2387 = vtanh.pop %v2314
  %v2388 = vmul.f32 %v2387, %v2387
  %v2389 = vsub.f32 1.0, %v2388
  %v2390 = vmul.f32 %v55, %v2389
  %v2391 = vmul.f32 %v213, %v2387
  %v2392 = vmul.f32 %v2391, %v2389
  %v2394 = vsel %vm216, %v2390, 0
  %2396 = vmatprep.subr.mxu0 0.0
  %2397 = vmatpush1.msra.mxu0 %v31
  %2398 = vmatprep.subr.mxu0 0.0
  %2399 = vmatpush1.msra.mxu0 %v32
  %2400 = vmatprep.subr.mxu0 0.0
  %2401 = vmatpush1.msra.mxu0 %v33
  %2402 = vmatprep.subr.mxu0 0.0
  %2403 = vmatpush1.msra.mxu0 %v34
  %2404 = vmatprep.subr.mxu0 0.0
  %2405 = vmatpush1.msra.mxu0 0.0
  %2406 = vmatprep.subr.mxu0 0.0
  %2407 = vmatpush1.msra.mxu0 0.0
  %2408 = vmatprep.subr.mxu0 0.0
  %2409 = vmatpush1.msra.mxu0 0.0
  %2410 = vmatprep.subr.mxu0 0.0
  %2411 = vmatpush1.msra.mxu0 0.0
  %2412 = vmatprep.subr.mxu0 0.0
  %2413 = vmatpush1.msra.mxu0 0.0
  %2414 = vmatprep.subr.mxu0 0.0
  %2415 = vmatpush1.msra.mxu0 0.0
  %2416 = vmatprep.subr.mxu0 0.0
  %2417 = vmatpush1.msra.mxu0 0.0
  %2418 = vmatprep.subr.mxu0 0.0
  %2419 = vmatpush1.msra.mxu0 0.0
  %2420 = vmatprep.subr.mxu0 0.0
  %2421 = vmatpush1.msra.mxu0 0.0
  %2422 = vmatprep.subr.mxu0 0.0
  %2423 = vmatpush1.msra.mxu0 0.0
  %2424 = vmatprep.subr.mxu0 0.0
  %2425 = vmatpush1.msra.mxu0 0.0
  %2426 = vmatprep.subr.mxu0 0.0
  %2427 = vmatpush1.msra.mxu0 0.0
  %2428 = vmatprep.subr.mxu0 0.0
  %2429 = vmatpush1.msra.mxu0 0.0
  %2430 = vmatprep.subr.mxu0 0.0
  %2431 = vmatpush1.msra.mxu0 0.0
  %2432 = vmatprep.subr.mxu0 0.0
  %2433 = vmatpush1.msra.mxu0 0.0
  %2434 = vmatprep.subr.mxu0 0.0
  %2435 = vmatpush1.msra.mxu0 0.0
  %2436 = vmatprep.subr.mxu0 0.0
  %2437 = vmatpush1.msra.mxu0 0.0
  %2438 = vmatprep.subr.mxu0 0.0
  %2439 = vmatpush1.msra.mxu0 0.0
  %2440 = vmatprep.subr.mxu0 0.0
  %2441 = vmatpush1.msra.mxu0 0.0
  %2442 = vmatprep.subr.mxu0 0.0
  %2443 = vmatpush1.msra.mxu0 0.0
  %2444 = vmatprep.subr.mxu0 0.0
  %2445 = vmatpush1.msra.mxu0 0.0
  %2446 = vmatprep.subr.mxu0 0.0
  %2447 = vmatpush1.msra.mxu0 0.0
  %2448 = vmatprep.subr.mxu0 0.0
  %2449 = vmatpush1.msra.mxu0 0.0
  %2450 = vmatprep.subr.mxu0 0.0
  %2451 = vmatpush1.msra.mxu0 0.0
  %2452 = vmatprep.subr.mxu0 0.0
  %2453 = vmatpush1.msra.mxu0 0.0
  %2454 = vmatprep.subr.mxu0 0.0
  %2455 = vmatpush1.msra.mxu0 0.0
  %2456 = vmatprep.subr.mxu0 0.0
  %2457 = vmatpush1.msra.mxu0 0.0
  %2458 = vmatprep.subr.mxu0 0.0
  %2459 = vmatpush1.msra.mxu0 0.0
  %2460 = vmatprep.mubr.f32.mxu0 0.0
  %2461 = vmatmul.mubr.f32.gmra.mrb[0].mxu0 %v2394
  %v2462 = vpop.f32.mrb[0].mxu0
  %v2463 = vadd.f32 0.0, %v2462
  %v2464 = vpop.f32.mrb[0].mxu0
  %2465 = vdwg.mxu0
  %v2466 = vmul.f32 %v2392, %v2384
  %v2468 = vsel %vm216, %v2466, 0
  %2470 = vmatprep.subr.mxu0 0.0
  %2471 = vmatpush1.msra.mxu0 %v35
  %2472 = vmatprep.subr.mxu0 0.0
  %2473 = vmatpush1.msra.mxu0 %v36
  %2474 = vmatprep.subr.mxu0 0.0
  %2475 = vmatpush1.msra.mxu0 %v37
  %2476 = vmatprep.subr.mxu0 0.0
  %2477 = vmatpush1.msra.mxu0 %v38
  %2478 = vmatprep.subr.mxu0 0.0
  %2479 = vmatpush1.msra.mxu0 0.0
  %2480 = vmatprep.subr.mxu0 0.0
  %2481 = vmatpush1.msra.mxu0 0.0
  %2482 = vmatprep.subr.mxu0 0.0
  %2483 = vmatpush1.msra.mxu0 0.0
  %2484 = vmatprep.subr.mxu0 0.0
  %2485 = vmatpush1.msra.mxu0 0.0
  %2486 = vmatprep.subr.mxu0 0.0
  %2487 = vmatpush1.msra.mxu0 0.0
  %2488 = vmatprep.subr.mxu0 0.0
  %2489 = vmatpush1.msra.mxu0 0.0
  %2490 = vmatprep.subr.mxu0 0.0
  %2491 = vmatpush1.msra.mxu0 0.0
  %2492 = vmatprep.subr.mxu0 0.0
  %2493 = vmatpush1.msra.mxu0 0.0
  %2494 = vmatprep.subr.mxu0 0.0
  %2495 = vmatpush1.msra.mxu0 0.0
  %2496 = vmatprep.subr.mxu0 0.0
  %2497 = vmatpush1.msra.mxu0 0.0
  %2498 = vmatprep.subr.mxu0 0.0
  %2499 = vmatpush1.msra.mxu0 0.0
  %2500 = vmatprep.subr.mxu0 0.0
  %2501 = vmatpush1.msra.mxu0 0.0
  %2502 = vmatprep.subr.mxu0 0.0
  %2503 = vmatpush1.msra.mxu0 0.0
  %2504 = vmatprep.subr.mxu0 0.0
  %2505 = vmatpush1.msra.mxu0 0.0
  %2506 = vmatprep.subr.mxu0 0.0
  %2507 = vmatpush1.msra.mxu0 0.0
  %2508 = vmatprep.subr.mxu0 0.0
  %2509 = vmatpush1.msra.mxu0 0.0
  %2510 = vmatprep.subr.mxu0 0.0
  %2511 = vmatpush1.msra.mxu0 0.0
  %2512 = vmatprep.subr.mxu0 0.0
  %2513 = vmatpush1.msra.mxu0 0.0
  %2514 = vmatprep.subr.mxu0 0.0
  %2515 = vmatpush1.msra.mxu0 0.0
  %2516 = vmatprep.subr.mxu0 0.0
  %2517 = vmatpush1.msra.mxu0 0.0
  %2518 = vmatprep.subr.mxu0 0.0
  %2519 = vmatpush1.msra.mxu0 0.0
  %2520 = vmatprep.subr.mxu0 0.0
  %2521 = vmatpush1.msra.mxu0 0.0
  %2522 = vmatprep.subr.mxu0 0.0
  %2523 = vmatpush1.msra.mxu0 0.0
  %2524 = vmatprep.subr.mxu0 0.0
  %2525 = vmatpush1.msra.mxu0 0.0
  %2526 = vmatprep.subr.mxu0 0.0
  %2527 = vmatpush1.msra.mxu0 0.0
  %2528 = vmatprep.subr.mxu0 0.0
  %2529 = vmatpush1.msra.mxu0 0.0
  %2530 = vmatprep.subr.mxu0 0.0
  %2531 = vmatpush1.msra.mxu0 0.0
  %2532 = vmatprep.subr.mxu0 0.0
  %2533 = vmatpush1.msra.mxu0 0.0
  %2534 = vmatprep.mubr.f32.mxu0 0.0
  %2535 = vmatmul.mubr.f32.gmra.mrb[0].mxu0 %v2468
  %v2536 = vpop.f32.mrb[0].mxu0
  %v2537 = vadd.f32 0.0, %v2536
  %v2538 = vpop.f32.mrb[0].mxu0
  %2539 = vdwg.mxu0
  %v2541 = vsel %vm216, %v2392, 0
  %2543 = vmatprep.subr.mxu0 0.0
  %2544 = vmatpush1.msra.mxu0 %v39
  %2545 = vmatprep.subr.mxu0 0.0
  %2546 = vmatpush1.msra.mxu0 %v40
  %2547 = vmatprep.subr.mxu0 0.0
  %2548 = vmatpush1.msra.mxu0 %v41
  %2549 = vmatprep.subr.mxu0 0.0
  %2550 = vmatpush1.msra.mxu0 %v42
  %2551 = vmatprep.subr.mxu0 0.0
  %2552 = vmatpush1.msra.mxu0 0.0
  %2553 = vmatprep.subr.mxu0 0.0
  %2554 = vmatpush1.msra.mxu0 0.0
  %2555 = vmatprep.subr.mxu0 0.0
  %2556 = vmatpush1.msra.mxu0 0.0
  %2557 = vmatprep.subr.mxu0 0.0
  %2558 = vmatpush1.msra.mxu0 0.0
  %2559 = vmatprep.subr.mxu0 0.0
  %2560 = vmatpush1.msra.mxu0 0.0
  %2561 = vmatprep.subr.mxu0 0.0
  %2562 = vmatpush1.msra.mxu0 0.0
  %2563 = vmatprep.subr.mxu0 0.0
  %2564 = vmatpush1.msra.mxu0 0.0
  %2565 = vmatprep.subr.mxu0 0.0
  %2566 = vmatpush1.msra.mxu0 0.0
  %2567 = vmatprep.subr.mxu0 0.0
  %2568 = vmatpush1.msra.mxu0 0.0
  %2569 = vmatprep.subr.mxu0 0.0
  %2570 = vmatpush1.msra.mxu0 0.0
  %2571 = vmatprep.subr.mxu0 0.0
  %2572 = vmatpush1.msra.mxu0 0.0
  %2573 = vmatprep.subr.mxu0 0.0
  %2574 = vmatpush1.msra.mxu0 0.0
  %2575 = vmatprep.subr.mxu0 0.0
  %2576 = vmatpush1.msra.mxu0 0.0
  %2577 = vmatprep.subr.mxu0 0.0
  %2578 = vmatpush1.msra.mxu0 0.0
  %2579 = vmatprep.subr.mxu0 0.0
  %2580 = vmatpush1.msra.mxu0 0.0
  %2581 = vmatprep.subr.mxu0 0.0
  %2582 = vmatpush1.msra.mxu0 0.0
  %2583 = vmatprep.subr.mxu0 0.0
  %2584 = vmatpush1.msra.mxu0 0.0
  %2585 = vmatprep.subr.mxu0 0.0
  %2586 = vmatpush1.msra.mxu0 0.0
  %2587 = vmatprep.subr.mxu0 0.0
  %2588 = vmatpush1.msra.mxu0 0.0
  %2589 = vmatprep.subr.mxu0 0.0
  %2590 = vmatpush1.msra.mxu0 0.0
  %2591 = vmatprep.subr.mxu0 0.0
  %2592 = vmatpush1.msra.mxu0 0.0
  %2593 = vmatprep.subr.mxu0 0.0
  %2594 = vmatpush1.msra.mxu0 0.0
  %2595 = vmatprep.subr.mxu0 0.0
  %2596 = vmatpush1.msra.mxu0 0.0
  %2597 = vmatprep.subr.mxu0 0.0
  %2598 = vmatpush1.msra.mxu0 0.0
  %2599 = vmatprep.subr.mxu0 0.0
  %2600 = vmatpush1.msra.mxu0 0.0
  %2601 = vmatprep.subr.mxu0 0.0
  %2602 = vmatpush1.msra.mxu0 0.0
  %2603 = vmatprep.subr.mxu0 0.0
  %2604 = vmatpush1.msra.mxu0 0.0
  %2605 = vmatprep.subr.mxu0 0.0
  %2606 = vmatpush1.msra.mxu0 0.0
  %2607 = vmatprep.mubr.f32.mxu0 0.0
  %2608 = vmatmul.mubr.f32.gmra.mrb[0].mxu0 %v2541
  %v2609 = vpop.f32.mrb[0].mxu0
  %v2610 = vadd.f32 0.0, %v2609
  %v2611 = vpop.f32.mrb[0].mxu0
  %2612 = vdwg.mxu0
  %v2613 = vadd.f32 %v2610, 1.0
  %v2614 = vsub.f32 %v2463, %v2537
  %2616 = vrot.lane.b32.xlu0 %v2613, 126
  %v2617 = vpop.permute.xlu0 %2616
  %v2619 = vmul.f32 %v2613, %v2617
  %v2620 = vmul.f32 %v2610, %v2610
  %2622 = vrot.lane.b32.xlu0 %v2620, 127
  %v2623 = vpop.permute.xlu0 %2622
  %v2625 = vsub.f32 %v2619, %v2623
  %v2626 = vrcp.pop %v2625
  %v2627 = vmul.f32 1.0, %v2626
  %2629 = vrot.lane.b32.xlu0 %v2614, 2
  %v2630 = vpop.permute.xlu0 %2629
  %v2632 = vmul.f32 %v2613, %v2630
  %v2633 = vmul.f32 %v2610, %v2614
  %2635 = vrot.lane.b32.xlu0 %v2633, 1
  %v2636 = vpop.permute.xlu0 %2635
  %v2638 = vsub.f32 %v2632, %v2636
  %2639 = vrot.lane.b32.xlu0 %v2614, 127
  %v2640 = vpop.permute.xlu0 %2639
  %v2642 = vmul.f32 %v2613, %v2640
  %2643 = vrot.lane.b32.xlu0 %v2614, 1
  %v2644 = vpop.permute.xlu0 %2643
  %v2646 = vmul.f32 %v2610, %v2644
  %2648 = vrot.lane.b32.xlu0 %v2646, 127
  %v2649 = vpop.permute.xlu0 %2648
  %v2651 = vsub.f32 %v2642, %v2649
  %2653 = vrot.lane.b32.xlu0 %v2638, 126
  %v2654 = vpop.permute.xlu0 %2653
  %2657 = vrot.lane.b32.xlu0 %v2651, 1
  %v2658 = vpop.permute.xlu0 %2657
  %v2660 = vsel %vm484, %v2654, %v2658
  %2662 = vset.pattern.permute.xlu0 0
  %2663 = vperm.xlu0 %2662, %v2627
  %v2664 = vpop.permute.xlu0 %2663
  %v2666 = vmul.f32 %v2660, %v2664
  %2667 = vrot.lane.b32.xlu0 %v2241, 126
  %v2668 = vpop.permute.xlu0 %2667
  %2671 = vrot.lane.b32.xlu0 %v2666, 2
  %v2672 = vpop.permute.xlu0 %2671
  %v2674 = vsel %vm499, %v2668, %v2672
  %v2675 = vmul.f32 %v2674, 0.1
  %v2676 = vadd.f32 %v2241, %v2675
  %s2677 = scalar_lea.vmem %s8, 40
  %2678 = vst.msk [vmem:[%s2677] sm:$0xff] %vm58, %v2676
  %v2680 = vsel %vm58, %v2676, 0
  %2682 = vmatprep.subr.mxu0 0.0
  %2683 = vmatpush1.msra.mxu0 %v64
  %2684 = vmatprep.subr.mxu0 0.0
  %2685 = vmatpush1.msra.mxu0 0.0
  %2686 = vmatprep.subr.mxu0 0.0
  %2687 = vmatpush1.msra.mxu0 0.0
  %2688 = vmatprep.subr.mxu0 0.0
  %2689 = vmatpush1.msra.mxu0 0.0
  %2690 = vmatprep.subr.mxu0 0.0
  %2691 = vmatpush1.msra.mxu0 0.0
  %2692 = vmatprep.subr.mxu0 0.0
  %2693 = vmatpush1.msra.mxu0 0.0
  %2694 = vmatprep.subr.mxu0 0.0
  %2695 = vmatpush1.msra.mxu0 0.0
  %2696 = vmatprep.subr.mxu0 0.0
  %2697 = vmatpush1.msra.mxu0 0.0
  %2698 = vmatprep.subr.mxu0 0.0
  %2699 = vmatpush1.msra.mxu0 0.0
  %2700 = vmatprep.subr.mxu0 0.0
  %2701 = vmatpush1.msra.mxu0 0.0
  %2702 = vmatprep.subr.mxu0 0.0
  %2703 = vmatpush1.msra.mxu0 0.0
  %2704 = vmatprep.subr.mxu0 0.0
  %2705 = vmatpush1.msra.mxu0 0.0
  %2706 = vmatprep.subr.mxu0 0.0
  %2707 = vmatpush1.msra.mxu0 0.0
  %2708 = vmatprep.subr.mxu0 0.0
  %2709 = vmatpush1.msra.mxu0 0.0
  %2710 = vmatprep.subr.mxu0 0.0
  %2711 = vmatpush1.msra.mxu0 0.0
  %2712 = vmatprep.subr.mxu0 0.0
  %2713 = vmatpush1.msra.mxu0 0.0
  %2714 = vmatprep.subr.mxu0 0.0
  %2715 = vmatpush1.msra.mxu0 0.0
  %2716 = vmatprep.subr.mxu0 0.0
  %2717 = vmatpush1.msra.mxu0 0.0
  %2718 = vmatprep.subr.mxu0 0.0
  %2719 = vmatpush1.msra.mxu0 0.0
  %2720 = vmatprep.subr.mxu0 0.0
  %2721 = vmatpush1.msra.mxu0 0.0
  %2722 = vmatprep.subr.mxu0 0.0
  %2723 = vmatpush1.msra.mxu0 0.0
  %2724 = vmatprep.subr.mxu0 0.0
  %2725 = vmatpush1.msra.mxu0 0.0
  %2726 = vmatprep.subr.mxu0 0.0
  %2727 = vmatpush1.msra.mxu0 0.0
  %2728 = vmatprep.subr.mxu0 0.0
  %2729 = vmatpush1.msra.mxu0 0.0
  %2730 = vmatprep.subr.mxu0 0.0
  %2731 = vmatpush1.msra.mxu0 0.0
  %2732 = vmatprep.subr.mxu0 0.0
  %2733 = vmatpush1.msra.mxu0 0.0
  %2734 = vmatprep.subr.mxu0 0.0
  %2735 = vmatpush1.msra.mxu0 0.0
  %2736 = vmatprep.subr.mxu0 0.0
  %2737 = vmatpush1.msra.mxu0 0.0
  %2738 = vmatprep.subr.mxu0 0.0
  %2739 = vmatpush1.msra.mxu0 0.0
  %2740 = vmatprep.subr.mxu0 0.0
  %2741 = vmatpush1.msra.mxu0 0.0
  %2742 = vmatprep.subr.mxu0 0.0
  %2743 = vmatpush1.msra.mxu0 0.0
  %2744 = vmatprep.subr.mxu0 0.0
  %2745 = vmatpush1.msra.mxu0 0.0
  %2746 = vmatprep.mubr.f32.mxu0 0.0
  %2747 = vmatmul.mubr.f32.gmra.mrb[0].mxu0 %v2680
  %v2748 = vpop.f32.mrb[0].mxu0
  %v2749 = vadd.f32 %v48, %v2748
  %v2750 = vpop.f32.mrb[0].mxu0
  %2751 = vdwg.mxu0
  %2752 = vmatprep.subr.mxu0 0.0
  %2753 = vmatpush1.msra.mxu0 %v137
  %2754 = vmatprep.subr.mxu0 0.0
  %2755 = vmatpush1.msra.mxu0 0.0
  %2756 = vmatprep.subr.mxu0 0.0
  %2757 = vmatpush1.msra.mxu0 0.0
  %2758 = vmatprep.subr.mxu0 0.0
  %2759 = vmatpush1.msra.mxu0 0.0
  %2760 = vmatprep.subr.mxu0 0.0
  %2761 = vmatpush1.msra.mxu0 0.0
  %2762 = vmatprep.subr.mxu0 0.0
  %2763 = vmatpush1.msra.mxu0 0.0
  %2764 = vmatprep.subr.mxu0 0.0
  %2765 = vmatpush1.msra.mxu0 0.0
  %2766 = vmatprep.subr.mxu0 0.0
  %2767 = vmatpush1.msra.mxu0 0.0
  %2768 = vmatprep.subr.mxu0 0.0
  %2769 = vmatpush1.msra.mxu0 0.0
  %2770 = vmatprep.subr.mxu0 0.0
  %2771 = vmatpush1.msra.mxu0 0.0
  %2772 = vmatprep.subr.mxu0 0.0
  %2773 = vmatpush1.msra.mxu0 0.0
  %2774 = vmatprep.subr.mxu0 0.0
  %2775 = vmatpush1.msra.mxu0 0.0
  %2776 = vmatprep.subr.mxu0 0.0
  %2777 = vmatpush1.msra.mxu0 0.0
  %2778 = vmatprep.subr.mxu0 0.0
  %2779 = vmatpush1.msra.mxu0 0.0
  %2780 = vmatprep.subr.mxu0 0.0
  %2781 = vmatpush1.msra.mxu0 0.0
  %2782 = vmatprep.subr.mxu0 0.0
  %2783 = vmatpush1.msra.mxu0 0.0
  %2784 = vmatprep.subr.mxu0 0.0
  %2785 = vmatpush1.msra.mxu0 0.0
  %2786 = vmatprep.subr.mxu0 0.0
  %2787 = vmatpush1.msra.mxu0 0.0
  %2788 = vmatprep.subr.mxu0 0.0
  %2789 = vmatpush1.msra.mxu0 0.0
  %2790 = vmatprep.subr.mxu0 0.0
  %2791 = vmatpush1.msra.mxu0 0.0
  %2792 = vmatprep.subr.mxu0 0.0
  %2793 = vmatpush1.msra.mxu0 0.0
  %2794 = vmatprep.subr.mxu0 0.0
  %2795 = vmatpush1.msra.mxu0 0.0
  %2796 = vmatprep.subr.mxu0 0.0
  %2797 = vmatpush1.msra.mxu0 0.0
  %2798 = vmatprep.subr.mxu0 0.0
  %2799 = vmatpush1.msra.mxu0 0.0
  %2800 = vmatprep.subr.mxu0 0.0
  %2801 = vmatpush1.msra.mxu0 0.0
  %2802 = vmatprep.subr.mxu0 0.0
  %2803 = vmatpush1.msra.mxu0 0.0
  %2804 = vmatprep.subr.mxu0 0.0
  %2805 = vmatpush1.msra.mxu0 0.0
  %2806 = vmatprep.subr.mxu0 0.0
  %2807 = vmatpush1.msra.mxu0 0.0
  %2808 = vmatprep.subr.mxu0 0.0
  %2809 = vmatpush1.msra.mxu0 0.0
  %2810 = vmatprep.subr.mxu0 0.0
  %2811 = vmatpush1.msra.mxu0 0.0
  %2812 = vmatprep.subr.mxu0 0.0
  %2813 = vmatpush1.msra.mxu0 0.0
  %2814 = vmatprep.subr.mxu0 0.0
  %2815 = vmatpush1.msra.mxu0 0.0
  %2816 = vmatprep.mubr.f32.mxu0 0.0
  %2817 = vmatmul.mubr.f32.gmra.mrb[0].mxu0 %v2680
  %v2818 = vpop.f32.mrb[0].mxu0
  %v2819 = vadd.f32 0.0, %v2818
  %v2820 = vpop.f32.mrb[0].mxu0
  %2821 = vdwg.mxu0
  %v2822 = vtanh.pop %v2749
  %v2823 = vmul.f32 %v2822, %v2822
  %v2824 = vsub.f32 1.0, %v2823
  %v2825 = vmul.f32 %v55, %v2824
  %v2826 = vmul.f32 %v213, %v2822
  %v2827 = vmul.f32 %v2826, %v2824
  %v2829 = vsel %vm216, %v2825, 0
  %2831 = vmatprep.subr.mxu0 0.0
  %2832 = vmatpush1.msra.mxu0 %v31
  %2833 = vmatprep.subr.mxu0 0.0
  %2834 = vmatpush1.msra.mxu0 %v32
  %2835 = vmatprep.subr.mxu0 0.0
  %2836 = vmatpush1.msra.mxu0 %v33
  %2837 = vmatprep.subr.mxu0 0.0
  %2838 = vmatpush1.msra.mxu0 %v34
  %2839 = vmatprep.subr.mxu0 0.0
  %2840 = vmatpush1.msra.mxu0 0.0
  %2841 = vmatprep.subr.mxu0 0.0
  %2842 = vmatpush1.msra.mxu0 0.0
  %2843 = vmatprep.subr.mxu0 0.0
  %2844 = vmatpush1.msra.mxu0 0.0
  %2845 = vmatprep.subr.mxu0 0.0
  %2846 = vmatpush1.msra.mxu0 0.0
  %2847 = vmatprep.subr.mxu0 0.0
  %2848 = vmatpush1.msra.mxu0 0.0
  %2849 = vmatprep.subr.mxu0 0.0
  %2850 = vmatpush1.msra.mxu0 0.0
  %2851 = vmatprep.subr.mxu0 0.0
  %2852 = vmatpush1.msra.mxu0 0.0
  %2853 = vmatprep.subr.mxu0 0.0
  %2854 = vmatpush1.msra.mxu0 0.0
  %2855 = vmatprep.subr.mxu0 0.0
  %2856 = vmatpush1.msra.mxu0 0.0
  %2857 = vmatprep.subr.mxu0 0.0
  %2858 = vmatpush1.msra.mxu0 0.0
  %2859 = vmatprep.subr.mxu0 0.0
  %2860 = vmatpush1.msra.mxu0 0.0
  %2861 = vmatprep.subr.mxu0 0.0
  %2862 = vmatpush1.msra.mxu0 0.0
  %2863 = vmatprep.subr.mxu0 0.0
  %2864 = vmatpush1.msra.mxu0 0.0
  %2865 = vmatprep.subr.mxu0 0.0
  %2866 = vmatpush1.msra.mxu0 0.0
  %2867 = vmatprep.subr.mxu0 0.0
  %2868 = vmatpush1.msra.mxu0 0.0
  %2869 = vmatprep.subr.mxu0 0.0
  %2870 = vmatpush1.msra.mxu0 0.0
  %2871 = vmatprep.subr.mxu0 0.0
  %2872 = vmatpush1.msra.mxu0 0.0
  %2873 = vmatprep.subr.mxu0 0.0
  %2874 = vmatpush1.msra.mxu0 0.0
  %2875 = vmatprep.subr.mxu0 0.0
  %2876 = vmatpush1.msra.mxu0 0.0
  %2877 = vmatprep.subr.mxu0 0.0
  %2878 = vmatpush1.msra.mxu0 0.0
  %2879 = vmatprep.subr.mxu0 0.0
  %2880 = vmatpush1.msra.mxu0 0.0
  %2881 = vmatprep.subr.mxu0 0.0
  %2882 = vmatpush1.msra.mxu0 0.0
  %2883 = vmatprep.subr.mxu0 0.0
  %2884 = vmatpush1.msra.mxu0 0.0
  %2885 = vmatprep.subr.mxu0 0.0
  %2886 = vmatpush1.msra.mxu0 0.0
  %2887 = vmatprep.subr.mxu0 0.0
  %2888 = vmatpush1.msra.mxu0 0.0
  %2889 = vmatprep.subr.mxu0 0.0
  %2890 = vmatpush1.msra.mxu0 0.0
  %2891 = vmatprep.subr.mxu0 0.0
  %2892 = vmatpush1.msra.mxu0 0.0
  %2893 = vmatprep.subr.mxu0 0.0
  %2894 = vmatpush1.msra.mxu0 0.0
  %2895 = vmatprep.mubr.f32.mxu0 0.0
  %2896 = vmatmul.mubr.f32.gmra.mrb[0].mxu0 %v2829
  %v2897 = vpop.f32.mrb[0].mxu0
  %v2898 = vadd.f32 0.0, %v2897
  %v2899 = vpop.f32.mrb[0].mxu0
  %2900 = vdwg.mxu0
  %v2901 = vmul.f32 %v2827, %v2819
  %v2903 = vsel %vm216, %v2901, 0
  %2905 = vmatprep.subr.mxu0 0.0
  %2906 = vmatpush1.msra.mxu0 %v35
  %2907 = vmatprep.subr.mxu0 0.0
  %2908 = vmatpush1.msra.mxu0 %v36
  %2909 = vmatprep.subr.mxu0 0.0
  %2910 = vmatpush1.msra.mxu0 %v37
  %2911 = vmatprep.subr.mxu0 0.0
  %2912 = vmatpush1.msra.mxu0 %v38
  %2913 = vmatprep.subr.mxu0 0.0
  %2914 = vmatpush1.msra.mxu0 0.0
  %2915 = vmatprep.subr.mxu0 0.0
  %2916 = vmatpush1.msra.mxu0 0.0
  %2917 = vmatprep.subr.mxu0 0.0
  %2918 = vmatpush1.msra.mxu0 0.0
  %2919 = vmatprep.subr.mxu0 0.0
  %2920 = vmatpush1.msra.mxu0 0.0
  %2921 = vmatprep.subr.mxu0 0.0
  %2922 = vmatpush1.msra.mxu0 0.0
  %2923 = vmatprep.subr.mxu0 0.0
  %2924 = vmatpush1.msra.mxu0 0.0
  %2925 = vmatprep.subr.mxu0 0.0
  %2926 = vmatpush1.msra.mxu0 0.0
  %2927 = vmatprep.subr.mxu0 0.0
  %2928 = vmatpush1.msra.mxu0 0.0
  %2929 = vmatprep.subr.mxu0 0.0
  %2930 = vmatpush1.msra.mxu0 0.0
  %2931 = vmatprep.subr.mxu0 0.0
  %2932 = vmatpush1.msra.mxu0 0.0
  %2933 = vmatprep.subr.mxu0 0.0
  %2934 = vmatpush1.msra.mxu0 0.0
  %2935 = vmatprep.subr.mxu0 0.0
  %2936 = vmatpush1.msra.mxu0 0.0
  %2937 = vmatprep.subr.mxu0 0.0
  %2938 = vmatpush1.msra.mxu0 0.0
  %2939 = vmatprep.subr.mxu0 0.0
  %2940 = vmatpush1.msra.mxu0 0.0
  %2941 = vmatprep.subr.mxu0 0.0
  %2942 = vmatpush1.msra.mxu0 0.0
  %2943 = vmatprep.subr.mxu0 0.0
  %2944 = vmatpush1.msra.mxu0 0.0
  %2945 = vmatprep.subr.mxu0 0.0
  %2946 = vmatpush1.msra.mxu0 0.0
  %2947 = vmatprep.subr.mxu0 0.0
  %2948 = vmatpush1.msra.mxu0 0.0
  %2949 = vmatprep.subr.mxu0 0.0
  %2950 = vmatpush1.msra.mxu0 0.0
  %2951 = vmatprep.subr.mxu0 0.0
  %2952 = vmatpush1.msra.mxu0 0.0
  %2953 = vmatprep.subr.mxu0 0.0
  %2954 = vmatpush1.msra.mxu0 0.0
  %2955 = vmatprep.subr.mxu0 0.0
  %2956 = vmatpush1.msra.mxu0 0.0
  %2957 = vmatprep.subr.mxu0 0.0
  %2958 = vmatpush1.msra.mxu0 0.0
  %2959 = vmatprep.subr.mxu0 0.0
  %2960 = vmatpush1.msra.mxu0 0.0
  %2961 = vmatprep.subr.mxu0 0.0
  %2962 = vmatpush1.msra.mxu0 0.0
  %2963 = vmatprep.subr.mxu0 0.0
  %2964 = vmatpush1.msra.mxu0 0.0
  %2965 = vmatprep.subr.mxu0 0.0
  %2966 = vmatpush1.msra.mxu0 0.0
  %2967 = vmatprep.subr.mxu0 0.0
  %2968 = vmatpush1.msra.mxu0 0.0
  %2969 = vmatprep.mubr.f32.mxu0 0.0
  %2970 = vmatmul.mubr.f32.gmra.mrb[0].mxu0 %v2903
  %v2971 = vpop.f32.mrb[0].mxu0
  %v2972 = vadd.f32 0.0, %v2971
  %v2973 = vpop.f32.mrb[0].mxu0
  %2974 = vdwg.mxu0
  %v2976 = vsel %vm216, %v2827, 0
  %2978 = vmatprep.subr.mxu0 0.0
  %2979 = vmatpush1.msra.mxu0 %v39
  %2980 = vmatprep.subr.mxu0 0.0
  %2981 = vmatpush1.msra.mxu0 %v40
  %2982 = vmatprep.subr.mxu0 0.0
  %2983 = vmatpush1.msra.mxu0 %v41
  %2984 = vmatprep.subr.mxu0 0.0
  %2985 = vmatpush1.msra.mxu0 %v42
  %2986 = vmatprep.subr.mxu0 0.0
  %2987 = vmatpush1.msra.mxu0 0.0
  %2988 = vmatprep.subr.mxu0 0.0
  %2989 = vmatpush1.msra.mxu0 0.0
  %2990 = vmatprep.subr.mxu0 0.0
  %2991 = vmatpush1.msra.mxu0 0.0
  %2992 = vmatprep.subr.mxu0 0.0
  %2993 = vmatpush1.msra.mxu0 0.0
  %2994 = vmatprep.subr.mxu0 0.0
  %2995 = vmatpush1.msra.mxu0 0.0
  %2996 = vmatprep.subr.mxu0 0.0
  %2997 = vmatpush1.msra.mxu0 0.0
  %2998 = vmatprep.subr.mxu0 0.0
  %2999 = vmatpush1.msra.mxu0 0.0
  %3000 = vmatprep.subr.mxu0 0.0
  %3001 = vmatpush1.msra.mxu0 0.0
  %3002 = vmatprep.subr.mxu0 0.0
  %3003 = vmatpush1.msra.mxu0 0.0
  %3004 = vmatprep.subr.mxu0 0.0
  %3005 = vmatpush1.msra.mxu0 0.0
  %3006 = vmatprep.subr.mxu0 0.0
  %3007 = vmatpush1.msra.mxu0 0.0
  %3008 = vmatprep.subr.mxu0 0.0
  %3009 = vmatpush1.msra.mxu0 0.0
  %3010 = vmatprep.subr.mxu0 0.0
  %3011 = vmatpush1.msra.mxu0 0.0
  %3012 = vmatprep.subr.mxu0 0.0
  %3013 = vmatpush1.msra.mxu0 0.0
  %3014 = vmatprep.subr.mxu0 0.0
  %3015 = vmatpush1.msra.mxu0 0.0
  %3016 = vmatprep.subr.mxu0 0.0
  %3017 = vmatpush1.msra.mxu0 0.0
  %3018 = vmatprep.subr.mxu0 0.0
  %3019 = vmatpush1.msra.mxu0 0.0
  %3020 = vmatprep.subr.mxu0 0.0
  %3021 = vmatpush1.msra.mxu0 0.0
  %3022 = vmatprep.subr.mxu0 0.0
  %3023 = vmatpush1.msra.mxu0 0.0
  %3024 = vmatprep.subr.mxu0 0.0
  %3025 = vmatpush1.msra.mxu0 0.0
  %3026 = vmatprep.subr.mxu0 0.0
  %3027 = vmatpush1.msra.mxu0 0.0
  %3028 = vmatprep.subr.mxu0 0.0
  %3029 = vmatpush1.msra.mxu0 0.0
  %3030 = vmatprep.subr.mxu0 0.0
  %3031 = vmatpush1.msra.mxu0 0.0
  %3032 = vmatprep.subr.mxu0 0.0
  %3033 = vmatpush1.msra.mxu0 0.0
  %3034 = vmatprep.subr.mxu0 0.0
  %3035 = vmatpush1.msra.mxu0 0.0
  %3036 = vmatprep.subr.mxu0 0.0
  %3037 = vmatpush1.msra.mxu0 0.0
  %3038 = vmatprep.subr.mxu0 0.0
  %3039 = vmatpush1.msra.mxu0 0.0
  %3040 = vmatprep.subr.mxu0 0.0
  %3041 = vmatpush1.msra.mxu0 0.0
  %3042 = vmatprep.mubr.f32.mxu0 0.0
  %3043 = vmatmul.mubr.f32.gmra.mrb[0].mxu0 %v2976
  %v3044 = vpop.f32.mrb[0].mxu0
  %v3045 = vadd.f32 0.0, %v3044
  %v3046 = vpop.f32.mrb[0].mxu0
  %3047 = vdwg.mxu0
  %v3048 = vadd.f32 %v3045, 1.0
  %v3049 = vsub.f32 %v2898, %v2972
  %3051 = vrot.lane.b32.xlu0 %v3048, 126
  %v3052 = vpop.permute.xlu0 %3051
  %v3054 = vmul.f32 %v3048, %v3052
  %v3055 = vmul.f32 %v3045, %v3045
  %3057 = vrot.lane.b32.xlu0 %v3055, 127
  %v3058 = vpop.permute.xlu0 %3057
  %v3060 = vsub.f32 %v3054, %v3058
  %v3061 = vrcp.pop %v3060
  %v3062 = vmul.f32 1.0, %v3061
  %3064 = vrot.lane.b32.xlu0 %v3049, 2
  %v3065 = vpop.permute.xlu0 %3064
  %v3067 = vmul.f32 %v3048, %v3065
  %v3068 = vmul.f32 %v3045, %v3049
  %3070 = vrot.lane.b32.xlu0 %v3068, 1
  %v3071 = vpop.permute.xlu0 %3070
  %v3073 = vsub.f32 %v3067, %v3071
  %3074 = vrot.lane.b32.xlu0 %v3049, 127
  %v3075 = vpop.permute.xlu0 %3074
  %v3077 = vmul.f32 %v3048, %v3075
  %3078 = vrot.lane.b32.xlu0 %v3049, 1
  %v3079 = vpop.permute.xlu0 %3078
  %v3081 = vmul.f32 %v3045, %v3079
  %3083 = vrot.lane.b32.xlu0 %v3081, 127
  %v3084 = vpop.permute.xlu0 %3083
  %v3086 = vsub.f32 %v3077, %v3084
  %3088 = vrot.lane.b32.xlu0 %v3073, 126
  %v3089 = vpop.permute.xlu0 %3088
  %3092 = vrot.lane.b32.xlu0 %v3086, 1
  %v3093 = vpop.permute.xlu0 %3092
  %v3095 = vsel %vm484, %v3089, %v3093
  %3097 = vset.pattern.permute.xlu0 0
  %3098 = vperm.xlu0 %3097, %v3062
  %v3099 = vpop.permute.xlu0 %3098
  %v3101 = vmul.f32 %v3095, %v3099
  %3102 = vrot.lane.b32.xlu0 %v2676, 126
  %v3103 = vpop.permute.xlu0 %3102
  %3106 = vrot.lane.b32.xlu0 %v3101, 2
  %v3107 = vpop.permute.xlu0 %3106
  %v3109 = vsel %vm499, %v3103, %v3107
  %v3110 = vmul.f32 %v3109, 0.1
  %v3111 = vadd.f32 %v2676, %v3110
  %s3112 = scalar_lea.vmem %s8, 48
  %3113 = vst.msk [vmem:[%s3112] sm:$0xff] %vm58, %v3111
  %v3115 = vsel %vm58, %v3111, 0
  %3117 = vmatprep.subr.mxu0 0.0
  %3118 = vmatpush1.msra.mxu0 %v64
  %3119 = vmatprep.subr.mxu0 0.0
  %3120 = vmatpush1.msra.mxu0 0.0
  %3121 = vmatprep.subr.mxu0 0.0
  %3122 = vmatpush1.msra.mxu0 0.0
  %3123 = vmatprep.subr.mxu0 0.0
  %3124 = vmatpush1.msra.mxu0 0.0
  %3125 = vmatprep.subr.mxu0 0.0
  %3126 = vmatpush1.msra.mxu0 0.0
  %3127 = vmatprep.subr.mxu0 0.0
  %3128 = vmatpush1.msra.mxu0 0.0
  %3129 = vmatprep.subr.mxu0 0.0
  %3130 = vmatpush1.msra.mxu0 0.0
  %3131 = vmatprep.subr.mxu0 0.0
  %3132 = vmatpush1.msra.mxu0 0.0
  %3133 = vmatprep.subr.mxu0 0.0
  %3134 = vmatpush1.msra.mxu0 0.0
  %3135 = vmatprep.subr.mxu0 0.0
  %3136 = vmatpush1.msra.mxu0 0.0
  %3137 = vmatprep.subr.mxu0 0.0
  %3138 = vmatpush1.msra.mxu0 0.0
  %3139 = vmatprep.subr.mxu0 0.0
  %3140 = vmatpush1.msra.mxu0 0.0
  %3141 = vmatprep.subr.mxu0 0.0
  %3142 = vmatpush1.msra.mxu0 0.0
  %3143 = vmatprep.subr.mxu0 0.0
  %3144 = vmatpush1.msra.mxu0 0.0
  %3145 = vmatprep.subr.mxu0 0.0
  %3146 = vmatpush1.msra.mxu0 0.0
  %3147 = vmatprep.subr.mxu0 0.0
  %3148 = vmatpush1.msra.mxu0 0.0
  %3149 = vmatprep.subr.mxu0 0.0
  %3150 = vmatpush1.msra.mxu0 0.0
  %3151 = vmatprep.subr.mxu0 0.0
  %3152 = vmatpush1.msra.mxu0 0.0
  %3153 = vmatprep.subr.mxu0 0.0
  %3154 = vmatpush1.msra.mxu0 0.0
  %3155 = vmatprep.subr.mxu0 0.0
  %3156 = vmatpush1.msra.mxu0 0.0
  %3157 = vmatprep.subr.mxu0 0.0
  %3158 = vmatpush1.msra.mxu0 0.0
  %3159 = vmatprep.subr.mxu0 0.0
  %3160 = vmatpush1.msra.mxu0 0.0
  %3161 = vmatprep.subr.mxu0 0.0
  %3162 = vmatpush1.msra.mxu0 0.0
  %3163 = vmatprep.subr.mxu0 0.0
  %3164 = vmatpush1.msra.mxu0 0.0
  %3165 = vmatprep.subr.mxu0 0.0
  %3166 = vmatpush1.msra.mxu0 0.0
  %3167 = vmatprep.subr.mxu0 0.0
  %3168 = vmatpush1.msra.mxu0 0.0
  %3169 = vmatprep.subr.mxu0 0.0
  %3170 = vmatpush1.msra.mxu0 0.0
  %3171 = vmatprep.subr.mxu0 0.0
  %3172 = vmatpush1.msra.mxu0 0.0
  %3173 = vmatprep.subr.mxu0 0.0
  %3174 = vmatpush1.msra.mxu0 0.0
  %3175 = vmatprep.subr.mxu0 0.0
  %3176 = vmatpush1.msra.mxu0 0.0
  %3177 = vmatprep.subr.mxu0 0.0
  %3178 = vmatpush1.msra.mxu0 0.0
  %3179 = vmatprep.subr.mxu0 0.0
  %3180 = vmatpush1.msra.mxu0 0.0
  %3181 = vmatprep.mubr.f32.mxu0 0.0
  %3182 = vmatmul.mubr.f32.gmra.mrb[0].mxu0 %v3115
  %v3183 = vpop.f32.mrb[0].mxu0
  %v3184 = vadd.f32 %v48, %v3183
  %v3185 = vpop.f32.mrb[0].mxu0
  %3186 = vdwg.mxu0
  %3187 = vmatprep.subr.mxu0 0.0
  %3188 = vmatpush1.msra.mxu0 %v137
  %3189 = vmatprep.subr.mxu0 0.0
  %3190 = vmatpush1.msra.mxu0 0.0
  %3191 = vmatprep.subr.mxu0 0.0
  %3192 = vmatpush1.msra.mxu0 0.0
  %3193 = vmatprep.subr.mxu0 0.0
  %3194 = vmatpush1.msra.mxu0 0.0
  %3195 = vmatprep.subr.mxu0 0.0
  %3196 = vmatpush1.msra.mxu0 0.0
  %3197 = vmatprep.subr.mxu0 0.0
  %3198 = vmatpush1.msra.mxu0 0.0
  %3199 = vmatprep.subr.mxu0 0.0
  %3200 = vmatpush1.msra.mxu0 0.0
  %3201 = vmatprep.subr.mxu0 0.0
  %3202 = vmatpush1.msra.mxu0 0.0
  %3203 = vmatprep.subr.mxu0 0.0
  %3204 = vmatpush1.msra.mxu0 0.0
  %3205 = vmatprep.subr.mxu0 0.0
  %3206 = vmatpush1.msra.mxu0 0.0
  %3207 = vmatprep.subr.mxu0 0.0
  %3208 = vmatpush1.msra.mxu0 0.0
  %3209 = vmatprep.subr.mxu0 0.0
  %3210 = vmatpush1.msra.mxu0 0.0
  %3211 = vmatprep.subr.mxu0 0.0
  %3212 = vmatpush1.msra.mxu0 0.0
  %3213 = vmatprep.subr.mxu0 0.0
  %3214 = vmatpush1.msra.mxu0 0.0
  %3215 = vmatprep.subr.mxu0 0.0
  %3216 = vmatpush1.msra.mxu0 0.0
  %3217 = vmatprep.subr.mxu0 0.0
  %3218 = vmatpush1.msra.mxu0 0.0
  %3219 = vmatprep.subr.mxu0 0.0
  %3220 = vmatpush1.msra.mxu0 0.0
  %3221 = vmatprep.subr.mxu0 0.0
  %3222 = vmatpush1.msra.mxu0 0.0
  %3223 = vmatprep.subr.mxu0 0.0
  %3224 = vmatpush1.msra.mxu0 0.0
  %3225 = vmatprep.subr.mxu0 0.0
  %3226 = vmatpush1.msra.mxu0 0.0
  %3227 = vmatprep.subr.mxu0 0.0
  %3228 = vmatpush1.msra.mxu0 0.0
  %3229 = vmatprep.subr.mxu0 0.0
  %3230 = vmatpush1.msra.mxu0 0.0
  %3231 = vmatprep.subr.mxu0 0.0
  %3232 = vmatpush1.msra.mxu0 0.0
  %3233 = vmatprep.subr.mxu0 0.0
  %3234 = vmatpush1.msra.mxu0 0.0
  %3235 = vmatprep.subr.mxu0 0.0
  %3236 = vmatpush1.msra.mxu0 0.0
  %3237 = vmatprep.subr.mxu0 0.0
  %3238 = vmatpush1.msra.mxu0 0.0
  %3239 = vmatprep.subr.mxu0 0.0
  %3240 = vmatpush1.msra.mxu0 0.0
  %3241 = vmatprep.subr.mxu0 0.0
  %3242 = vmatpush1.msra.mxu0 0.0
  %3243 = vmatprep.subr.mxu0 0.0
  %3244 = vmatpush1.msra.mxu0 0.0
  %3245 = vmatprep.subr.mxu0 0.0
  %3246 = vmatpush1.msra.mxu0 0.0
  %3247 = vmatprep.subr.mxu0 0.0
  %3248 = vmatpush1.msra.mxu0 0.0
  %3249 = vmatprep.subr.mxu0 0.0
  %3250 = vmatpush1.msra.mxu0 0.0
  %3251 = vmatprep.mubr.f32.mxu0 0.0
  %3252 = vmatmul.mubr.f32.gmra.mrb[0].mxu0 %v3115
  %v3253 = vpop.f32.mrb[0].mxu0
  %v3254 = vadd.f32 0.0, %v3253
  %v3255 = vpop.f32.mrb[0].mxu0
  %3256 = vdwg.mxu0
  %v3257 = vtanh.pop %v3184
  %v3258 = vmul.f32 %v3257, %v3257
  %v3259 = vsub.f32 1.0, %v3258
  %v3260 = vmul.f32 %v55, %v3259
  %v3261 = vmul.f32 %v213, %v3257
  %v3262 = vmul.f32 %v3261, %v3259
  %v3264 = vsel %vm216, %v3260, 0
  %3266 = vmatprep.subr.mxu0 0.0
  %3267 = vmatpush1.msra.mxu0 %v31
  %3268 = vmatprep.subr.mxu0 0.0
  %3269 = vmatpush1.msra.mxu0 %v32
  %3270 = vmatprep.subr.mxu0 0.0
  %3271 = vmatpush1.msra.mxu0 %v33
  %3272 = vmatprep.subr.mxu0 0.0
  %3273 = vmatpush1.msra.mxu0 %v34
  %3274 = vmatprep.subr.mxu0 0.0
  %3275 = vmatpush1.msra.mxu0 0.0
  %3276 = vmatprep.subr.mxu0 0.0
  %3277 = vmatpush1.msra.mxu0 0.0
  %3278 = vmatprep.subr.mxu0 0.0
  %3279 = vmatpush1.msra.mxu0 0.0
  %3280 = vmatprep.subr.mxu0 0.0
  %3281 = vmatpush1.msra.mxu0 0.0
  %3282 = vmatprep.subr.mxu0 0.0
  %3283 = vmatpush1.msra.mxu0 0.0
  %3284 = vmatprep.subr.mxu0 0.0
  %3285 = vmatpush1.msra.mxu0 0.0
  %3286 = vmatprep.subr.mxu0 0.0
  %3287 = vmatpush1.msra.mxu0 0.0
  %3288 = vmatprep.subr.mxu0 0.0
  %3289 = vmatpush1.msra.mxu0 0.0
  %3290 = vmatprep.subr.mxu0 0.0
  %3291 = vmatpush1.msra.mxu0 0.0
  %3292 = vmatprep.subr.mxu0 0.0
  %3293 = vmatpush1.msra.mxu0 0.0
  %3294 = vmatprep.subr.mxu0 0.0
  %3295 = vmatpush1.msra.mxu0 0.0
  %3296 = vmatprep.subr.mxu0 0.0
  %3297 = vmatpush1.msra.mxu0 0.0
  %3298 = vmatprep.subr.mxu0 0.0
  %3299 = vmatpush1.msra.mxu0 0.0
  %3300 = vmatprep.subr.mxu0 0.0
  %3301 = vmatpush1.msra.mxu0 0.0
  %3302 = vmatprep.subr.mxu0 0.0
  %3303 = vmatpush1.msra.mxu0 0.0
  %3304 = vmatprep.subr.mxu0 0.0
  %3305 = vmatpush1.msra.mxu0 0.0
  %3306 = vmatprep.subr.mxu0 0.0
  %3307 = vmatpush1.msra.mxu0 0.0
  %3308 = vmatprep.subr.mxu0 0.0
  %3309 = vmatpush1.msra.mxu0 0.0
  %3310 = vmatprep.subr.mxu0 0.0
  %3311 = vmatpush1.msra.mxu0 0.0
  %3312 = vmatprep.subr.mxu0 0.0
  %3313 = vmatpush1.msra.mxu0 0.0
  %3314 = vmatprep.subr.mxu0 0.0
  %3315 = vmatpush1.msra.mxu0 0.0
  %3316 = vmatprep.subr.mxu0 0.0
  %3317 = vmatpush1.msra.mxu0 0.0
  %3318 = vmatprep.subr.mxu0 0.0
  %3319 = vmatpush1.msra.mxu0 0.0
  %3320 = vmatprep.subr.mxu0 0.0
  %3321 = vmatpush1.msra.mxu0 0.0
  %3322 = vmatprep.subr.mxu0 0.0
  %3323 = vmatpush1.msra.mxu0 0.0
  %3324 = vmatprep.subr.mxu0 0.0
  %3325 = vmatpush1.msra.mxu0 0.0
  %3326 = vmatprep.subr.mxu0 0.0
  %3327 = vmatpush1.msra.mxu0 0.0
  %3328 = vmatprep.subr.mxu0 0.0
  %3329 = vmatpush1.msra.mxu0 0.0
  %3330 = vmatprep.mubr.f32.mxu0 0.0
  %3331 = vmatmul.mubr.f32.gmra.mrb[0].mxu0 %v3264
  %v3332 = vpop.f32.mrb[0].mxu0
  %v3333 = vadd.f32 0.0, %v3332
  %v3334 = vpop.f32.mrb[0].mxu0
  %3335 = vdwg.mxu0
  %v3336 = vmul.f32 %v3262, %v3254
  %v3338 = vsel %vm216, %v3336, 0
  %3340 = vmatprep.subr.mxu0 0.0
  %3341 = vmatpush1.msra.mxu0 %v35
  %3342 = vmatprep.subr.mxu0 0.0
  %3343 = vmatpush1.msra.mxu0 %v36
  %3344 = vmatprep.subr.mxu0 0.0
  %3345 = vmatpush1.msra.mxu0 %v37
  %3346 = vmatprep.subr.mxu0 0.0
  %3347 = vmatpush1.msra.mxu0 %v38
  %3348 = vmatprep.subr.mxu0 0.0
  %3349 = vmatpush1.msra.mxu0 0.0
  %3350 = vmatprep.subr.mxu0 0.0
  %3351 = vmatpush1.msra.mxu0 0.0
  %3352 = vmatprep.subr.mxu0 0.0
  %3353 = vmatpush1.msra.mxu0 0.0
  %3354 = vmatprep.subr.mxu0 0.0
  %3355 = vmatpush1.msra.mxu0 0.0
  %3356 = vmatprep.subr.mxu0 0.0
  %3357 = vmatpush1.msra.mxu0 0.0
  %3358 = vmatprep.subr.mxu0 0.0
  %3359 = vmatpush1.msra.mxu0 0.0
  %3360 = vmatprep.subr.mxu0 0.0
  %3361 = vmatpush1.msra.mxu0 0.0
  %3362 = vmatprep.subr.mxu0 0.0
  %3363 = vmatpush1.msra.mxu0 0.0
  %3364 = vmatprep.subr.mxu0 0.0
  %3365 = vmatpush1.msra.mxu0 0.0
  %3366 = vmatprep.subr.mxu0 0.0
  %3367 = vmatpush1.msra.mxu0 0.0
  %3368 = vmatprep.subr.mxu0 0.0
  %3369 = vmatpush1.msra.mxu0 0.0
  %3370 = vmatprep.subr.mxu0 0.0
  %3371 = vmatpush1.msra.mxu0 0.0
  %3372 = vmatprep.subr.mxu0 0.0
  %3373 = vmatpush1.msra.mxu0 0.0
  %3374 = vmatprep.subr.mxu0 0.0
  %3375 = vmatpush1.msra.mxu0 0.0
  %3376 = vmatprep.subr.mxu0 0.0
  %3377 = vmatpush1.msra.mxu0 0.0
  %3378 = vmatprep.subr.mxu0 0.0
  %3379 = vmatpush1.msra.mxu0 0.0
  %3380 = vmatprep.subr.mxu0 0.0
  %3381 = vmatpush1.msra.mxu0 0.0
  %3382 = vmatprep.subr.mxu0 0.0
  %3383 = vmatpush1.msra.mxu0 0.0
  %3384 = vmatprep.subr.mxu0 0.0
  %3385 = vmatpush1.msra.mxu0 0.0
  %3386 = vmatprep.subr.mxu0 0.0
  %3387 = vmatpush1.msra.mxu0 0.0
  %3388 = vmatprep.subr.mxu0 0.0
  %3389 = vmatpush1.msra.mxu0 0.0
  %3390 = vmatprep.subr.mxu0 0.0
  %3391 = vmatpush1.msra.mxu0 0.0
  %3392 = vmatprep.subr.mxu0 0.0
  %3393 = vmatpush1.msra.mxu0 0.0
  %3394 = vmatprep.subr.mxu0 0.0
  %3395 = vmatpush1.msra.mxu0 0.0
  %3396 = vmatprep.subr.mxu0 0.0
  %3397 = vmatpush1.msra.mxu0 0.0
  %3398 = vmatprep.subr.mxu0 0.0
  %3399 = vmatpush1.msra.mxu0 0.0
  %3400 = vmatprep.subr.mxu0 0.0
  %3401 = vmatpush1.msra.mxu0 0.0
  %3402 = vmatprep.subr.mxu0 0.0
  %3403 = vmatpush1.msra.mxu0 0.0
  %3404 = vmatprep.mubr.f32.mxu0 0.0
  %3405 = vmatmul.mubr.f32.gmra.mrb[0].mxu0 %v3338
  %v3406 = vpop.f32.mrb[0].mxu0
  %v3407 = vadd.f32 0.0, %v3406
  %v3408 = vpop.f32.mrb[0].mxu0
  %3409 = vdwg.mxu0
  %v3411 = vsel %vm216, %v3262, 0
  %3413 = vmatprep.subr.mxu0 0.0
  %3414 = vmatpush1.msra.mxu0 %v39
  %3415 = vmatprep.subr.mxu0 0.0
  %3416 = vmatpush1.msra.mxu0 %v40
  %3417 = vmatprep.subr.mxu0 0.0
  %3418 = vmatpush1.msra.mxu0 %v41
  %3419 = vmatprep.subr.mxu0 0.0
  %3420 = vmatpush1.msra.mxu0 %v42
  %3421 = vmatprep.subr.mxu0 0.0
  %3422 = vmatpush1.msra.mxu0 0.0
  %3423 = vmatprep.subr.mxu0 0.0
  %3424 = vmatpush1.msra.mxu0 0.0
  %3425 = vmatprep.subr.mxu0 0.0
  %3426 = vmatpush1.msra.mxu0 0.0
  %3427 = vmatprep.subr.mxu0 0.0
  %3428 = vmatpush1.msra.mxu0 0.0
  %3429 = vmatprep.subr.mxu0 0.0
  %3430 = vmatpush1.msra.mxu0 0.0
  %3431 = vmatprep.subr.mxu0 0.0
  %3432 = vmatpush1.msra.mxu0 0.0
  %3433 = vmatprep.subr.mxu0 0.0
  %3434 = vmatpush1.msra.mxu0 0.0
  %3435 = vmatprep.subr.mxu0 0.0
  %3436 = vmatpush1.msra.mxu0 0.0
  %3437 = vmatprep.subr.mxu0 0.0
  %3438 = vmatpush1.msra.mxu0 0.0
  %3439 = vmatprep.subr.mxu0 0.0
  %3440 = vmatpush1.msra.mxu0 0.0
  %3441 = vmatprep.subr.mxu0 0.0
  %3442 = vmatpush1.msra.mxu0 0.0
  %3443 = vmatprep.subr.mxu0 0.0
  %3444 = vmatpush1.msra.mxu0 0.0
  %3445 = vmatprep.subr.mxu0 0.0
  %3446 = vmatpush1.msra.mxu0 0.0
  %3447 = vmatprep.subr.mxu0 0.0
  %3448 = vmatpush1.msra.mxu0 0.0
  %3449 = vmatprep.subr.mxu0 0.0
  %3450 = vmatpush1.msra.mxu0 0.0
  %3451 = vmatprep.subr.mxu0 0.0
  %3452 = vmatpush1.msra.mxu0 0.0
  %3453 = vmatprep.subr.mxu0 0.0
  %3454 = vmatpush1.msra.mxu0 0.0
  %3455 = vmatprep.subr.mxu0 0.0
  %3456 = vmatpush1.msra.mxu0 0.0
  %3457 = vmatprep.subr.mxu0 0.0
  %3458 = vmatpush1.msra.mxu0 0.0
  %3459 = vmatprep.subr.mxu0 0.0
  %3460 = vmatpush1.msra.mxu0 0.0
  %3461 = vmatprep.subr.mxu0 0.0
  %3462 = vmatpush1.msra.mxu0 0.0
  %3463 = vmatprep.subr.mxu0 0.0
  %3464 = vmatpush1.msra.mxu0 0.0
  %3465 = vmatprep.subr.mxu0 0.0
  %3466 = vmatpush1.msra.mxu0 0.0
  %3467 = vmatprep.subr.mxu0 0.0
  %3468 = vmatpush1.msra.mxu0 0.0
  %3469 = vmatprep.subr.mxu0 0.0
  %3470 = vmatpush1.msra.mxu0 0.0
  %3471 = vmatprep.subr.mxu0 0.0
  %3472 = vmatpush1.msra.mxu0 0.0
  %3473 = vmatprep.subr.mxu0 0.0
  %3474 = vmatpush1.msra.mxu0 0.0
  %3475 = vmatprep.subr.mxu0 0.0
  %3476 = vmatpush1.msra.mxu0 0.0
  %3477 = vmatprep.mubr.f32.mxu0 0.0
  %3478 = vmatmul.mubr.f32.gmra.mrb[0].mxu0 %v3411
  %v3479 = vpop.f32.mrb[0].mxu0
  %v3480 = vadd.f32 0.0, %v3479
  %v3481 = vpop.f32.mrb[0].mxu0
  %3482 = vdwg.mxu0
  %v3483 = vadd.f32 %v3480, 1.0
  %v3484 = vsub.f32 %v3333, %v3407
  %3486 = vrot.lane.b32.xlu0 %v3483, 126
  %v3487 = vpop.permute.xlu0 %3486
  %v3489 = vmul.f32 %v3483, %v3487
  %v3490 = vmul.f32 %v3480, %v3480
  %3492 = vrot.lane.b32.xlu0 %v3490, 127
  %v3493 = vpop.permute.xlu0 %3492
  %v3495 = vsub.f32 %v3489, %v3493
  %v3496 = vrcp.pop %v3495
  %v3497 = vmul.f32 1.0, %v3496
  %3499 = vrot.lane.b32.xlu0 %v3484, 2
  %v3500 = vpop.permute.xlu0 %3499
  %v3502 = vmul.f32 %v3483, %v3500
  %v3503 = vmul.f32 %v3480, %v3484
  %3505 = vrot.lane.b32.xlu0 %v3503, 1
  %v3506 = vpop.permute.xlu0 %3505
  %v3508 = vsub.f32 %v3502, %v3506
  %3509 = vrot.lane.b32.xlu0 %v3484, 127
  %v3510 = vpop.permute.xlu0 %3509
  %v3512 = vmul.f32 %v3483, %v3510
  %3513 = vrot.lane.b32.xlu0 %v3484, 1
  %v3514 = vpop.permute.xlu0 %3513
  %v3516 = vmul.f32 %v3480, %v3514
  %3518 = vrot.lane.b32.xlu0 %v3516, 127
  %v3519 = vpop.permute.xlu0 %3518
  %v3521 = vsub.f32 %v3512, %v3519
  %3523 = vrot.lane.b32.xlu0 %v3508, 126
  %v3524 = vpop.permute.xlu0 %3523
  %3527 = vrot.lane.b32.xlu0 %v3521, 1
  %v3528 = vpop.permute.xlu0 %3527
  %v3530 = vsel %vm484, %v3524, %v3528
  %3532 = vset.pattern.permute.xlu0 0
  %3533 = vperm.xlu0 %3532, %v3497
  %v3534 = vpop.permute.xlu0 %3533
  %v3536 = vmul.f32 %v3530, %v3534
  %3537 = vrot.lane.b32.xlu0 %v3111, 126
  %v3538 = vpop.permute.xlu0 %3537
  %3541 = vrot.lane.b32.xlu0 %v3536, 2
  %v3542 = vpop.permute.xlu0 %3541
  %v3544 = vsel %vm499, %v3538, %v3542
  %v3545 = vmul.f32 %v3544, 0.1
  %v3546 = vadd.f32 %v3111, %v3545
  %s3547 = scalar_lea.vmem %s8, 56
  %3548 = vst.msk [vmem:[%s3547] sm:$0xff] %vm58, %v3546
  %v3550 = vsel %vm58, %v3546, 0
  %3552 = vmatprep.subr.mxu0 0.0
  %3553 = vmatpush1.msra.mxu0 %v64
  %3554 = vmatprep.subr.mxu0 0.0
  %3555 = vmatpush1.msra.mxu0 0.0
  %3556 = vmatprep.subr.mxu0 0.0
  %3557 = vmatpush1.msra.mxu0 0.0
  %3558 = vmatprep.subr.mxu0 0.0
  %3559 = vmatpush1.msra.mxu0 0.0
  %3560 = vmatprep.subr.mxu0 0.0
  %3561 = vmatpush1.msra.mxu0 0.0
  %3562 = vmatprep.subr.mxu0 0.0
  %3563 = vmatpush1.msra.mxu0 0.0
  %3564 = vmatprep.subr.mxu0 0.0
  %3565 = vmatpush1.msra.mxu0 0.0
  %3566 = vmatprep.subr.mxu0 0.0
  %3567 = vmatpush1.msra.mxu0 0.0
  %3568 = vmatprep.subr.mxu0 0.0
  %3569 = vmatpush1.msra.mxu0 0.0
  %3570 = vmatprep.subr.mxu0 0.0
  %3571 = vmatpush1.msra.mxu0 0.0
  %3572 = vmatprep.subr.mxu0 0.0
  %3573 = vmatpush1.msra.mxu0 0.0
  %3574 = vmatprep.subr.mxu0 0.0
  %3575 = vmatpush1.msra.mxu0 0.0
  %3576 = vmatprep.subr.mxu0 0.0
  %3577 = vmatpush1.msra.mxu0 0.0
  %3578 = vmatprep.subr.mxu0 0.0
  %3579 = vmatpush1.msra.mxu0 0.0
  %3580 = vmatprep.subr.mxu0 0.0
  %3581 = vmatpush1.msra.mxu0 0.0
  %3582 = vmatprep.subr.mxu0 0.0
  %3583 = vmatpush1.msra.mxu0 0.0
  %3584 = vmatprep.subr.mxu0 0.0
  %3585 = vmatpush1.msra.mxu0 0.0
  %3586 = vmatprep.subr.mxu0 0.0
  %3587 = vmatpush1.msra.mxu0 0.0
  %3588 = vmatprep.subr.mxu0 0.0
  %3589 = vmatpush1.msra.mxu0 0.0
  %3590 = vmatprep.subr.mxu0 0.0
  %3591 = vmatpush1.msra.mxu0 0.0
  %3592 = vmatprep.subr.mxu0 0.0
  %3593 = vmatpush1.msra.mxu0 0.0
  %3594 = vmatprep.subr.mxu0 0.0
  %3595 = vmatpush1.msra.mxu0 0.0
  %3596 = vmatprep.subr.mxu0 0.0
  %3597 = vmatpush1.msra.mxu0 0.0
  %3598 = vmatprep.subr.mxu0 0.0
  %3599 = vmatpush1.msra.mxu0 0.0
  %3600 = vmatprep.subr.mxu0 0.0
  %3601 = vmatpush1.msra.mxu0 0.0
  %3602 = vmatprep.subr.mxu0 0.0
  %3603 = vmatpush1.msra.mxu0 0.0
  %3604 = vmatprep.subr.mxu0 0.0
  %3605 = vmatpush1.msra.mxu0 0.0
  %3606 = vmatprep.subr.mxu0 0.0
  %3607 = vmatpush1.msra.mxu0 0.0
  %3608 = vmatprep.subr.mxu0 0.0
  %3609 = vmatpush1.msra.mxu0 0.0
  %3610 = vmatprep.subr.mxu0 0.0
  %3611 = vmatpush1.msra.mxu0 0.0
  %3612 = vmatprep.subr.mxu0 0.0
  %3613 = vmatpush1.msra.mxu0 0.0
  %3614 = vmatprep.subr.mxu0 0.0
  %3615 = vmatpush1.msra.mxu0 0.0
  %3616 = vmatprep.mubr.f32.mxu0 0.0
  %3617 = vmatmul.mubr.f32.gmra.mrb[0].mxu0 %v3550
  %v3618 = vpop.f32.mrb[0].mxu0
  %v3619 = vadd.f32 %v48, %v3618
  %v3620 = vpop.f32.mrb[0].mxu0
  %3621 = vdwg.mxu0
  %3622 = vmatprep.subr.mxu0 0.0
  %3623 = vmatpush1.msra.mxu0 %v137
  %3624 = vmatprep.subr.mxu0 0.0
  %3625 = vmatpush1.msra.mxu0 0.0
  %3626 = vmatprep.subr.mxu0 0.0
  %3627 = vmatpush1.msra.mxu0 0.0
  %3628 = vmatprep.subr.mxu0 0.0
  %3629 = vmatpush1.msra.mxu0 0.0
  %3630 = vmatprep.subr.mxu0 0.0
  %3631 = vmatpush1.msra.mxu0 0.0
  %3632 = vmatprep.subr.mxu0 0.0
  %3633 = vmatpush1.msra.mxu0 0.0
  %3634 = vmatprep.subr.mxu0 0.0
  %3635 = vmatpush1.msra.mxu0 0.0
  %3636 = vmatprep.subr.mxu0 0.0
  %3637 = vmatpush1.msra.mxu0 0.0
  %3638 = vmatprep.subr.mxu0 0.0
  %3639 = vmatpush1.msra.mxu0 0.0
  %3640 = vmatprep.subr.mxu0 0.0
  %3641 = vmatpush1.msra.mxu0 0.0
  %3642 = vmatprep.subr.mxu0 0.0
  %3643 = vmatpush1.msra.mxu0 0.0
  %3644 = vmatprep.subr.mxu0 0.0
  %3645 = vmatpush1.msra.mxu0 0.0
  %3646 = vmatprep.subr.mxu0 0.0
  %3647 = vmatpush1.msra.mxu0 0.0
  %3648 = vmatprep.subr.mxu0 0.0
  %3649 = vmatpush1.msra.mxu0 0.0
  %3650 = vmatprep.subr.mxu0 0.0
  %3651 = vmatpush1.msra.mxu0 0.0
  %3652 = vmatprep.subr.mxu0 0.0
  %3653 = vmatpush1.msra.mxu0 0.0
  %3654 = vmatprep.subr.mxu0 0.0
  %3655 = vmatpush1.msra.mxu0 0.0
  %3656 = vmatprep.subr.mxu0 0.0
  %3657 = vmatpush1.msra.mxu0 0.0
  %3658 = vmatprep.subr.mxu0 0.0
  %3659 = vmatpush1.msra.mxu0 0.0
  %3660 = vmatprep.subr.mxu0 0.0
  %3661 = vmatpush1.msra.mxu0 0.0
  %3662 = vmatprep.subr.mxu0 0.0
  %3663 = vmatpush1.msra.mxu0 0.0
  %3664 = vmatprep.subr.mxu0 0.0
  %3665 = vmatpush1.msra.mxu0 0.0
  %3666 = vmatprep.subr.mxu0 0.0
  %3667 = vmatpush1.msra.mxu0 0.0
  %3668 = vmatprep.subr.mxu0 0.0
  %3669 = vmatpush1.msra.mxu0 0.0
  %3670 = vmatprep.subr.mxu0 0.0
  %3671 = vmatpush1.msra.mxu0 0.0
  %3672 = vmatprep.subr.mxu0 0.0
  %3673 = vmatpush1.msra.mxu0 0.0
  %3674 = vmatprep.subr.mxu0 0.0
  %3675 = vmatpush1.msra.mxu0 0.0
  %3676 = vmatprep.subr.mxu0 0.0
  %3677 = vmatpush1.msra.mxu0 0.0
  %3678 = vmatprep.subr.mxu0 0.0
  %3679 = vmatpush1.msra.mxu0 0.0
  %3680 = vmatprep.subr.mxu0 0.0
  %3681 = vmatpush1.msra.mxu0 0.0
  %3682 = vmatprep.subr.mxu0 0.0
  %3683 = vmatpush1.msra.mxu0 0.0
  %3684 = vmatprep.subr.mxu0 0.0
  %3685 = vmatpush1.msra.mxu0 0.0
  %3686 = vmatprep.mubr.f32.mxu0 0.0
  %3687 = vmatmul.mubr.f32.gmra.mrb[0].mxu0 %v3550
  %v3688 = vpop.f32.mrb[0].mxu0
  %v3689 = vadd.f32 0.0, %v3688
  %v3690 = vpop.f32.mrb[0].mxu0
  %3691 = vdwg.mxu0
  %v3692 = vtanh.pop %v3619
  %v3693 = vmul.f32 %v3692, %v3692
  %v3694 = vsub.f32 1.0, %v3693
  %v3695 = vmul.f32 %v55, %v3694
  %v3696 = vmul.f32 %v213, %v3692
  %v3697 = vmul.f32 %v3696, %v3694
  %v3699 = vsel %vm216, %v3695, 0
  %3701 = vmatprep.subr.mxu0 0.0
  %3702 = vmatpush1.msra.mxu0 %v31
  %3703 = vmatprep.subr.mxu0 0.0
  %3704 = vmatpush1.msra.mxu0 %v32
  %3705 = vmatprep.subr.mxu0 0.0
  %3706 = vmatpush1.msra.mxu0 %v33
  %3707 = vmatprep.subr.mxu0 0.0
  %3708 = vmatpush1.msra.mxu0 %v34
  %3709 = vmatprep.subr.mxu0 0.0
  %3710 = vmatpush1.msra.mxu0 0.0
  %3711 = vmatprep.subr.mxu0 0.0
  %3712 = vmatpush1.msra.mxu0 0.0
  %3713 = vmatprep.subr.mxu0 0.0
  %3714 = vmatpush1.msra.mxu0 0.0
  %3715 = vmatprep.subr.mxu0 0.0
  %3716 = vmatpush1.msra.mxu0 0.0
  %3717 = vmatprep.subr.mxu0 0.0
  %3718 = vmatpush1.msra.mxu0 0.0
  %3719 = vmatprep.subr.mxu0 0.0
  %3720 = vmatpush1.msra.mxu0 0.0
  %3721 = vmatprep.subr.mxu0 0.0
  %3722 = vmatpush1.msra.mxu0 0.0
  %3723 = vmatprep.subr.mxu0 0.0
  %3724 = vmatpush1.msra.mxu0 0.0
  %3725 = vmatprep.subr.mxu0 0.0
  %3726 = vmatpush1.msra.mxu0 0.0
  %3727 = vmatprep.subr.mxu0 0.0
  %3728 = vmatpush1.msra.mxu0 0.0
  %3729 = vmatprep.subr.mxu0 0.0
  %3730 = vmatpush1.msra.mxu0 0.0
  %3731 = vmatprep.subr.mxu0 0.0
  %3732 = vmatpush1.msra.mxu0 0.0
  %3733 = vmatprep.subr.mxu0 0.0
  %3734 = vmatpush1.msra.mxu0 0.0
  %3735 = vmatprep.subr.mxu0 0.0
  %3736 = vmatpush1.msra.mxu0 0.0
  %3737 = vmatprep.subr.mxu0 0.0
  %3738 = vmatpush1.msra.mxu0 0.0
  %3739 = vmatprep.subr.mxu0 0.0
  %3740 = vmatpush1.msra.mxu0 0.0
  %3741 = vmatprep.subr.mxu0 0.0
  %3742 = vmatpush1.msra.mxu0 0.0
  %3743 = vmatprep.subr.mxu0 0.0
  %3744 = vmatpush1.msra.mxu0 0.0
  %3745 = vmatprep.subr.mxu0 0.0
  %3746 = vmatpush1.msra.mxu0 0.0
  %3747 = vmatprep.subr.mxu0 0.0
  %3748 = vmatpush1.msra.mxu0 0.0
  %3749 = vmatprep.subr.mxu0 0.0
  %3750 = vmatpush1.msra.mxu0 0.0
  %3751 = vmatprep.subr.mxu0 0.0
  %3752 = vmatpush1.msra.mxu0 0.0
  %3753 = vmatprep.subr.mxu0 0.0
  %3754 = vmatpush1.msra.mxu0 0.0
  %3755 = vmatprep.subr.mxu0 0.0
  %3756 = vmatpush1.msra.mxu0 0.0
  %3757 = vmatprep.subr.mxu0 0.0
  %3758 = vmatpush1.msra.mxu0 0.0
  %3759 = vmatprep.subr.mxu0 0.0
  %3760 = vmatpush1.msra.mxu0 0.0
  %3761 = vmatprep.subr.mxu0 0.0
  %3762 = vmatpush1.msra.mxu0 0.0
  %3763 = vmatprep.subr.mxu0 0.0
  %3764 = vmatpush1.msra.mxu0 0.0
  %3765 = vmatprep.mubr.f32.mxu0 0.0
  %3766 = vmatmul.mubr.f32.gmra.mrb[0].mxu0 %v3699
  %v3767 = vpop.f32.mrb[0].mxu0
  %v3768 = vadd.f32 0.0, %v3767
  %v3769 = vpop.f32.mrb[0].mxu0
  %3770 = vdwg.mxu0
  %v3771 = vmul.f32 %v3697, %v3689
  %v3773 = vsel %vm216, %v3771, 0
  %3775 = vmatprep.subr.mxu0 0.0
  %3776 = vmatpush1.msra.mxu0 %v35
  %3777 = vmatprep.subr.mxu0 0.0
  %3778 = vmatpush1.msra.mxu0 %v36
  %3779 = vmatprep.subr.mxu0 0.0
  %3780 = vmatpush1.msra.mxu0 %v37
  %3781 = vmatprep.subr.mxu0 0.0
  %3782 = vmatpush1.msra.mxu0 %v38
  %3783 = vmatprep.subr.mxu0 0.0
  %3784 = vmatpush1.msra.mxu0 0.0
  %3785 = vmatprep.subr.mxu0 0.0
  %3786 = vmatpush1.msra.mxu0 0.0
  %3787 = vmatprep.subr.mxu0 0.0
  %3788 = vmatpush1.msra.mxu0 0.0
  %3789 = vmatprep.subr.mxu0 0.0
  %3790 = vmatpush1.msra.mxu0 0.0
  %3791 = vmatprep.subr.mxu0 0.0
  %3792 = vmatpush1.msra.mxu0 0.0
  %3793 = vmatprep.subr.mxu0 0.0
  %3794 = vmatpush1.msra.mxu0 0.0
  %3795 = vmatprep.subr.mxu0 0.0
  %3796 = vmatpush1.msra.mxu0 0.0
  %3797 = vmatprep.subr.mxu0 0.0
  %3798 = vmatpush1.msra.mxu0 0.0
  %3799 = vmatprep.subr.mxu0 0.0
  %3800 = vmatpush1.msra.mxu0 0.0
  %3801 = vmatprep.subr.mxu0 0.0
  %3802 = vmatpush1.msra.mxu0 0.0
  %3803 = vmatprep.subr.mxu0 0.0
  %3804 = vmatpush1.msra.mxu0 0.0
  %3805 = vmatprep.subr.mxu0 0.0
  %3806 = vmatpush1.msra.mxu0 0.0
  %3807 = vmatprep.subr.mxu0 0.0
  %3808 = vmatpush1.msra.mxu0 0.0
  %3809 = vmatprep.subr.mxu0 0.0
  %3810 = vmatpush1.msra.mxu0 0.0
  %3811 = vmatprep.subr.mxu0 0.0
  %3812 = vmatpush1.msra.mxu0 0.0
  %3813 = vmatprep.subr.mxu0 0.0
  %3814 = vmatpush1.msra.mxu0 0.0
  %3815 = vmatprep.subr.mxu0 0.0
  %3816 = vmatpush1.msra.mxu0 0.0
  %3817 = vmatprep.subr.mxu0 0.0
  %3818 = vmatpush1.msra.mxu0 0.0
  %3819 = vmatprep.subr.mxu0 0.0
  %3820 = vmatpush1.msra.mxu0 0.0
  %3821 = vmatprep.subr.mxu0 0.0
  %3822 = vmatpush1.msra.mxu0 0.0
  %3823 = vmatprep.subr.mxu0 0.0
  %3824 = vmatpush1.msra.mxu0 0.0
  %3825 = vmatprep.subr.mxu0 0.0
  %3826 = vmatpush1.msra.mxu0 0.0
  %3827 = vmatprep.subr.mxu0 0.0
  %3828 = vmatpush1.msra.mxu0 0.0
  %3829 = vmatprep.subr.mxu0 0.0
  %3830 = vmatpush1.msra.mxu0 0.0
  %3831 = vmatprep.subr.mxu0 0.0
  %3832 = vmatpush1.msra.mxu0 0.0
  %3833 = vmatprep.subr.mxu0 0.0
  %3834 = vmatpush1.msra.mxu0 0.0
  %3835 = vmatprep.subr.mxu0 0.0
  %3836 = vmatpush1.msra.mxu0 0.0
  %3837 = vmatprep.subr.mxu0 0.0
  %3838 = vmatpush1.msra.mxu0 0.0
  %3839 = vmatprep.mubr.f32.mxu0 0.0
  %3840 = vmatmul.mubr.f32.gmra.mrb[0].mxu0 %v3773
  %v3841 = vpop.f32.mrb[0].mxu0
  %v3842 = vadd.f32 0.0, %v3841
  %v3843 = vpop.f32.mrb[0].mxu0
  %3844 = vdwg.mxu0
  %v3846 = vsel %vm216, %v3697, 0
  %3848 = vmatprep.subr.mxu0 0.0
  %3849 = vmatpush1.msra.mxu0 %v39
  %3850 = vmatprep.subr.mxu0 0.0
  %3851 = vmatpush1.msra.mxu0 %v40
  %3852 = vmatprep.subr.mxu0 0.0
  %3853 = vmatpush1.msra.mxu0 %v41
  %3854 = vmatprep.subr.mxu0 0.0
  %3855 = vmatpush1.msra.mxu0 %v42
  %3856 = vmatprep.subr.mxu0 0.0
  %3857 = vmatpush1.msra.mxu0 0.0
  %3858 = vmatprep.subr.mxu0 0.0
  %3859 = vmatpush1.msra.mxu0 0.0
  %3860 = vmatprep.subr.mxu0 0.0
  %3861 = vmatpush1.msra.mxu0 0.0
  %3862 = vmatprep.subr.mxu0 0.0
  %3863 = vmatpush1.msra.mxu0 0.0
  %3864 = vmatprep.subr.mxu0 0.0
  %3865 = vmatpush1.msra.mxu0 0.0
  %3866 = vmatprep.subr.mxu0 0.0
  %3867 = vmatpush1.msra.mxu0 0.0
  %3868 = vmatprep.subr.mxu0 0.0
  %3869 = vmatpush1.msra.mxu0 0.0
  %3870 = vmatprep.subr.mxu0 0.0
  %3871 = vmatpush1.msra.mxu0 0.0
  %3872 = vmatprep.subr.mxu0 0.0
  %3873 = vmatpush1.msra.mxu0 0.0
  %3874 = vmatprep.subr.mxu0 0.0
  %3875 = vmatpush1.msra.mxu0 0.0
  %3876 = vmatprep.subr.mxu0 0.0
  %3877 = vmatpush1.msra.mxu0 0.0
  %3878 = vmatprep.subr.mxu0 0.0
  %3879 = vmatpush1.msra.mxu0 0.0
  %3880 = vmatprep.subr.mxu0 0.0
  %3881 = vmatpush1.msra.mxu0 0.0
  %3882 = vmatprep.subr.mxu0 0.0
  %3883 = vmatpush1.msra.mxu0 0.0
  %3884 = vmatprep.subr.mxu0 0.0
  %3885 = vmatpush1.msra.mxu0 0.0
  %3886 = vmatprep.subr.mxu0 0.0
  %3887 = vmatpush1.msra.mxu0 0.0
  %3888 = vmatprep.subr.mxu0 0.0
  %3889 = vmatpush1.msra.mxu0 0.0
  %3890 = vmatprep.subr.mxu0 0.0
  %3891 = vmatpush1.msra.mxu0 0.0
  %3892 = vmatprep.subr.mxu0 0.0
  %3893 = vmatpush1.msra.mxu0 0.0
  %3894 = vmatprep.subr.mxu0 0.0
  %3895 = vmatpush1.msra.mxu0 0.0
  %3896 = vmatprep.subr.mxu0 0.0
  %3897 = vmatpush1.msra.mxu0 0.0
  %3898 = vmatprep.subr.mxu0 0.0
  %3899 = vmatpush1.msra.mxu0 0.0
  %3900 = vmatprep.subr.mxu0 0.0
  %3901 = vmatpush1.msra.mxu0 0.0
  %3902 = vmatprep.subr.mxu0 0.0
  %3903 = vmatpush1.msra.mxu0 0.0
  %3904 = vmatprep.subr.mxu0 0.0
  %3905 = vmatpush1.msra.mxu0 0.0
  %3906 = vmatprep.subr.mxu0 0.0
  %3907 = vmatpush1.msra.mxu0 0.0
  %3908 = vmatprep.subr.mxu0 0.0
  %3909 = vmatpush1.msra.mxu0 0.0
  %3910 = vmatprep.subr.mxu0 0.0
  %3911 = vmatpush1.msra.mxu0 0.0
  %3912 = vmatprep.mubr.f32.mxu0 0.0
  %3913 = vmatmul.mubr.f32.gmra.mrb[0].mxu0 %v3846
  %v3914 = vpop.f32.mrb[0].mxu0
  %v3915 = vadd.f32 0.0, %v3914
  %v3916 = vpop.f32.mrb[0].mxu0
  %3917 = vdwg.mxu0
  %v3918 = vadd.f32 %v3915, 1.0
  %v3919 = vsub.f32 %v3768, %v3842
  %3921 = vrot.lane.b32.xlu0 %v3918, 126
  %v3922 = vpop.permute.xlu0 %3921
  %v3924 = vmul.f32 %v3918, %v3922
  %v3925 = vmul.f32 %v3915, %v3915
  %3927 = vrot.lane.b32.xlu0 %v3925, 127
  %v3928 = vpop.permute.xlu0 %3927
  %v3930 = vsub.f32 %v3924, %v3928
  %v3931 = vrcp.pop %v3930
  %v3932 = vmul.f32 1.0, %v3931
  %3934 = vrot.lane.b32.xlu0 %v3919, 2
  %v3935 = vpop.permute.xlu0 %3934
  %v3937 = vmul.f32 %v3918, %v3935
  %v3938 = vmul.f32 %v3915, %v3919
  %3940 = vrot.lane.b32.xlu0 %v3938, 1
  %v3941 = vpop.permute.xlu0 %3940
  %v3943 = vsub.f32 %v3937, %v3941
  %3944 = vrot.lane.b32.xlu0 %v3919, 127
  %v3945 = vpop.permute.xlu0 %3944
  %v3947 = vmul.f32 %v3918, %v3945
  %3948 = vrot.lane.b32.xlu0 %v3919, 1
  %v3949 = vpop.permute.xlu0 %3948
  %v3951 = vmul.f32 %v3915, %v3949
  %3953 = vrot.lane.b32.xlu0 %v3951, 127
  %v3954 = vpop.permute.xlu0 %3953
  %v3956 = vsub.f32 %v3947, %v3954
  %3958 = vrot.lane.b32.xlu0 %v3943, 126
  %v3959 = vpop.permute.xlu0 %3958
  %3962 = vrot.lane.b32.xlu0 %v3956, 1
  %v3963 = vpop.permute.xlu0 %3962
  %v3965 = vsel %vm484, %v3959, %v3963
  %3967 = vset.pattern.permute.xlu0 0
  %3968 = vperm.xlu0 %3967, %v3932
  %v3969 = vpop.permute.xlu0 %3968
  %v3971 = vmul.f32 %v3965, %v3969
  %3972 = vrot.lane.b32.xlu0 %v3546, 126
  %v3973 = vpop.permute.xlu0 %3972
  %3976 = vrot.lane.b32.xlu0 %v3971, 2
  %v3977 = vpop.permute.xlu0 %3976
  %v3979 = vsel %vm499, %v3973, %v3977
  %v3980 = vmul.f32 %v3979, 0.1
  %v3981 = vadd.f32 %v3546, %v3980
  %s3982 = scalar_lea.vmem %s8, 64
  %3983 = vst.msk [vmem:[%s3982] sm:$0xff] %vm58, %v3981
  %v3985 = vsel %vm58, %v3981, 0
  %3987 = vmatprep.subr.mxu0 0.0
  %3988 = vmatpush1.msra.mxu0 %v64
  %3989 = vmatprep.subr.mxu0 0.0
  %3990 = vmatpush1.msra.mxu0 0.0
  %3991 = vmatprep.subr.mxu0 0.0
  %3992 = vmatpush1.msra.mxu0 0.0
  %3993 = vmatprep.subr.mxu0 0.0
  %3994 = vmatpush1.msra.mxu0 0.0
  %3995 = vmatprep.subr.mxu0 0.0
  %3996 = vmatpush1.msra.mxu0 0.0
  %3997 = vmatprep.subr.mxu0 0.0
  %3998 = vmatpush1.msra.mxu0 0.0
  %3999 = vmatprep.subr.mxu0 0.0
  %4000 = vmatpush1.msra.mxu0 0.0
  %4001 = vmatprep.subr.mxu0 0.0
  %4002 = vmatpush1.msra.mxu0 0.0
  %4003 = vmatprep.subr.mxu0 0.0
  %4004 = vmatpush1.msra.mxu0 0.0
  %4005 = vmatprep.subr.mxu0 0.0
  %4006 = vmatpush1.msra.mxu0 0.0
  %4007 = vmatprep.subr.mxu0 0.0
  %4008 = vmatpush1.msra.mxu0 0.0
  %4009 = vmatprep.subr.mxu0 0.0
  %4010 = vmatpush1.msra.mxu0 0.0
  %4011 = vmatprep.subr.mxu0 0.0
  %4012 = vmatpush1.msra.mxu0 0.0
  %4013 = vmatprep.subr.mxu0 0.0
  %4014 = vmatpush1.msra.mxu0 0.0
  %4015 = vmatprep.subr.mxu0 0.0
  %4016 = vmatpush1.msra.mxu0 0.0
  %4017 = vmatprep.subr.mxu0 0.0
  %4018 = vmatpush1.msra.mxu0 0.0
  %4019 = vmatprep.subr.mxu0 0.0
  %4020 = vmatpush1.msra.mxu0 0.0
  %4021 = vmatprep.subr.mxu0 0.0
  %4022 = vmatpush1.msra.mxu0 0.0
  %4023 = vmatprep.subr.mxu0 0.0
  %4024 = vmatpush1.msra.mxu0 0.0
  %4025 = vmatprep.subr.mxu0 0.0
  %4026 = vmatpush1.msra.mxu0 0.0
  %4027 = vmatprep.subr.mxu0 0.0
  %4028 = vmatpush1.msra.mxu0 0.0
  %4029 = vmatprep.subr.mxu0 0.0
  %4030 = vmatpush1.msra.mxu0 0.0
  %4031 = vmatprep.subr.mxu0 0.0
  %4032 = vmatpush1.msra.mxu0 0.0
  %4033 = vmatprep.subr.mxu0 0.0
  %4034 = vmatpush1.msra.mxu0 0.0
  %4035 = vmatprep.subr.mxu0 0.0
  %4036 = vmatpush1.msra.mxu0 0.0
  %4037 = vmatprep.subr.mxu0 0.0
  %4038 = vmatpush1.msra.mxu0 0.0
  %4039 = vmatprep.subr.mxu0 0.0
  %4040 = vmatpush1.msra.mxu0 0.0
  %4041 = vmatprep.subr.mxu0 0.0
  %4042 = vmatpush1.msra.mxu0 0.0
  %4043 = vmatprep.subr.mxu0 0.0
  %4044 = vmatpush1.msra.mxu0 0.0
  %4045 = vmatprep.subr.mxu0 0.0
  %4046 = vmatpush1.msra.mxu0 0.0
  %4047 = vmatprep.subr.mxu0 0.0
  %4048 = vmatpush1.msra.mxu0 0.0
  %4049 = vmatprep.subr.mxu0 0.0
  %4050 = vmatpush1.msra.mxu0 0.0
  %4051 = vmatprep.mubr.f32.mxu0 0.0
  %4052 = vmatmul.mubr.f32.gmra.mrb[0].mxu0 %v3985
  %v4053 = vpop.f32.mrb[0].mxu0
  %v4054 = vadd.f32 %v48, %v4053
  %v4055 = vpop.f32.mrb[0].mxu0
  %4056 = vdwg.mxu0
  %4057 = vmatprep.subr.mxu0 0.0
  %4058 = vmatpush1.msra.mxu0 %v137
  %4059 = vmatprep.subr.mxu0 0.0
  %4060 = vmatpush1.msra.mxu0 0.0
  %4061 = vmatprep.subr.mxu0 0.0
  %4062 = vmatpush1.msra.mxu0 0.0
  %4063 = vmatprep.subr.mxu0 0.0
  %4064 = vmatpush1.msra.mxu0 0.0
  %4065 = vmatprep.subr.mxu0 0.0
  %4066 = vmatpush1.msra.mxu0 0.0
  %4067 = vmatprep.subr.mxu0 0.0
  %4068 = vmatpush1.msra.mxu0 0.0
  %4069 = vmatprep.subr.mxu0 0.0
  %4070 = vmatpush1.msra.mxu0 0.0
  %4071 = vmatprep.subr.mxu0 0.0
  %4072 = vmatpush1.msra.mxu0 0.0
  %4073 = vmatprep.subr.mxu0 0.0
  %4074 = vmatpush1.msra.mxu0 0.0
  %4075 = vmatprep.subr.mxu0 0.0
  %4076 = vmatpush1.msra.mxu0 0.0
  %4077 = vmatprep.subr.mxu0 0.0
  %4078 = vmatpush1.msra.mxu0 0.0
  %4079 = vmatprep.subr.mxu0 0.0
  %4080 = vmatpush1.msra.mxu0 0.0
  %4081 = vmatprep.subr.mxu0 0.0
  %4082 = vmatpush1.msra.mxu0 0.0
  %4083 = vmatprep.subr.mxu0 0.0
  %4084 = vmatpush1.msra.mxu0 0.0
  %4085 = vmatprep.subr.mxu0 0.0
  %4086 = vmatpush1.msra.mxu0 0.0
  %4087 = vmatprep.subr.mxu0 0.0
  %4088 = vmatpush1.msra.mxu0 0.0
  %4089 = vmatprep.subr.mxu0 0.0
  %4090 = vmatpush1.msra.mxu0 0.0
  %4091 = vmatprep.subr.mxu0 0.0
  %4092 = vmatpush1.msra.mxu0 0.0
  %4093 = vmatprep.subr.mxu0 0.0
  %4094 = vmatpush1.msra.mxu0 0.0
  %4095 = vmatprep.subr.mxu0 0.0
  %4096 = vmatpush1.msra.mxu0 0.0
  %4097 = vmatprep.subr.mxu0 0.0
  %4098 = vmatpush1.msra.mxu0 0.0
  %4099 = vmatprep.subr.mxu0 0.0
  %4100 = vmatpush1.msra.mxu0 0.0
  %4101 = vmatprep.subr.mxu0 0.0
  %4102 = vmatpush1.msra.mxu0 0.0
  %4103 = vmatprep.subr.mxu0 0.0
  %4104 = vmatpush1.msra.mxu0 0.0
  %4105 = vmatprep.subr.mxu0 0.0
  %4106 = vmatpush1.msra.mxu0 0.0
  %4107 = vmatprep.subr.mxu0 0.0
  %4108 = vmatpush1.msra.mxu0 0.0
  %4109 = vmatprep.subr.mxu0 0.0
  %4110 = vmatpush1.msra.mxu0 0.0
  %4111 = vmatprep.subr.mxu0 0.0
  %4112 = vmatpush1.msra.mxu0 0.0
  %4113 = vmatprep.subr.mxu0 0.0
  %4114 = vmatpush1.msra.mxu0 0.0
  %4115 = vmatprep.subr.mxu0 0.0
  %4116 = vmatpush1.msra.mxu0 0.0
  %4117 = vmatprep.subr.mxu0 0.0
  %4118 = vmatpush1.msra.mxu0 0.0
  %4119 = vmatprep.subr.mxu0 0.0
  %4120 = vmatpush1.msra.mxu0 0.0
  %4121 = vmatprep.mubr.f32.mxu0 0.0
  %4122 = vmatmul.mubr.f32.gmra.mrb[0].mxu0 %v3985
  %v4123 = vpop.f32.mrb[0].mxu0
  %v4124 = vadd.f32 0.0, %v4123
  %v4125 = vpop.f32.mrb[0].mxu0
  %4126 = vdwg.mxu0
  %v4127 = vtanh.pop %v4054
  %v4128 = vmul.f32 %v4127, %v4127
  %v4129 = vsub.f32 1.0, %v4128
  %v4130 = vmul.f32 %v55, %v4129
  %v4131 = vmul.f32 %v213, %v4127
  %v4132 = vmul.f32 %v4131, %v4129
  %v4134 = vsel %vm216, %v4130, 0
  %4136 = vmatprep.subr.mxu0 0.0
  %4137 = vmatpush1.msra.mxu0 %v31
  %4138 = vmatprep.subr.mxu0 0.0
  %4139 = vmatpush1.msra.mxu0 %v32
  %4140 = vmatprep.subr.mxu0 0.0
  %4141 = vmatpush1.msra.mxu0 %v33
  %4142 = vmatprep.subr.mxu0 0.0
  %4143 = vmatpush1.msra.mxu0 %v34
  %4144 = vmatprep.subr.mxu0 0.0
  %4145 = vmatpush1.msra.mxu0 0.0
  %4146 = vmatprep.subr.mxu0 0.0
  %4147 = vmatpush1.msra.mxu0 0.0
  %4148 = vmatprep.subr.mxu0 0.0
  %4149 = vmatpush1.msra.mxu0 0.0
  %4150 = vmatprep.subr.mxu0 0.0
  %4151 = vmatpush1.msra.mxu0 0.0
  %4152 = vmatprep.subr.mxu0 0.0
  %4153 = vmatpush1.msra.mxu0 0.0
  %4154 = vmatprep.subr.mxu0 0.0
  %4155 = vmatpush1.msra.mxu0 0.0
  %4156 = vmatprep.subr.mxu0 0.0
  %4157 = vmatpush1.msra.mxu0 0.0
  %4158 = vmatprep.subr.mxu0 0.0
  %4159 = vmatpush1.msra.mxu0 0.0
  %4160 = vmatprep.subr.mxu0 0.0
  %4161 = vmatpush1.msra.mxu0 0.0
  %4162 = vmatprep.subr.mxu0 0.0
  %4163 = vmatpush1.msra.mxu0 0.0
  %4164 = vmatprep.subr.mxu0 0.0
  %4165 = vmatpush1.msra.mxu0 0.0
  %4166 = vmatprep.subr.mxu0 0.0
  %4167 = vmatpush1.msra.mxu0 0.0
  %4168 = vmatprep.subr.mxu0 0.0
  %4169 = vmatpush1.msra.mxu0 0.0
  %4170 = vmatprep.subr.mxu0 0.0
  %4171 = vmatpush1.msra.mxu0 0.0
  %4172 = vmatprep.subr.mxu0 0.0
  %4173 = vmatpush1.msra.mxu0 0.0
  %4174 = vmatprep.subr.mxu0 0.0
  %4175 = vmatpush1.msra.mxu0 0.0
  %4176 = vmatprep.subr.mxu0 0.0
  %4177 = vmatpush1.msra.mxu0 0.0
  %4178 = vmatprep.subr.mxu0 0.0
  %4179 = vmatpush1.msra.mxu0 0.0
  %4180 = vmatprep.subr.mxu0 0.0
  %4181 = vmatpush1.msra.mxu0 0.0
  %4182 = vmatprep.subr.mxu0 0.0
  %4183 = vmatpush1.msra.mxu0 0.0
  %4184 = vmatprep.subr.mxu0 0.0
  %4185 = vmatpush1.msra.mxu0 0.0
  %4186 = vmatprep.subr.mxu0 0.0
  %4187 = vmatpush1.msra.mxu0 0.0
  %4188 = vmatprep.subr.mxu0 0.0
  %4189 = vmatpush1.msra.mxu0 0.0
  %4190 = vmatprep.subr.mxu0 0.0
  %4191 = vmatpush1.msra.mxu0 0.0
  %4192 = vmatprep.subr.mxu0 0.0
  %4193 = vmatpush1.msra.mxu0 0.0
  %4194 = vmatprep.subr.mxu0 0.0
  %4195 = vmatpush1.msra.mxu0 0.0
  %4196 = vmatprep.subr.mxu0 0.0
  %4197 = vmatpush1.msra.mxu0 0.0
  %4198 = vmatprep.subr.mxu0 0.0
  %4199 = vmatpush1.msra.mxu0 0.0
  %4200 = vmatprep.mubr.f32.mxu0 0.0
  %4201 = vmatmul.mubr.f32.gmra.mrb[0].mxu0 %v4134
  %v4202 = vpop.f32.mrb[0].mxu0
  %v4203 = vadd.f32 0.0, %v4202
  %v4204 = vpop.f32.mrb[0].mxu0
  %4205 = vdwg.mxu0
  %v4206 = vmul.f32 %v4132, %v4124
  %v4208 = vsel %vm216, %v4206, 0
  %4210 = vmatprep.subr.mxu0 0.0
  %4211 = vmatpush1.msra.mxu0 %v35
  %4212 = vmatprep.subr.mxu0 0.0
  %4213 = vmatpush1.msra.mxu0 %v36
  %4214 = vmatprep.subr.mxu0 0.0
  %4215 = vmatpush1.msra.mxu0 %v37
  %4216 = vmatprep.subr.mxu0 0.0
  %4217 = vmatpush1.msra.mxu0 %v38
  %4218 = vmatprep.subr.mxu0 0.0
  %4219 = vmatpush1.msra.mxu0 0.0
  %4220 = vmatprep.subr.mxu0 0.0
  %4221 = vmatpush1.msra.mxu0 0.0
  %4222 = vmatprep.subr.mxu0 0.0
  %4223 = vmatpush1.msra.mxu0 0.0
  %4224 = vmatprep.subr.mxu0 0.0
  %4225 = vmatpush1.msra.mxu0 0.0
  %4226 = vmatprep.subr.mxu0 0.0
  %4227 = vmatpush1.msra.mxu0 0.0
  %4228 = vmatprep.subr.mxu0 0.0
  %4229 = vmatpush1.msra.mxu0 0.0
  %4230 = vmatprep.subr.mxu0 0.0
  %4231 = vmatpush1.msra.mxu0 0.0
  %4232 = vmatprep.subr.mxu0 0.0
  %4233 = vmatpush1.msra.mxu0 0.0
  %4234 = vmatprep.subr.mxu0 0.0
  %4235 = vmatpush1.msra.mxu0 0.0
  %4236 = vmatprep.subr.mxu0 0.0
  %4237 = vmatpush1.msra.mxu0 0.0
  %4238 = vmatprep.subr.mxu0 0.0
  %4239 = vmatpush1.msra.mxu0 0.0
  %4240 = vmatprep.subr.mxu0 0.0
  %4241 = vmatpush1.msra.mxu0 0.0
  %4242 = vmatprep.subr.mxu0 0.0
  %4243 = vmatpush1.msra.mxu0 0.0
  %4244 = vmatprep.subr.mxu0 0.0
  %4245 = vmatpush1.msra.mxu0 0.0
  %4246 = vmatprep.subr.mxu0 0.0
  %4247 = vmatpush1.msra.mxu0 0.0
  %4248 = vmatprep.subr.mxu0 0.0
  %4249 = vmatpush1.msra.mxu0 0.0
  %4250 = vmatprep.subr.mxu0 0.0
  %4251 = vmatpush1.msra.mxu0 0.0
  %4252 = vmatprep.subr.mxu0 0.0
  %4253 = vmatpush1.msra.mxu0 0.0
  %4254 = vmatprep.subr.mxu0 0.0
  %4255 = vmatpush1.msra.mxu0 0.0
  %4256 = vmatprep.subr.mxu0 0.0
  %4257 = vmatpush1.msra.mxu0 0.0
  %4258 = vmatprep.subr.mxu0 0.0
  %4259 = vmatpush1.msra.mxu0 0.0
  %4260 = vmatprep.subr.mxu0 0.0
  %4261 = vmatpush1.msra.mxu0 0.0
  %4262 = vmatprep.subr.mxu0 0.0
  %4263 = vmatpush1.msra.mxu0 0.0
  %4264 = vmatprep.subr.mxu0 0.0
  %4265 = vmatpush1.msra.mxu0 0.0
  %4266 = vmatprep.subr.mxu0 0.0
  %4267 = vmatpush1.msra.mxu0 0.0
  %4268 = vmatprep.subr.mxu0 0.0
  %4269 = vmatpush1.msra.mxu0 0.0
  %4270 = vmatprep.subr.mxu0 0.0
  %4271 = vmatpush1.msra.mxu0 0.0
  %4272 = vmatprep.subr.mxu0 0.0
  %4273 = vmatpush1.msra.mxu0 0.0
  %4274 = vmatprep.mubr.f32.mxu0 0.0
  %4275 = vmatmul.mubr.f32.gmra.mrb[0].mxu0 %v4208
  %v4276 = vpop.f32.mrb[0].mxu0
  %v4277 = vadd.f32 0.0, %v4276
  %v4278 = vpop.f32.mrb[0].mxu0
  %4279 = vdwg.mxu0
  %v4281 = vsel %vm216, %v4132, 0
  %4283 = vmatprep.subr.mxu0 0.0
  %4284 = vmatpush1.msra.mxu0 %v39
  %4285 = vmatprep.subr.mxu0 0.0
  %4286 = vmatpush1.msra.mxu0 %v40
  %4287 = vmatprep.subr.mxu0 0.0
  %4288 = vmatpush1.msra.mxu0 %v41
  %4289 = vmatprep.subr.mxu0 0.0
  %4290 = vmatpush1.msra.mxu0 %v42
  %4291 = vmatprep.subr.mxu0 0.0
  %4292 = vmatpush1.msra.mxu0 0.0
  %4293 = vmatprep.subr.mxu0 0.0
  %4294 = vmatpush1.msra.mxu0 0.0
  %4295 = vmatprep.subr.mxu0 0.0
  %4296 = vmatpush1.msra.mxu0 0.0
  %4297 = vmatprep.subr.mxu0 0.0
  %4298 = vmatpush1.msra.mxu0 0.0
  %4299 = vmatprep.subr.mxu0 0.0
  %4300 = vmatpush1.msra.mxu0 0.0
  %4301 = vmatprep.subr.mxu0 0.0
  %4302 = vmatpush1.msra.mxu0 0.0
  %4303 = vmatprep.subr.mxu0 0.0
  %4304 = vmatpush1.msra.mxu0 0.0
  %4305 = vmatprep.subr.mxu0 0.0
  %4306 = vmatpush1.msra.mxu0 0.0
  %4307 = vmatprep.subr.mxu0 0.0
  %4308 = vmatpush1.msra.mxu0 0.0
  %4309 = vmatprep.subr.mxu0 0.0
  %4310 = vmatpush1.msra.mxu0 0.0
  %4311 = vmatprep.subr.mxu0 0.0
  %4312 = vmatpush1.msra.mxu0 0.0
  %4313 = vmatprep.subr.mxu0 0.0
  %4314 = vmatpush1.msra.mxu0 0.0
  %4315 = vmatprep.subr.mxu0 0.0
  %4316 = vmatpush1.msra.mxu0 0.0
  %4317 = vmatprep.subr.mxu0 0.0
  %4318 = vmatpush1.msra.mxu0 0.0
  %4319 = vmatprep.subr.mxu0 0.0
  %4320 = vmatpush1.msra.mxu0 0.0
  %4321 = vmatprep.subr.mxu0 0.0
  %4322 = vmatpush1.msra.mxu0 0.0
  %4323 = vmatprep.subr.mxu0 0.0
  %4324 = vmatpush1.msra.mxu0 0.0
  %4325 = vmatprep.subr.mxu0 0.0
  %4326 = vmatpush1.msra.mxu0 0.0
  %4327 = vmatprep.subr.mxu0 0.0
  %4328 = vmatpush1.msra.mxu0 0.0
  %4329 = vmatprep.subr.mxu0 0.0
  %4330 = vmatpush1.msra.mxu0 0.0
  %4331 = vmatprep.subr.mxu0 0.0
  %4332 = vmatpush1.msra.mxu0 0.0
  %4333 = vmatprep.subr.mxu0 0.0
  %4334 = vmatpush1.msra.mxu0 0.0
  %4335 = vmatprep.subr.mxu0 0.0
  %4336 = vmatpush1.msra.mxu0 0.0
  %4337 = vmatprep.subr.mxu0 0.0
  %4338 = vmatpush1.msra.mxu0 0.0
  %4339 = vmatprep.subr.mxu0 0.0
  %4340 = vmatpush1.msra.mxu0 0.0
  %4341 = vmatprep.subr.mxu0 0.0
  %4342 = vmatpush1.msra.mxu0 0.0
  %4343 = vmatprep.subr.mxu0 0.0
  %4344 = vmatpush1.msra.mxu0 0.0
  %4345 = vmatprep.subr.mxu0 0.0
  %4346 = vmatpush1.msra.mxu0 0.0
  %4347 = vmatprep.mubr.f32.mxu0 0.0
  %4348 = vmatmul.mubr.f32.gmra.mrb[0].mxu0 %v4281
  %v4349 = vpop.f32.mrb[0].mxu0
  %v4350 = vadd.f32 0.0, %v4349
  %v4351 = vpop.f32.mrb[0].mxu0
  %4352 = vdwg.mxu0
  %v4353 = vadd.f32 %v4350, 1.0
  %v4354 = vsub.f32 %v4203, %v4277
  %4356 = vrot.lane.b32.xlu0 %v4353, 126
  %v4357 = vpop.permute.xlu0 %4356
  %v4359 = vmul.f32 %v4353, %v4357
  %v4360 = vmul.f32 %v4350, %v4350
  %4362 = vrot.lane.b32.xlu0 %v4360, 127
  %v4363 = vpop.permute.xlu0 %4362
  %v4365 = vsub.f32 %v4359, %v4363
  %v4366 = vrcp.pop %v4365
  %v4367 = vmul.f32 1.0, %v4366
  %4369 = vrot.lane.b32.xlu0 %v4354, 2
  %v4370 = vpop.permute.xlu0 %4369
  %v4372 = vmul.f32 %v4353, %v4370
  %v4373 = vmul.f32 %v4350, %v4354
  %4375 = vrot.lane.b32.xlu0 %v4373, 1
  %v4376 = vpop.permute.xlu0 %4375
  %v4378 = vsub.f32 %v4372, %v4376
  %4379 = vrot.lane.b32.xlu0 %v4354, 127
  %v4380 = vpop.permute.xlu0 %4379
  %v4382 = vmul.f32 %v4353, %v4380
  %4383 = vrot.lane.b32.xlu0 %v4354, 1
  %v4384 = vpop.permute.xlu0 %4383
  %v4386 = vmul.f32 %v4350, %v4384
  %4388 = vrot.lane.b32.xlu0 %v4386, 127
  %v4389 = vpop.permute.xlu0 %4388
  %v4391 = vsub.f32 %v4382, %v4389
  %4393 = vrot.lane.b32.xlu0 %v4378, 126
  %v4394 = vpop.permute.xlu0 %4393
  %4397 = vrot.lane.b32.xlu0 %v4391, 1
  %v4398 = vpop.permute.xlu0 %4397
  %v4400 = vsel %vm484, %v4394, %v4398
  %4402 = vset.pattern.permute.xlu0 0
  %4403 = vperm.xlu0 %4402, %v4367
  %v4404 = vpop.permute.xlu0 %4403
  %v4406 = vmul.f32 %v4400, %v4404
  %4407 = vrot.lane.b32.xlu0 %v3981, 126
  %v4408 = vpop.permute.xlu0 %4407
  %4411 = vrot.lane.b32.xlu0 %v4406, 2
  %v4412 = vpop.permute.xlu0 %4411
  %v4414 = vsel %vm499, %v4408, %v4412
  %v4415 = vmul.f32 %v4414, 0.1
  %v4416 = vadd.f32 %v3981, %v4415
  %s4417 = scalar_lea.vmem %s8, 72
  %4418 = vst.msk [vmem:[%s4417] sm:$0xff] %vm58, %v4416
  // Predicated region
  $region34: #{tpu_custom_call.1} parent=0 // pred_check
    _
  $region35: #{tpu_custom_call.1} parent=0 // pred_check_branch
    %4420 = sbr.rel (0) target = $region37
  $region36: #{tpu_custom_call.1} parent=0 // pred_region
    _
  $region37: #{tpu_custom_call.1} parent=0 // pred_fallthru
    _
  // Predicated region
  $region38: #{tpu_custom_call.1} parent=0 // pred_check
    _
  $region39: #{tpu_custom_call.1} parent=0 // pred_check_branch
    %4422 = sbr.rel (0) target = $region41
  $region40: #{tpu_custom_call.1} parent=0 // pred_region
    _
  $region41: #{tpu_custom_call.1} parent=0 // pred_fallthru
    _

</llo_original>
